<compile_context>
chip_gen: v5e
topology: v5e:2x2
jax: 0.10.0
libtpu: 0.0.40
codegen_flags: <defaults>
</compile_context>

<pallas_src>
import numpy as np

import jax
import jax.numpy as jnp
from jax.experimental import pallas as pl
from jax.experimental.pallas import tpu as pltpu

EPS = 1e-5


# ---------------------------------------------------------------------------
# Fused Pallas kernel
# ---------------------------------------------------------------------------
def _make_resblock_kernel(C, P_pad, offsets, count):
    """Builds the fused kernel for given static sizes.

    Layout: activation A[C, P_pad], pixel (n, h, w) at flat index
    n*Hp*Wp + h*Wp + w (Hp=H+2, Wp=W+2, trailing zero rows/cols per image),
    zeros everywhere else -> a roll by -off is exactly a 3x3 conv tap read.
    """
    inv_count = 1.0 / float(count)

    def kernel(a_ref, w1_ref, w2_ref, bn_ref, mask_ref, o_ref):
        a = a_ref[...]                      # (C, P_pad), zero at pad slots
        mask = mask_ref[...]                # (1, P_pad), 1.0 at valid pixels

        def conv3x3(x, w_ref):
            # 9 accumulated taps; each tap is a lane rotation (XLU) + MXU dot.
            acc = None
            for t, off in enumerate(offsets):
                if off == 0:
                    xt = x
                else:
                    xt = pltpu.roll(x, shift=(-off) % P_pad, axis=1)
                y = jnp.dot(w_ref[t], xt, preferred_element_type=jnp.float32)
                acc = y if acc is None else acc + y
            return acc                      # (C, P_pad)

        def batchnorm(y, gamma, beta):
            # Training-mode batch stats over the N*H*W valid pixels only.
            ym = y * mask
            mean = jnp.sum(ym, axis=1, keepdims=True) * inv_count       # (C,1)
            d = (y - mean) * mask
            var = jnp.sum(d * d, axis=1, keepdims=True) * inv_count     # (C,1)
            return (y - mean) * jax.lax.rsqrt(var + EPS) * gamma + beta

        # stage 1: relu(bn1(conv1(x))); mask keeps pad slots zero so they act
        # as the zero padding for conv2.
        y1 = conv3x3(a, w1_ref)
        y1 = jnp.maximum(batchnorm(y1, bn_ref[0], bn_ref[1]), 0.0) * mask

        # stage 2: bn2(conv2(y1)) + residual, relu.  (pad-slot values are
        # garbage and get sliced away by the wrapper.)
        y2 = batchnorm(conv3x3(y1, w2_ref), bn_ref[2], bn_ref[3])
        o_ref[...] = jnp.maximum(y2 + a, 0.0)

    return kernel


# ---------------------------------------------------------------------------
# Wrapper (thin layout plumbing around a single pallas_call)
# ---------------------------------------------------------------------------
@jax.jit
def resblock_mnist_forward(x_nchw, params):
    """Forward pass matching ResBlock_MNIST (BatchNorm in training mode)."""
    n, c, h, w = x_nchw.shape
    hp, wp = h + 2, w + 2                    # per-image trailing zero pad
    s = hp * wp
    p = n * s
    p_pad = ((p + 127) // 128) * 128         # lane-dense flat length
    count = n * h * w
    # tap flat offsets for a 3x3 'same' conv in the flat-padded layout
    offsets = [(dh - 1) * wp + (dw - 1) for dh in range(3) for dw in range(3)]

    # --- activation: NCHW -> (C, P_pad) flat zero-padded, channels in sublanes
    x_f32 = x_nchw.astype(jnp.float32)
    xp = jnp.pad(x_f32, ((0, 0), (0, 0), (0, hp - h), (0, wp - w)))
    a = jnp.transpose(xp, (1, 0, 2, 3)).reshape(c, p)
    a = jnp.pad(a, ((0, 0), (0, p_pad - p)))

    # --- weights: PyTorch OIHW (Cout,Cin,3,3) -> 9 taps of (Cout, Cin)
    w1_taps = jnp.transpose(params["w1"], (2, 3, 0, 1)).reshape(9, c, c).astype(jnp.float32)
    w2_taps = jnp.transpose(params["w2"], (2, 3, 0, 1)).reshape(9, c, c).astype(jnp.float32)
    # Conv biases b1/b2 are intentionally NOT used: a per-channel bias before
    # training-mode BatchNorm cancels exactly (mean subtraction removes it).

    # --- BN affine params packed into one small operand: [g1, bt1, g2, bt2]
    bn = jnp.stack([params["g1"], params["bt1"], params["g2"], params["bt2"]])
    bn = bn.astype(jnp.float32).reshape(4, c, 1)

    # --- validity mask (static -> folded to a constant at trace time)
    idx = np.arange(p_pad)
    rows = (idx % s) // wp
    cols = (idx % s) % wp
    mask_np = ((idx < p) & (rows < h) & (cols < w)).astype(np.float32)
    mask = jnp.asarray(mask_np)[None, :]     # (1, P_pad)

    kernel = _make_resblock_kernel(c, p_pad, offsets, count)
    vmem = pl.BlockSpec(memory_space=pltpu.MemorySpace.VMEM)
    out = pl.pallas_call(
        kernel,
        out_shape=jax.ShapeDtypeStruct((c, p_pad), jnp.float32),
        in_specs=[vmem] * 5,
        out_specs=vmem,
    )(a, w1_taps, w2_taps, bn, mask)

    # --- unpack: (C, P_pad) -> (N, C, H, W)
    y = out[:, :p].reshape(c, n, hp, wp)[:, :, :h, :w]
    return jnp.transpose(y, (1, 0, 2, 3))


# ---------------------------------------------------------------------------
# Pure-JAX reference (for a sanity check)
# ---------------------------------------------------------------------------
def _ref_forward(x_nchw, params):
    x = jnp.transpose(x_nchw, (0, 2, 3, 1)).astype(jnp.float32)  # NHWC

    def conv(inp, w_oihw, b):
        w_hwio = jnp.transpose(w_oihw, (2, 3, 1, 0))
        out = jax.lax.conv_general_dilated(
            inp, w_hwio, window_strides=(1, 1), padding="SAME",
            dimension_numbers=("NHWC", "HWIO", "NHWC"))
        return out + b[None, None, None, :]

    def bn(y, g, bt):
        mean = jnp.mean(y, axis=(0, 1, 2), keepdims=True)
        var = jnp.mean(jnp.square(y - mean), axis=(0, 1, 2), keepdims=True)
        return (y - mean) * jax.lax.rsqrt(var + EPS) * g + bt

    y = jax.nn.relu(bn(conv(x, params["w1"], params["b1"]), params["g1"], params["bt1"]))
    z = bn(conv(y, params["w2"], params["b2"]), params["g2"], params["bt2"])
    z = jax.nn.relu(z + x)
    return jnp.transpose(z, (0, 3, 1, 2))


# ---------------------------------------------------------------------------
if __name__ == "__main__":
    N, C, H, W = 2, 4, 16, 16  # in_channels = 4
    keys = jax.random.split(jax.random.PRNGKey(0), 9)

    params = {
        # conv weights in PyTorch OIHW layout: (Cout, Cin, 3, 3)
        "w1": 0.1 * jax.random.normal(keys[0], (C, C, 3, 3), jnp.float32),
        "b1": 0.1 * jax.random.normal(keys[1], (C,), jnp.float32),
        "g1": 1.0 + 0.1 * jax.random.normal(keys[2], (C,), jnp.float32),
        "bt1": 0.1 * jax.random.normal(keys[3], (C,), jnp.float32),
        "w2": 0.1 * jax.random.normal(keys[4], (C, C, 3, 3), jnp.float32),
        "b2": 0.1 * jax.random.normal(keys[5], (C,), jnp.float32),
        "g2": 1.0 + 0.1 * jax.random.normal(keys[6], (C,), jnp.float32),
        "bt2": 0.1 * jax.random.normal(keys[7], (C,), jnp.float32),
    }
    x = jax.random.normal(keys[8], (N, C, H, W), jnp.float32)

    out = jax.block_until_ready(resblock_mnist_forward(x, params))
    ref = jax.block_until_ready(_ref_forward(x, params))

    assert out.shape == (N, C, H, W), out.shape
    err = float(jnp.max(jnp.abs(out - ref)))
    assert jnp.allclose(out, ref, rtol=1e-3, atol=1e-3), err

    print("KERNEL_OK")
</pallas_src>

<mosaic_0001>
module attributes {stable_mosaic.version = 11 : i64} {
  func.func @kernel(%arg0: memref<4x768xf32, #tpu.memory_space<vmem>>, %arg1: memref<9x4x4xf32, #tpu.memory_space<vmem>>, %arg2: memref<9x4x4xf32, #tpu.memory_space<vmem>>, %arg3: memref<4x4x1xf32, #tpu.memory_space<vmem>>, %arg4: memref<1x768xf32, #tpu.memory_space<vmem>>, %arg5: memref<4x768xf32, #tpu.memory_space<vmem>>) attributes {dimension_semantics = [], scalar_prefetch = 0 : i64, scratch_operands = 0 : i64, tpu.core_type = #tpu.core_type<tc>} {
    %c0 = arith.constant 0 : index
    %c0_0 = arith.constant 0 : index
    %0 = vector.load %arg0[%c0, %c0_0] : memref<4x768xf32, #tpu.memory_space<vmem>>, vector<4x768xf32>
    %c0_1 = arith.constant 0 : index
    %c0_2 = arith.constant 0 : index
    %1 = vector.load %arg4[%c0_1, %c0_2] : memref<1x768xf32, #tpu.memory_space<vmem>>, vector<1x768xf32>
    %c19_i32 = arith.constant 19 : i32
    %2 = tpu.dynamic_rotate %0 by %c19_i32 dim 1 : vector<4x768xf32>, i32 -> vector<4x768xf32>
    %c0_3 = arith.constant 0 : index
    %c0_4 = arith.constant 0 : index
    %c0_5 = arith.constant 0 : index
    %3 = vector.load %arg1[%c0_3, %c0_4, %c0_5] : memref<9x4x4xf32, #tpu.memory_space<vmem>>, vector<1x4x4xf32>
    %4 = vector.shape_cast %3 : vector<1x4x4xf32> to vector<4x4xf32>
    %cst = arith.constant dense<0.000000e+00> : vector<4x768xf32>
    %5 = tpu.matmul %4, %2, %cst {dimension_numbers = #tpu.dot_dimension_numbers<[1], [0], [0], [1], [0, 0, 1, 1], [], []>} : vector<4x4xf32>, vector<4x768xf32>, vector<4x768xf32> -> vector<4x768xf32>
    %c18_i32 = arith.constant 18 : i32
    %6 = tpu.dynamic_rotate %0 by %c18_i32 dim 1 : vector<4x768xf32>, i32 -> vector<4x768xf32>
    %c1 = arith.constant 1 : index
    %c0_6 = arith.constant 0 : index
    %c0_7 = arith.constant 0 : index
    %7 = vector.load %arg1[%c1, %c0_6, %c0_7] : memref<9x4x4xf32, #tpu.memory_space<vmem>>, vector<1x4x4xf32>
    %8 = vector.shape_cast %7 : vector<1x4x4xf32> to vector<4x4xf32>
    %cst_8 = arith.constant dense<0.000000e+00> : vector<4x768xf32>
    %9 = tpu.matmul %8, %6, %cst_8 {dimension_numbers = #tpu.dot_dimension_numbers<[1], [0], [0], [1], [0, 0, 1, 1], [], []>} : vector<4x4xf32>, vector<4x768xf32>, vector<4x768xf32> -> vector<4x768xf32>
    %10 = arith.addf %5, %9 : vector<4x768xf32>
    %c17_i32 = arith.constant 17 : i32
    %11 = tpu.dynamic_rotate %0 by %c17_i32 dim 1 : vector<4x768xf32>, i32 -> vector<4x768xf32>
    %c2 = arith.constant 2 : index
    %c0_9 = arith.constant 0 : index
    %c0_10 = arith.constant 0 : index
    %12 = vector.load %arg1[%c2, %c0_9, %c0_10] : memref<9x4x4xf32, #tpu.memory_space<vmem>>, vector<1x4x4xf32>
    %13 = vector.shape_cast %12 : vector<1x4x4xf32> to vector<4x4xf32>
    %cst_11 = arith.constant dense<0.000000e+00> : vector<4x768xf32>
    %14 = tpu.matmul %13, %11, %cst_11 {dimension_numbers = #tpu.dot_dimension_numbers<[1], [0], [0], [1], [0, 0, 1, 1], [], []>} : vector<4x4xf32>, vector<4x768xf32>, vector<4x768xf32> -> vector<4x768xf32>
    %15 = arith.addf %10, %14 : vector<4x768xf32>
    %c1_i32 = arith.constant 1 : i32
    %16 = tpu.dynamic_rotate %0 by %c1_i32 dim 1 : vector<4x768xf32>, i32 -> vector<4x768xf32>
    %c3 = arith.constant 3 : index
    %c0_12 = arith.constant 0 : index
    %c0_13 = arith.constant 0 : index
    %17 = vector.load %arg1[%c3, %c0_12, %c0_13] : memref<9x4x4xf32, #tpu.memory_space<vmem>>, vector<1x4x4xf32>
    %18 = vector.shape_cast %17 : vector<1x4x4xf32> to vector<4x4xf32>
    %cst_14 = arith.constant dense<0.000000e+00> : vector<4x768xf32>
    %19 = tpu.matmul %18, %16, %cst_14 {dimension_numbers = #tpu.dot_dimension_numbers<[1], [0], [0], [1], [0, 0, 1, 1], [], []>} : vector<4x4xf32>, vector<4x768xf32>, vector<4x768xf32> -> vector<4x768xf32>
    %20 = arith.addf %15, %19 : vector<4x768xf32>
    %c4 = arith.constant 4 : index
    %c0_15 = arith.constant 0 : index
    %c0_16 = arith.constant 0 : index
    %21 = vector.load %arg1[%c4, %c0_15, %c0_16] : memref<9x4x4xf32, #tpu.memory_space<vmem>>, vector<1x4x4xf32>
    %22 = vector.shape_cast %21 : vector<1x4x4xf32> to vector<4x4xf32>
    %cst_17 = arith.constant dense<0.000000e+00> : vector<4x768xf32>
    %23 = tpu.matmul %22, %0, %cst_17 {dimension_numbers = #tpu.dot_dimension_numbers<[1], [0], [0], [1], [0, 0, 1, 1], [], []>} : vector<4x4xf32>, vector<4x768xf32>, vector<4x768xf32> -> vector<4x768xf32>
    %24 = arith.addf %20, %23 : vector<4x768xf32>
    %c767_i32 = arith.constant 767 : i32
    %25 = tpu.dynamic_rotate %0 by %c767_i32 dim 1 : vector<4x768xf32>, i32 -> vector<4x768xf32>
    %c5 = arith.constant 5 : index
    %c0_18 = arith.constant 0 : index
    %c0_19 = arith.constant 0 : index
    %26 = vector.load %arg1[%c5, %c0_18, %c0_19] : memref<9x4x4xf32, #tpu.memory_space<vmem>>, vector<1x4x4xf32>
    %27 = vector.shape_cast %26 : vector<1x4x4xf32> to vector<4x4xf32>
    %cst_20 = arith.constant dense<0.000000e+00> : vector<4x768xf32>
    %28 = tpu.matmul %27, %25, %cst_20 {dimension_numbers = #tpu.dot_dimension_numbers<[1], [0], [0], [1], [0, 0, 1, 1], [], []>} : vector<4x4xf32>, vector<4x768xf32>, vector<4x768xf32> -> vector<4x768xf32>
    %29 = arith.addf %24, %28 : vector<4x768xf32>
    %c751_i32 = arith.constant 751 : i32
    %30 = tpu.dynamic_rotate %0 by %c751_i32 dim 1 : vector<4x768xf32>, i32 -> vector<4x768xf32>
    %c6 = arith.constant 6 : index
    %c0_21 = arith.constant 0 : index
    %c0_22 = arith.constant 0 : index
    %31 = vector.load %arg1[%c6, %c0_21, %c0_22] : memref<9x4x4xf32, #tpu.memory_space<vmem>>, vector<1x4x4xf32>
    %32 = vector.shape_cast %31 : vector<1x4x4xf32> to vector<4x4xf32>
    %cst_23 = arith.constant dense<0.000000e+00> : vector<4x768xf32>
    %33 = tpu.matmul %32, %30, %cst_23 {dimension_numbers = #tpu.dot_dimension_numbers<[1], [0], [0], [1], [0, 0, 1, 1], [], []>} : vector<4x4xf32>, vector<4x768xf32>, vector<4x768xf32> -> vector<4x768xf32>
    %34 = arith.addf %29, %33 : vector<4x768xf32>
    %c750_i32 = arith.constant 750 : i32
    %35 = tpu.dynamic_rotate %0 by %c750_i32 dim 1 : vector<4x768xf32>, i32 -> vector<4x768xf32>
    %c7 = arith.constant 7 : index
    %c0_24 = arith.constant 0 : index
    %c0_25 = arith.constant 0 : index
    %36 = vector.load %arg1[%c7, %c0_24, %c0_25] : memref<9x4x4xf32, #tpu.memory_space<vmem>>, vector<1x4x4xf32>
    %37 = vector.shape_cast %36 : vector<1x4x4xf32> to vector<4x4xf32>
    %cst_26 = arith.constant dense<0.000000e+00> : vector<4x768xf32>
    %38 = tpu.matmul %37, %35, %cst_26 {dimension_numbers = #tpu.dot_dimension_numbers<[1], [0], [0], [1], [0, 0, 1, 1], [], []>} : vector<4x4xf32>, vector<4x768xf32>, vector<4x768xf32> -> vector<4x768xf32>
    %39 = arith.addf %34, %38 : vector<4x768xf32>
    %c749_i32 = arith.constant 749 : i32
    %40 = tpu.dynamic_rotate %0 by %c749_i32 dim 1 : vector<4x768xf32>, i32 -> vector<4x768xf32>
    %c8 = arith.constant 8 : index
    %c0_27 = arith.constant 0 : index
    %c0_28 = arith.constant 0 : index
    %41 = vector.load %arg1[%c8, %c0_27, %c0_28] : memref<9x4x4xf32, #tpu.memory_space<vmem>>, vector<1x4x4xf32>
    %42 = vector.shape_cast %41 : vector<1x4x4xf32> to vector<4x4xf32>
    %cst_29 = arith.constant dense<0.000000e+00> : vector<4x768xf32>
    %43 = tpu.matmul %42, %40, %cst_29 {dimension_numbers = #tpu.dot_dimension_numbers<[1], [0], [0], [1], [0, 0, 1, 1], [], []>} : vector<4x4xf32>, vector<4x768xf32>, vector<4x768xf32> -> vector<4x768xf32>
    %44 = arith.addf %39, %43 : vector<4x768xf32>
    %c0_30 = arith.constant 0 : index
    %c0_31 = arith.constant 0 : index
    %c0_32 = arith.constant 0 : index
    %45 = vector.load %arg3[%c0_30, %c0_31, %c0_32] : memref<4x4x1xf32, #tpu.memory_space<vmem>>, vector<1x4x1xf32>
    %46 = vector.shape_cast %45 : vector<1x4x1xf32> to vector<4x1xf32>
    %c1_33 = arith.constant 1 : index
    %c0_34 = arith.constant 0 : index
    %c0_35 = arith.constant 0 : index
    %47 = vector.load %arg3[%c1_33, %c0_34, %c0_35] : memref<4x4x1xf32, #tpu.memory_space<vmem>>, vector<1x4x1xf32>
    %48 = vector.shape_cast %47 : vector<1x4x1xf32> to vector<4x1xf32>
    %49 = vector.broadcast %1 : vector<1x768xf32> to vector<4x768xf32>
    %50 = arith.mulf %44, %49 : vector<4x768xf32>
    %cst_36 = arith.constant dense<0.000000e+00> : vector<4xf32>
    %51 = vector.multi_reduction <add>, %50, %cst_36 [1] : vector<4x768xf32> to vector<4xf32>
    %52 = vector.shape_cast %51 : vector<4xf32> to vector<4x1xf32>
    %cst_37 = arith.constant 0.001953125 : f32
    %53 = vector.broadcast %cst_37 : f32 to vector<4x1xf32>
    %54 = arith.mulf %52, %53 : vector<4x1xf32>
    %55 = vector.broadcast %54 : vector<4x1xf32> to vector<4x768xf32>
    %56 = arith.subf %44, %55 : vector<4x768xf32>
    %57 = vector.broadcast %1 : vector<1x768xf32> to vector<4x768xf32>
    %58 = arith.mulf %56, %57 : vector<4x768xf32>
    %59 = arith.mulf %58, %58 : vector<4x768xf32>
    %cst_38 = arith.constant dense<0.000000e+00> : vector<4xf32>
    %60 = vector.multi_reduction <add>, %59, %cst_38 [1] : vector<4x768xf32> to vector<4xf32>
    %61 = vector.shape_cast %60 : vector<4xf32> to vector<4x1xf32>
    %cst_39 = arith.constant 0.001953125 : f32
    %62 = vector.broadcast %cst_39 : f32 to vector<4x1xf32>
    %63 = arith.mulf %61, %62 : vector<4x1xf32>
    %64 = vector.broadcast %54 : vector<4x1xf32> to vector<4x768xf32>
    %65 = arith.subf %44, %64 : vector<4x768xf32>
    %cst_40 = arith.constant 9.99999974E-6 : f32
    %66 = vector.broadcast %cst_40 : f32 to vector<4x1xf32>
    %67 = arith.addf %63, %66 : vector<4x1xf32>
    %68 = math.rsqrt %67 : vector<4x1xf32>
    %69 = vector.broadcast %68 : vector<4x1xf32> to vector<4x768xf32>
    %70 = arith.mulf %65, %69 : vector<4x768xf32>
    %71 = vector.broadcast %46 : vector<4x1xf32> to vector<4x768xf32>
    %72 = arith.mulf %70, %71 : vector<4x768xf32>
    %73 = vector.broadcast %48 : vector<4x1xf32> to vector<4x768xf32>
    %74 = arith.addf %72, %73 : vector<4x768xf32>
    %cst_41 = arith.constant 0.000000e+00 : f32
    %75 = vector.broadcast %cst_41 : f32 to vector<4x768xf32>
    %76 = arith.maximumf %74, %75 : vector<4x768xf32>
    %77 = vector.broadcast %1 : vector<1x768xf32> to vector<4x768xf32>
    %78 = arith.mulf %76, %77 : vector<4x768xf32>
    %c19_i32_42 = arith.constant 19 : i32
    %79 = tpu.dynamic_rotate %78 by %c19_i32_42 dim 1 : vector<4x768xf32>, i32 -> vector<4x768xf32>
    %c0_43 = arith.constant 0 : index
    %c0_44 = arith.constant 0 : index
    %c0_45 = arith.constant 0 : index
    %80 = vector.load %arg2[%c0_43, %c0_44, %c0_45] : memref<9x4x4xf32, #tpu.memory_space<vmem>>, vector<1x4x4xf32>
    %81 = vector.shape_cast %80 : vector<1x4x4xf32> to vector<4x4xf32>
    %cst_46 = arith.constant dense<0.000000e+00> : vector<4x768xf32>
    %82 = tpu.matmul %81, %79, %cst_46 {dimension_numbers = #tpu.dot_dimension_numbers<[1], [0], [0], [1], [0, 0, 1, 1], [], []>} : vector<4x4xf32>, vector<4x768xf32>, vector<4x768xf32> -> vector<4x768xf32>
    %c18_i32_47 = arith.constant 18 : i32
    %83 = tpu.dynamic_rotate %78 by %c18_i32_47 dim 1 : vector<4x768xf32>, i32 -> vector<4x768xf32>
    %c1_48 = arith.constant 1 : index
    %c0_49 = arith.constant 0 : index
    %c0_50 = arith.constant 0 : index
    %84 = vector.load %arg2[%c1_48, %c0_49, %c0_50] : memref<9x4x4xf32, #tpu.memory_space<vmem>>, vector<1x4x4xf32>
    %85 = vector.shape_cast %84 : vector<1x4x4xf32> to vector<4x4xf32>
    %cst_51 = arith.constant dense<0.000000e+00> : vector<4x768xf32>
    %86 = tpu.matmul %85, %83, %cst_51 {dimension_numbers = #tpu.dot_dimension_numbers<[1], [0], [0], [1], [0, 0, 1, 1], [], []>} : vector<4x4xf32>, vector<4x768xf32>, vector<4x768xf32> -> vector<4x768xf32>
    %87 = arith.addf %82, %86 : vector<4x768xf32>
    %c17_i32_52 = arith.constant 17 : i32
    %88 = tpu.dynamic_rotate %78 by %c17_i32_52 dim 1 : vector<4x768xf32>, i32 -> vector<4x768xf32>
    %c2_53 = arith.constant 2 : index
    %c0_54 = arith.constant 0 : index
    %c0_55 = arith.constant 0 : index
    %89 = vector.load %arg2[%c2_53, %c0_54, %c0_55] : memref<9x4x4xf32, #tpu.memory_space<vmem>>, vector<1x4x4xf32>
    %90 = vector.shape_cast %89 : vector<1x4x4xf32> to vector<4x4xf32>
    %cst_56 = arith.constant dense<0.000000e+00> : vector<4x768xf32>
    %91 = tpu.matmul %90, %88, %cst_56 {dimension_numbers = #tpu.dot_dimension_numbers<[1], [0], [0], [1], [0, 0, 1, 1], [], []>} : vector<4x4xf32>, vector<4x768xf32>, vector<4x768xf32> -> vector<4x768xf32>
    %92 = arith.addf %87, %91 : vector<4x768xf32>
    %c1_i32_57 = arith.constant 1 : i32
    %93 = tpu.dynamic_rotate %78 by %c1_i32_57 dim 1 : vector<4x768xf32>, i32 -> vector<4x768xf32>
    %c3_58 = arith.constant 3 : index
    %c0_59 = arith.constant 0 : index
    %c0_60 = arith.constant 0 : index
    %94 = vector.load %arg2[%c3_58, %c0_59, %c0_60] : memref<9x4x4xf32, #tpu.memory_space<vmem>>, vector<1x4x4xf32>
    %95 = vector.shape_cast %94 : vector<1x4x4xf32> to vector<4x4xf32>
    %cst_61 = arith.constant dense<0.000000e+00> : vector<4x768xf32>
    %96 = tpu.matmul %95, %93, %cst_61 {dimension_numbers = #tpu.dot_dimension_numbers<[1], [0], [0], [1], [0, 0, 1, 1], [], []>} : vector<4x4xf32>, vector<4x768xf32>, vector<4x768xf32> -> vector<4x768xf32>
    %97 = arith.addf %92, %96 : vector<4x768xf32>
    %c4_62 = arith.constant 4 : index
    %c0_63 = arith.constant 0 : index
    %c0_64 = arith.constant 0 : index
    %98 = vector.load %arg2[%c4_62, %c0_63, %c0_64] : memref<9x4x4xf32, #tpu.memory_space<vmem>>, vector<1x4x4xf32>
    %99 = vector.shape_cast %98 : vector<1x4x4xf32> to vector<4x4xf32>
    %cst_65 = arith.constant dense<0.000000e+00> : vector<4x768xf32>
    %100 = tpu.matmul %99, %78, %cst_65 {dimension_numbers = #tpu.dot_dimension_numbers<[1], [0], [0], [1], [0, 0, 1, 1], [], []>} : vector<4x4xf32>, vector<4x768xf32>, vector<4x768xf32> -> vector<4x768xf32>
    %101 = arith.addf %97, %100 : vector<4x768xf32>
    %c767_i32_66 = arith.constant 767 : i32
    %102 = tpu.dynamic_rotate %78 by %c767_i32_66 dim 1 : vector<4x768xf32>, i32 -> vector<4x768xf32>
    %c5_67 = arith.constant 5 : index
    %c0_68 = arith.constant 0 : index
    %c0_69 = arith.constant 0 : index
    %103 = vector.load %arg2[%c5_67, %c0_68, %c0_69] : memref<9x4x4xf32, #tpu.memory_space<vmem>>, vector<1x4x4xf32>
    %104 = vector.shape_cast %103 : vector<1x4x4xf32> to vector<4x4xf32>
    %cst_70 = arith.constant dense<0.000000e+00> : vector<4x768xf32>
    %105 = tpu.matmul %104, %102, %cst_70 {dimension_numbers = #tpu.dot_dimension_numbers<[1], [0], [0], [1], [0, 0, 1, 1], [], []>} : vector<4x4xf32>, vector<4x768xf32>, vector<4x768xf32> -> vector<4x768xf32>
    %106 = arith.addf %101, %105 : vector<4x768xf32>
    %c751_i32_71 = arith.constant 751 : i32
    %107 = tpu.dynamic_rotate %78 by %c751_i32_71 dim 1 : vector<4x768xf32>, i32 -> vector<4x768xf32>
    %c6_72 = arith.constant 6 : index
    %c0_73 = arith.constant 0 : index
    %c0_74 = arith.constant 0 : index
    %108 = vector.load %arg2[%c6_72, %c0_73, %c0_74] : memref<9x4x4xf32, #tpu.memory_space<vmem>>, vector<1x4x4xf32>
    %109 = vector.shape_cast %108 : vector<1x4x4xf32> to vector<4x4xf32>
    %cst_75 = arith.constant dense<0.000000e+00> : vector<4x768xf32>
    %110 = tpu.matmul %109, %107, %cst_75 {dimension_numbers = #tpu.dot_dimension_numbers<[1], [0], [0], [1], [0, 0, 1, 1], [], []>} : vector<4x4xf32>, vector<4x768xf32>, vector<4x768xf32> -> vector<4x768xf32>
    %111 = arith.addf %106, %110 : vector<4x768xf32>
    %c750_i32_76 = arith.constant 750 : i32
    %112 = tpu.dynamic_rotate %78 by %c750_i32_76 dim 1 : vector<4x768xf32>, i32 -> vector<4x768xf32>
    %c7_77 = arith.constant 7 : index
    %c0_78 = arith.constant 0 : index
    %c0_79 = arith.constant 0 : index
    %113 = vector.load %arg2[%c7_77, %c0_78, %c0_79] : memref<9x4x4xf32, #tpu.memory_space<vmem>>, vector<1x4x4xf32>
    %114 = vector.shape_cast %113 : vector<1x4x4xf32> to vector<4x4xf32>
    %cst_80 = arith.constant dense<0.000000e+00> : vector<4x768xf32>
    %115 = tpu.matmul %114, %112, %cst_80 {dimension_numbers = #tpu.dot_dimension_numbers<[1], [0], [0], [1], [0, 0, 1, 1], [], []>} : vector<4x4xf32>, vector<4x768xf32>, vector<4x768xf32> -> vector<4x768xf32>
    %116 = arith.addf %111, %115 : vector<4x768xf32>
    %c749_i32_81 = arith.constant 749 : i32
    %117 = tpu.dynamic_rotate %78 by %c749_i32_81 dim 1 : vector<4x768xf32>, i32 -> vector<4x768xf32>
    %c8_82 = arith.constant 8 : index
    %c0_83 = arith.constant 0 : index
    %c0_84 = arith.constant 0 : index
    %118 = vector.load %arg2[%c8_82, %c0_83, %c0_84] : memref<9x4x4xf32, #tpu.memory_space<vmem>>, vector<1x4x4xf32>
    %119 = vector.shape_cast %118 : vector<1x4x4xf32> to vector<4x4xf32>
    %cst_85 = arith.constant dense<0.000000e+00> : vector<4x768xf32>
    %120 = tpu.matmul %119, %117, %cst_85 {dimension_numbers = #tpu.dot_dimension_numbers<[1], [0], [0], [1], [0, 0, 1, 1], [], []>} : vector<4x4xf32>, vector<4x768xf32>, vector<4x768xf32> -> vector<4x768xf32>
    %121 = arith.addf %116, %120 : vector<4x768xf32>
    %c2_86 = arith.constant 2 : index
    %c0_87 = arith.constant 0 : index
    %c0_88 = arith.constant 0 : index
    %122 = vector.load %arg3[%c2_86, %c0_87, %c0_88] : memref<4x4x1xf32, #tpu.memory_space<vmem>>, vector<1x4x1xf32>
    %123 = vector.shape_cast %122 : vector<1x4x1xf32> to vector<4x1xf32>
    %c3_89 = arith.constant 3 : index
    %c0_90 = arith.constant 0 : index
    %c0_91 = arith.constant 0 : index
    %124 = vector.load %arg3[%c3_89, %c0_90, %c0_91] : memref<4x4x1xf32, #tpu.memory_space<vmem>>, vector<1x4x1xf32>
    %125 = vector.shape_cast %124 : vector<1x4x1xf32> to vector<4x1xf32>
    %126 = vector.broadcast %1 : vector<1x768xf32> to vector<4x768xf32>
    %127 = arith.mulf %121, %126 : vector<4x768xf32>
    %cst_92 = arith.constant dense<0.000000e+00> : vector<4xf32>
    %128 = vector.multi_reduction <add>, %127, %cst_92 [1] : vector<4x768xf32> to vector<4xf32>
    %129 = vector.shape_cast %128 : vector<4xf32> to vector<4x1xf32>
    %cst_93 = arith.constant 0.001953125 : f32
    %130 = vector.broadcast %cst_93 : f32 to vector<4x1xf32>
    %131 = arith.mulf %129, %130 : vector<4x1xf32>
    %132 = vector.broadcast %131 : vector<4x1xf32> to vector<4x768xf32>
    %133 = arith.subf %121, %132 : vector<4x768xf32>
    %134 = vector.broadcast %1 : vector<1x768xf32> to vector<4x768xf32>
    %135 = arith.mulf %133, %134 : vector<4x768xf32>
    %136 = arith.mulf %135, %135 : vector<4x768xf32>
    %cst_94 = arith.constant dense<0.000000e+00> : vector<4xf32>
    %137 = vector.multi_reduction <add>, %136, %cst_94 [1] : vector<4x768xf32> to vector<4xf32>
    %138 = vector.shape_cast %137 : vector<4xf32> to vector<4x1xf32>
    %cst_95 = arith.constant 0.001953125 : f32
    %139 = vector.broadcast %cst_95 : f32 to vector<4x1xf32>
    %140 = arith.mulf %138, %139 : vector<4x1xf32>
    %141 = vector.broadcast %131 : vector<4x1xf32> to vector<4x768xf32>
    %142 = arith.subf %121, %141 : vector<4x768xf32>
    %cst_96 = arith.constant 9.99999974E-6 : f32
    %143 = vector.broadcast %cst_96 : f32 to vector<4x1xf32>
    %144 = arith.addf %140, %143 : vector<4x1xf32>
    %145 = math.rsqrt %144 : vector<4x1xf32>
    %146 = vector.broadcast %145 : vector<4x1xf32> to vector<4x768xf32>
    %147 = arith.mulf %142, %146 : vector<4x768xf32>
    %148 = vector.broadcast %123 : vector<4x1xf32> to vector<4x768xf32>
    %149 = arith.mulf %147, %148 : vector<4x768xf32>
    %150 = vector.broadcast %125 : vector<4x1xf32> to vector<4x768xf32>
    %151 = arith.addf %149, %150 : vector<4x768xf32>
    %152 = arith.addf %151, %0 : vector<4x768xf32>
    %cst_97 = arith.constant 0.000000e+00 : f32
    %153 = vector.broadcast %cst_97 : f32 to vector<4x768xf32>
    %154 = arith.maximumf %152, %153 : vector<4x768xf32>
    %c0_98 = arith.constant 0 : index
    %c0_99 = arith.constant 0 : index
    %155 = vector.load %arg5[%c0_98, %c0_99] : memref<4x768xf32, #tpu.memory_space<vmem>>, vector<4x768xf32>
    tpu.vector_store %arg5[%c0_98, %c0_99], %154 {strides = array<i32>} : memref<4x768xf32, #tpu.memory_space<vmem>>, vector<4x768xf32>,
    return
  }
}

</mosaic_0001>

<llo_original>
// kernel: resblock_mnist_forward.1
$region0: #{resblock_mnist_forward.1}
  #allocation0 [shape = 'u32[]', space=smem, size = 0x4, offset = 0x4, fixed_abs, tag = 'smem constant byte address 0x4 - core index']
  #allocation1 [shape = 'u32[72,128]{1,0:T(1,128)}', space=vmem, size = 0x9000, scoped, tag = 'internal scratch']
  %s0 = inlined_call_operand.vmem [shape: f32[4,768], index: 0, kind: input, shape index: {}]
  %s1 = inlined_call_operand.vmem [shape: f32[9,4,4], index: 1, kind: input, shape index: {}]
  %s2 = inlined_call_operand.vmem [shape: f32[9,4,4], index: 2, kind: input, shape index: {}]
  %s3 = inlined_call_operand.vmem [shape: f32[4,4,1], index: 3, kind: input, shape index: {}]
  %s4 = inlined_call_operand.vmem [shape: f32[1,768], index: 4, kind: input, shape index: {}]
  %s5 = inlined_call_operand.vmem [shape: f32[4,768], index: 5, kind: output, shape index: {}]
  %s6 = sld [smem:[#allocation0]]
  $region30: #{resblock_mnist_forward.1} parent=0
    _
  %s8 = ssub.s32 1, %s6
  %s9 = scalar_select 0, %s8, %s6
  // Predicated region
  $region2: #{resblock_mnist_forward.1} parent=0 // pred_check
    _
  $region3: #{resblock_mnist_forward.1} parent=0 // pred_check_branch
    %11 = sbr.rel (0) target = $region5
  $region4: #{resblock_mnist_forward.1} parent=0 // pred_region
    _
  $region5: #{resblock_mnist_forward.1} parent=0 // pred_fallthru
    _
  // Predicated region
  $region6: #{resblock_mnist_forward.1} parent=0 // pred_check
    _
  $region7: #{resblock_mnist_forward.1} parent=0 // pred_check_branch
    %13 = sbr.rel (0) target = $region9
  $region8: #{resblock_mnist_forward.1} parent=0 // pred_region
    _
  $region9: #{resblock_mnist_forward.1} parent=0 // pred_fallthru
    _
  // Predicated region
  $region10: #{resblock_mnist_forward.1} parent=0 // pred_check
    _
  $region11: #{resblock_mnist_forward.1} parent=0 // pred_check_branch
    %15 = sbr.rel (0) target = $region13
  $region12: #{resblock_mnist_forward.1} parent=0 // pred_region
    _
  $region13: #{resblock_mnist_forward.1} parent=0 // pred_fallthru
    _
  // Predicated region
  $region14: #{resblock_mnist_forward.1} parent=0 // pred_check
    _
  $region15: #{resblock_mnist_forward.1} parent=0 // pred_check_branch
    %17 = sbr.rel (0) target = $region17
  $region16: #{resblock_mnist_forward.1} parent=0 // pred_region
    _
  $region17: #{resblock_mnist_forward.1} parent=0 // pred_fallthru
    _
  // Predicated region
  $region18: #{resblock_mnist_forward.1} parent=0 // pred_check
    _
  $region19: #{resblock_mnist_forward.1} parent=0 // pred_check_branch
    %19 = sbr.rel (0) target = $region21
  $region20: #{resblock_mnist_forward.1} parent=0 // pred_region
    _
  $region21: #{resblock_mnist_forward.1} parent=0 // pred_fallthru
    _
  %v20 = vld [vmem:[%s0] sm:$0xff]
  %v21 = vld [vmem:[%s0 + $0x8] sm:$0xff]
  %v22 = vld [vmem:[%s0 + $0x10] sm:$0xff]
  %v23 = vld [vmem:[%s4] sm:$0x3f]
  %27 = vst [vmem:[#allocation1] ss:$2 sm:$0xff] %v20
  %s28 = scalar_lea.vmem [#allocation1], 16
  %29 = vst [vmem:[%s28] ss:$2 sm:$0xff] %v21
  %s30 = scalar_lea.vmem [#allocation1], 32
  %31 = vst [vmem:[%s30] ss:$2 sm:$0xff] %v22
  %v32 = vld.sshfl [vmem:[#allocation1] sm:$0xff pattern:$0x75316420]
  %v33 = vld.sshfl [vmem:[#allocation1 + $0x8] sm:$0xff pattern:$0x75316420]
  %v34 = vld.sshfl [vmem:[#allocation1 + $0x10] sm:$0xff pattern:$0x75316420]
  %v35 = vld.sshfl [vmem:[#allocation1 + $0x18] sm:$0xff pattern:$0x75316420]
  %v36 = vld.sshfl [vmem:[#allocation1 + $0x20] sm:$0xff pattern:$0x75316420]
  %v37 = vld.sshfl [vmem:[#allocation1 + $0x28] sm:$0xff pattern:$0x75316420]
  %44 = vrot.lane.b32.xlu0 %v32, 19
  %v45 = vpop.permute.xlu0 %44
  %46 = vrot.lane.b32.xlu0 %v33, 19
  %v47 = vpop.permute.xlu0 %46
  %48 = vrot.lane.b32.xlu0 %v34, 19
  %v49 = vpop.permute.xlu0 %48
  %50 = vrot.lane.b32.xlu0 %v35, 19
  %v51 = vpop.permute.xlu0 %50
  %52 = vrot.lane.b32.xlu0 %v36, 19
  %v53 = vpop.permute.xlu0 %52
  %54 = vrot.lane.b32.xlu0 %v37, 19
  %v55 = vpop.permute.xlu0 %54
  %v56 = vlaneseq
  %v57 = vand.u32 %v56, 127
  %vm58 = vcmp.lt.s32.totalorder %v57, 19
  %v59 = vsel %vm58, %v53, %v55
  %v60 = vsel %vm58, %v51, %v53
  %v61 = vsel %vm58, %v49, %v51
  %v62 = vsel %vm58, %v47, %v49
  %v63 = vsel %vm58, %v45, %v47
  %v64 = vsel %vm58, %v55, %v45
  %v65 = vld [vmem:[%s1] sm:$0xf]
  %66 = vst [vmem:[#allocation1] ss:$2 sm:$0xff] %v20
  %s67 = scalar_lea.vmem [#allocation1], 16
  %68 = vst [vmem:[%s67] ss:$2 sm:$0xff] %v21
  %s69 = scalar_lea.vmem [#allocation1], 32
  %70 = vst [vmem:[%s69] ss:$2 sm:$0xff] %v22
  %v71 = vld.sshfl [vmem:[#allocation1] sm:$0xff pattern:$0x75316420]
  %v72 = vld.sshfl [vmem:[#allocation1 + $0x8] sm:$0xff pattern:$0x75316420]
  %v73 = vld.sshfl [vmem:[#allocation1 + $0x10] sm:$0xff pattern:$0x75316420]
  %v74 = vld.sshfl [vmem:[#allocation1 + $0x18] sm:$0xff pattern:$0x75316420]
  %v75 = vld.sshfl [vmem:[#allocation1 + $0x20] sm:$0xff pattern:$0x75316420]
  %v76 = vld.sshfl [vmem:[#allocation1 + $0x28] sm:$0xff pattern:$0x75316420]
  %83 = vrot.lane.b32.xlu0 %v71, 18
  %v84 = vpop.permute.xlu0 %83
  %85 = vrot.lane.b32.xlu0 %v72, 18
  %v86 = vpop.permute.xlu0 %85
  %87 = vrot.lane.b32.xlu0 %v73, 18
  %v88 = vpop.permute.xlu0 %87
  %89 = vrot.lane.b32.xlu0 %v74, 18
  %v90 = vpop.permute.xlu0 %89
  %91 = vrot.lane.b32.xlu0 %v75, 18
  %v92 = vpop.permute.xlu0 %91
  %93 = vrot.lane.b32.xlu0 %v76, 18
  %v94 = vpop.permute.xlu0 %93
  %vm95 = vcmp.lt.s32.totalorder %v57, 18
  %v96 = vsel %vm95, %v92, %v94
  %v97 = vsel %vm95, %v90, %v92
  %v98 = vsel %vm95, %v88, %v90
  %v99 = vsel %vm95, %v86, %v88
  %v100 = vsel %vm95, %v84, %v86
  %v101 = vsel %vm95, %v94, %v84
  %s102 = scalar_lea.vmem %s1, 4
  %v103 = vld [vmem:[%s102] sm:$0xf]
  %vm104 = vcmask 31744
  %v106 = vsel %vm104, %v103, 0
  %vm108 = vcmask 1043456
  %v110 = vsel %vm108, %v101, 0
  %v113 = vsel %vm108, %v100, 0
  %v116 = vsel %vm108, %v99, 0
  %v119 = vsel %vm108, %v98, 0
  %v122 = vsel %vm108, %v97, 0
  %v125 = vsel %vm108, %v96, 0
  %127 = vmatpush.msra.mxu0 0.0
  %128 = vmatpush.msra.mxu0 0.0
  %129 = vmatpush.msra.mxu0 0.0
  %130 = vmatpush.msra.mxu0 0.0
  %131 = vmatpush.msra.mxu0 0.0
  %132 = vmatpush.msra.mxu0 0.0
  %133 = vmatpush.msra.mxu0 0.0
  %134 = vmatpush.msra.mxu0 0.0
  %135 = vmatpush.msra.mxu0 0.0
  %136 = vmatpush.msra.mxu0 0.0
  %137 = vmatpush.msra.mxu0 0.0
  %138 = vmatpush.msra.mxu0 0.0
  %139 = vmatpush.msra.mxu0 0.0
  %140 = vmatpush.msra.mxu0 0.0
  %141 = vmatpush.msra.mxu0 0.0
  %142 = vmatpush.msra.mxu0 %v110
  %143 = vmatmul.f32.gmra.mxu0 %v106
  %v144 = vpop.f32.mrf.mxu0
  %v145 = vadd.f32 0.0, %v144
  %146 = vdwg.mxu0
  %147 = vmatpush.msra.mxu0 0.0
  %148 = vmatpush.msra.mxu0 0.0
  %149 = vmatpush.msra.mxu0 0.0
  %150 = vmatpush.msra.mxu0 0.0
  %151 = vmatpush.msra.mxu0 0.0
  %152 = vmatpush.msra.mxu0 0.0
  %153 = vmatpush.msra.mxu0 0.0
  %154 = vmatpush.msra.mxu0 0.0
  %155 = vmatpush.msra.mxu0 0.0
  %156 = vmatpush.msra.mxu0 0.0
  %157 = vmatpush.msra.mxu0 0.0
  %158 = vmatpush.msra.mxu0 0.0
  %159 = vmatpush.msra.mxu0 0.0
  %160 = vmatpush.msra.mxu0 0.0
  %161 = vmatpush.msra.mxu0 0.0
  %162 = vmatpush.msra.mxu0 %v113
  %163 = vmatmul.f32.gmra.mxu0 %v106
  %v164 = vpop.f32.mrf.mxu0
  %v165 = vadd.f32 0.0, %v164
  %166 = vdwg.mxu0
  %167 = vmatpush.msra.mxu0 0.0
  %168 = vmatpush.msra.mxu0 0.0
  %169 = vmatpush.msra.mxu0 0.0
  %170 = vmatpush.msra.mxu0 0.0
  %171 = vmatpush.msra.mxu0 0.0
  %172 = vmatpush.msra.mxu0 0.0
  %173 = vmatpush.msra.mxu0 0.0
  %174 = vmatpush.msra.mxu0 0.0
  %175 = vmatpush.msra.mxu0 0.0
  %176 = vmatpush.msra.mxu0 0.0
  %177 = vmatpush.msra.mxu0 0.0
  %178 = vmatpush.msra.mxu0 0.0
  %179 = vmatpush.msra.mxu0 0.0
  %180 = vmatpush.msra.mxu0 0.0
  %181 = vmatpush.msra.mxu0 0.0
  %182 = vmatpush.msra.mxu0 %v116
  %183 = vmatmul.f32.gmra.mxu0 %v106
  %v184 = vpop.f32.mrf.mxu0
  %v185 = vadd.f32 0.0, %v184
  %186 = vdwg.mxu0
  %187 = vmatpush.msra.mxu0 0.0
  %188 = vmatpush.msra.mxu0 0.0
  %189 = vmatpush.msra.mxu0 0.0
  %190 = vmatpush.msra.mxu0 0.0
  %191 = vmatpush.msra.mxu0 0.0
  %192 = vmatpush.msra.mxu0 0.0
  %193 = vmatpush.msra.mxu0 0.0
  %194 = vmatpush.msra.mxu0 0.0
  %195 = vmatpush.msra.mxu0 0.0
  %196 = vmatpush.msra.mxu0 0.0
  %197 = vmatpush.msra.mxu0 0.0
  %198 = vmatpush.msra.mxu0 0.0
  %199 = vmatpush.msra.mxu0 0.0
  %200 = vmatpush.msra.mxu0 0.0
  %201 = vmatpush.msra.mxu0 0.0
  %202 = vmatpush.msra.mxu0 %v119
  %203 = vmatmul.f32.gmra.mxu0 %v106
  %v204 = vpop.f32.mrf.mxu0
  %v205 = vadd.f32 0.0, %v204
  %206 = vdwg.mxu0
  %207 = vmatpush.msra.mxu0 0.0
  %208 = vmatpush.msra.mxu0 0.0
  %209 = vmatpush.msra.mxu0 0.0
  %210 = vmatpush.msra.mxu0 0.0
  %211 = vmatpush.msra.mxu0 0.0
  %212 = vmatpush.msra.mxu0 0.0
  %213 = vmatpush.msra.mxu0 0.0
  %214 = vmatpush.msra.mxu0 0.0
  %215 = vmatpush.msra.mxu0 0.0
  %216 = vmatpush.msra.mxu0 0.0
  %217 = vmatpush.msra.mxu0 0.0
  %218 = vmatpush.msra.mxu0 0.0
  %219 = vmatpush.msra.mxu0 0.0
  %220 = vmatpush.msra.mxu0 0.0
  %221 = vmatpush.msra.mxu0 0.0
  %222 = vmatpush.msra.mxu0 %v122
  %223 = vmatmul.f32.gmra.mxu0 %v106
  %v224 = vpop.f32.mrf.mxu0
  %v225 = vadd.f32 0.0, %v224
  %226 = vdwg.mxu0
  %227 = vmatpush.msra.mxu0 0.0
  %228 = vmatpush.msra.mxu0 0.0
  %229 = vmatpush.msra.mxu0 0.0
  %230 = vmatpush.msra.mxu0 0.0
  %231 = vmatpush.msra.mxu0 0.0
  %232 = vmatpush.msra.mxu0 0.0
  %233 = vmatpush.msra.mxu0 0.0
  %234 = vmatpush.msra.mxu0 0.0
  %235 = vmatpush.msra.mxu0 0.0
  %236 = vmatpush.msra.mxu0 0.0
  %237 = vmatpush.msra.mxu0 0.0
  %238 = vmatpush.msra.mxu0 0.0
  %239 = vmatpush.msra.mxu0 0.0
  %240 = vmatpush.msra.mxu0 0.0
  %241 = vmatpush.msra.mxu0 0.0
  %242 = vmatpush.msra.mxu0 %v125
  %243 = vmatmul.f32.gmra.mxu0 %v106
  %v244 = vpop.f32.mrf.mxu0
  %v245 = vadd.f32 0.0, %v244
  %246 = vdwg.mxu0
  %v248 = vsel %vm104, %v65, 0
  %v251 = vsel %vm108, %v64, 0
  %v254 = vsel %vm108, %v63, 0
  %v257 = vsel %vm108, %v62, 0
  %v260 = vsel %vm108, %v61, 0
  %v263 = vsel %vm108, %v60, 0
  %v266 = vsel %vm108, %v59, 0
  %268 = vmatpush.msra.mxu0 0.0
  %269 = vmatpush.msra.mxu0 0.0
  %270 = vmatpush.msra.mxu0 0.0
  %271 = vmatpush.msra.mxu0 0.0
  %272 = vmatpush.msra.mxu0 0.0
  %273 = vmatpush.msra.mxu0 0.0
  %274 = vmatpush.msra.mxu0 0.0
  %275 = vmatpush.msra.mxu0 0.0
  %276 = vmatpush.msra.mxu0 0.0
  %277 = vmatpush.msra.mxu0 0.0
  %278 = vmatpush.msra.mxu0 0.0
  %279 = vmatpush.msra.mxu0 0.0
  %280 = vmatpush.msra.mxu0 0.0
  %281 = vmatpush.msra.mxu0 0.0
  %282 = vmatpush.msra.mxu0 0.0
  %283 = vmatpush.msra.mxu0 %v251
  %284 = vmatmul.f32.gmra.mxu0 %v248
  %v285 = vpop.f32.mrf.mxu0
  %v286 = vadd.f32 %v145, %v285
  %287 = vdwg.mxu0
  %288 = vmatpush.msra.mxu0 0.0
  %289 = vmatpush.msra.mxu0 0.0
  %290 = vmatpush.msra.mxu0 0.0
  %291 = vmatpush.msra.mxu0 0.0
  %292 = vmatpush.msra.mxu0 0.0
  %293 = vmatpush.msra.mxu0 0.0
  %294 = vmatpush.msra.mxu0 0.0
  %295 = vmatpush.msra.mxu0 0.0
  %296 = vmatpush.msra.mxu0 0.0
  %297 = vmatpush.msra.mxu0 0.0
  %298 = vmatpush.msra.mxu0 0.0
  %299 = vmatpush.msra.mxu0 0.0
  %300 = vmatpush.msra.mxu0 0.0
  %301 = vmatpush.msra.mxu0 0.0
  %302 = vmatpush.msra.mxu0 0.0
  %303 = vmatpush.msra.mxu0 %v254
  %304 = vmatmul.f32.gmra.mxu0 %v248
  %v305 = vpop.f32.mrf.mxu0
  %v306 = vadd.f32 %v165, %v305
  %307 = vdwg.mxu0
  %308 = vmatpush.msra.mxu0 0.0
  %309 = vmatpush.msra.mxu0 0.0
  %310 = vmatpush.msra.mxu0 0.0
  %311 = vmatpush.msra.mxu0 0.0
  %312 = vmatpush.msra.mxu0 0.0
  %313 = vmatpush.msra.mxu0 0.0
  %314 = vmatpush.msra.mxu0 0.0
  %315 = vmatpush.msra.mxu0 0.0
  %316 = vmatpush.msra.mxu0 0.0
  %317 = vmatpush.msra.mxu0 0.0
  %318 = vmatpush.msra.mxu0 0.0
  %319 = vmatpush.msra.mxu0 0.0
  %320 = vmatpush.msra.mxu0 0.0
  %321 = vmatpush.msra.mxu0 0.0
  %322 = vmatpush.msra.mxu0 0.0
  %323 = vmatpush.msra.mxu0 %v257
  %324 = vmatmul.f32.gmra.mxu0 %v248
  %v325 = vpop.f32.mrf.mxu0
  %v326 = vadd.f32 %v185, %v325
  %327 = vdwg.mxu0
  %328 = vmatpush.msra.mxu0 0.0
  %329 = vmatpush.msra.mxu0 0.0
  %330 = vmatpush.msra.mxu0 0.0
  %331 = vmatpush.msra.mxu0 0.0
  %332 = vmatpush.msra.mxu0 0.0
  %333 = vmatpush.msra.mxu0 0.0
  %334 = vmatpush.msra.mxu0 0.0
  %335 = vmatpush.msra.mxu0 0.0
  %336 = vmatpush.msra.mxu0 0.0
  %337 = vmatpush.msra.mxu0 0.0
  %338 = vmatpush.msra.mxu0 0.0
  %339 = vmatpush.msra.mxu0 0.0
  %340 = vmatpush.msra.mxu0 0.0
  %341 = vmatpush.msra.mxu0 0.0
  %342 = vmatpush.msra.mxu0 0.0
  %343 = vmatpush.msra.mxu0 %v260
  %344 = vmatmul.f32.gmra.mxu0 %v248
  %v345 = vpop.f32.mrf.mxu0
  %v346 = vadd.f32 %v205, %v345
  %347 = vdwg.mxu0
  %348 = vmatpush.msra.mxu0 0.0
  %349 = vmatpush.msra.mxu0 0.0
  %350 = vmatpush.msra.mxu0 0.0
  %351 = vmatpush.msra.mxu0 0.0
  %352 = vmatpush.msra.mxu0 0.0
  %353 = vmatpush.msra.mxu0 0.0
  %354 = vmatpush.msra.mxu0 0.0
  %355 = vmatpush.msra.mxu0 0.0
  %356 = vmatpush.msra.mxu0 0.0
  %357 = vmatpush.msra.mxu0 0.0
  %358 = vmatpush.msra.mxu0 0.0
  %359 = vmatpush.msra.mxu0 0.0
  %360 = vmatpush.msra.mxu0 0.0
  %361 = vmatpush.msra.mxu0 0.0
  %362 = vmatpush.msra.mxu0 0.0
  %363 = vmatpush.msra.mxu0 %v263
  %364 = vmatmul.f32.gmra.mxu0 %v248
  %v365 = vpop.f32.mrf.mxu0
  %v366 = vadd.f32 %v225, %v365
  %367 = vdwg.mxu0
  %368 = vmatpush.msra.mxu0 0.0
  %369 = vmatpush.msra.mxu0 0.0
  %370 = vmatpush.msra.mxu0 0.0
  %371 = vmatpush.msra.mxu0 0.0
  %372 = vmatpush.msra.mxu0 0.0
  %373 = vmatpush.msra.mxu0 0.0
  %374 = vmatpush.msra.mxu0 0.0
  %375 = vmatpush.msra.mxu0 0.0
  %376 = vmatpush.msra.mxu0 0.0
  %377 = vmatpush.msra.mxu0 0.0
  %378 = vmatpush.msra.mxu0 0.0
  %379 = vmatpush.msra.mxu0 0.0
  %380 = vmatpush.msra.mxu0 0.0
  %381 = vmatpush.msra.mxu0 0.0
  %382 = vmatpush.msra.mxu0 0.0
  %383 = vmatpush.msra.mxu0 %v266
  %384 = vmatmul.f32.gmra.mxu0 %v248
  %v385 = vpop.f32.mrf.mxu0
  %v386 = vadd.f32 %v245, %v385
  %387 = vdwg.mxu0
  %388 = vst [vmem:[#allocation1] ss:$2 sm:$0xff] %v20
  %s389 = scalar_lea.vmem [#allocation1], 16
  %390 = vst [vmem:[%s389] ss:$2 sm:$0xff] %v21
  %s391 = scalar_lea.vmem [#allocation1], 32
  %392 = vst [vmem:[%s391] ss:$2 sm:$0xff] %v22
  %v393 = vld.sshfl [vmem:[#allocation1] sm:$0xff pattern:$0x75316420]
  %v394 = vld.sshfl [vmem:[#allocation1 + $0x8] sm:$0xff pattern:$0x75316420]
  %v395 = vld.sshfl [vmem:[#allocation1 + $0x10] sm:$0xff pattern:$0x75316420]
  %v396 = vld.sshfl [vmem:[#allocation1 + $0x18] sm:$0xff pattern:$0x75316420]
  %v397 = vld.sshfl [vmem:[#allocation1 + $0x20] sm:$0xff pattern:$0x75316420]
  %v398 = vld.sshfl [vmem:[#allocation1 + $0x28] sm:$0xff pattern:$0x75316420]
  %405 = vrot.lane.b32.xlu0 %v393, 17
  %v406 = vpop.permute.xlu0 %405
  %407 = vrot.lane.b32.xlu0 %v394, 17
  %v408 = vpop.permute.xlu0 %407
  %409 = vrot.lane.b32.xlu0 %v395, 17
  %v410 = vpop.permute.xlu0 %409
  %411 = vrot.lane.b32.xlu0 %v396, 17
  %v412 = vpop.permute.xlu0 %411
  %413 = vrot.lane.b32.xlu0 %v397, 17
  %v414 = vpop.permute.xlu0 %413
  %415 = vrot.lane.b32.xlu0 %v398, 17
  %v416 = vpop.permute.xlu0 %415
  %vm417 = vcmp.lt.s32.totalorder %v57, 17
  %v418 = vsel %vm417, %v414, %v416
  %v419 = vsel %vm417, %v412, %v414
  %v420 = vsel %vm417, %v410, %v412
  %v421 = vsel %vm417, %v408, %v410
  %v422 = vsel %vm417, %v406, %v408
  %v423 = vsel %vm417, %v416, %v406
  %s424 = scalar_lea.vmem %s1, 8
  %v425 = vld [vmem:[%s424] sm:$0xf]
  %v427 = vsel %vm104, %v425, 0
  %v430 = vsel %vm108, %v423, 0
  %v433 = vsel %vm108, %v422, 0
  %v436 = vsel %vm108, %v421, 0
  %v439 = vsel %vm108, %v420, 0
  %v442 = vsel %vm108, %v419, 0
  %v445 = vsel %vm108, %v418, 0
  %447 = vmatpush.msra.mxu0 0.0
  %448 = vmatpush.msra.mxu0 0.0
  %449 = vmatpush.msra.mxu0 0.0
  %450 = vmatpush.msra.mxu0 0.0
  %451 = vmatpush.msra.mxu0 0.0
  %452 = vmatpush.msra.mxu0 0.0
  %453 = vmatpush.msra.mxu0 0.0
  %454 = vmatpush.msra.mxu0 0.0
  %455 = vmatpush.msra.mxu0 0.0
  %456 = vmatpush.msra.mxu0 0.0
  %457 = vmatpush.msra.mxu0 0.0
  %458 = vmatpush.msra.mxu0 0.0
  %459 = vmatpush.msra.mxu0 0.0
  %460 = vmatpush.msra.mxu0 0.0
  %461 = vmatpush.msra.mxu0 0.0
  %462 = vmatpush.msra.mxu0 %v430
  %463 = vmatmul.f32.gmra.mxu0 %v427
  %v464 = vpop.f32.mrf.mxu0
  %v465 = vadd.f32 0.0, %v464
  %466 = vdwg.mxu0
  %467 = vmatpush.msra.mxu0 0.0
  %468 = vmatpush.msra.mxu0 0.0
  %469 = vmatpush.msra.mxu0 0.0
  %470 = vmatpush.msra.mxu0 0.0
  %471 = vmatpush.msra.mxu0 0.0
  %472 = vmatpush.msra.mxu0 0.0
  %473 = vmatpush.msra.mxu0 0.0
  %474 = vmatpush.msra.mxu0 0.0
  %475 = vmatpush.msra.mxu0 0.0
  %476 = vmatpush.msra.mxu0 0.0
  %477 = vmatpush.msra.mxu0 0.0
  %478 = vmatpush.msra.mxu0 0.0
  %479 = vmatpush.msra.mxu0 0.0
  %480 = vmatpush.msra.mxu0 0.0
  %481 = vmatpush.msra.mxu0 0.0
  %482 = vmatpush.msra.mxu0 %v433
  %483 = vmatmul.f32.gmra.mxu0 %v427
  %v484 = vpop.f32.mrf.mxu0
  %v485 = vadd.f32 0.0, %v484
  %486 = vdwg.mxu0
  %487 = vmatpush.msra.mxu0 0.0
  %488 = vmatpush.msra.mxu0 0.0
  %489 = vmatpush.msra.mxu0 0.0
  %490 = vmatpush.msra.mxu0 0.0
  %491 = vmatpush.msra.mxu0 0.0
  %492 = vmatpush.msra.mxu0 0.0
  %493 = vmatpush.msra.mxu0 0.0
  %494 = vmatpush.msra.mxu0 0.0
  %495 = vmatpush.msra.mxu0 0.0
  %496 = vmatpush.msra.mxu0 0.0
  %497 = vmatpush.msra.mxu0 0.0
  %498 = vmatpush.msra.mxu0 0.0
  %499 = vmatpush.msra.mxu0 0.0
  %500 = vmatpush.msra.mxu0 0.0
  %501 = vmatpush.msra.mxu0 0.0
  %502 = vmatpush.msra.mxu0 %v436
  %503 = vmatmul.f32.gmra.mxu0 %v427
  %v504 = vpop.f32.mrf.mxu0
  %v505 = vadd.f32 0.0, %v504
  %506 = vdwg.mxu0
  %507 = vmatpush.msra.mxu0 0.0
  %508 = vmatpush.msra.mxu0 0.0
  %509 = vmatpush.msra.mxu0 0.0
  %510 = vmatpush.msra.mxu0 0.0
  %511 = vmatpush.msra.mxu0 0.0
  %512 = vmatpush.msra.mxu0 0.0
  %513 = vmatpush.msra.mxu0 0.0
  %514 = vmatpush.msra.mxu0 0.0
  %515 = vmatpush.msra.mxu0 0.0
  %516 = vmatpush.msra.mxu0 0.0
  %517 = vmatpush.msra.mxu0 0.0
  %518 = vmatpush.msra.mxu0 0.0
  %519 = vmatpush.msra.mxu0 0.0
  %520 = vmatpush.msra.mxu0 0.0
  %521 = vmatpush.msra.mxu0 0.0
  %522 = vmatpush.msra.mxu0 %v439
  %523 = vmatmul.f32.gmra.mxu0 %v427
  %v524 = vpop.f32.mrf.mxu0
  %v525 = vadd.f32 0.0, %v524
  %526 = vdwg.mxu0
  %527 = vmatpush.msra.mxu0 0.0
  %528 = vmatpush.msra.mxu0 0.0
  %529 = vmatpush.msra.mxu0 0.0
  %530 = vmatpush.msra.mxu0 0.0
  %531 = vmatpush.msra.mxu0 0.0
  %532 = vmatpush.msra.mxu0 0.0
  %533 = vmatpush.msra.mxu0 0.0
  %534 = vmatpush.msra.mxu0 0.0
  %535 = vmatpush.msra.mxu0 0.0
  %536 = vmatpush.msra.mxu0 0.0
  %537 = vmatpush.msra.mxu0 0.0
  %538 = vmatpush.msra.mxu0 0.0
  %539 = vmatpush.msra.mxu0 0.0
  %540 = vmatpush.msra.mxu0 0.0
  %541 = vmatpush.msra.mxu0 0.0
  %542 = vmatpush.msra.mxu0 %v442
  %543 = vmatmul.f32.gmra.mxu0 %v427
  %v544 = vpop.f32.mrf.mxu0
  %v545 = vadd.f32 0.0, %v544
  %546 = vdwg.mxu0
  %547 = vmatpush.msra.mxu0 0.0
  %548 = vmatpush.msra.mxu0 0.0
  %549 = vmatpush.msra.mxu0 0.0
  %550 = vmatpush.msra.mxu0 0.0
  %551 = vmatpush.msra.mxu0 0.0
  %552 = vmatpush.msra.mxu0 0.0
  %553 = vmatpush.msra.mxu0 0.0
  %554 = vmatpush.msra.mxu0 0.0
  %555 = vmatpush.msra.mxu0 0.0
  %556 = vmatpush.msra.mxu0 0.0
  %557 = vmatpush.msra.mxu0 0.0
  %558 = vmatpush.msra.mxu0 0.0
  %559 = vmatpush.msra.mxu0 0.0
  %560 = vmatpush.msra.mxu0 0.0
  %561 = vmatpush.msra.mxu0 0.0
  %562 = vmatpush.msra.mxu0 %v445
  %563 = vmatmul.f32.gmra.mxu0 %v427
  %v564 = vpop.f32.mrf.mxu0
  %v565 = vadd.f32 0.0, %v564
  %566 = vdwg.mxu0
  %v567 = vadd.f32 %v286, %v465
  %v568 = vadd.f32 %v306, %v485
  %v569 = vadd.f32 %v326, %v505
  %v570 = vadd.f32 %v346, %v525
  %v571 = vadd.f32 %v366, %v545
  %v572 = vadd.f32 %v386, %v565
  %573 = vst [vmem:[#allocation1] ss:$2 sm:$0xff] %v20
  %s574 = scalar_lea.vmem [#allocation1], 16
  %575 = vst [vmem:[%s574] ss:$2 sm:$0xff] %v21
  %s576 = scalar_lea.vmem [#allocation1], 32
  %577 = vst [vmem:[%s576] ss:$2 sm:$0xff] %v22
  %v578 = vld.sshfl [vmem:[#allocation1] sm:$0xff pattern:$0x75316420]
  %v579 = vld.sshfl [vmem:[#allocation1 + $0x8] sm:$0xff pattern:$0x75316420]
  %v580 = vld.sshfl [vmem:[#allocation1 + $0x10] sm:$0xff pattern:$0x75316420]
  %v581 = vld.sshfl [vmem:[#allocation1 + $0x18] sm:$0xff pattern:$0x75316420]
  %v582 = vld.sshfl [vmem:[#allocation1 + $0x20] sm:$0xff pattern:$0x75316420]
  %v583 = vld.sshfl [vmem:[#allocation1 + $0x28] sm:$0xff pattern:$0x75316420]
  %590 = vrot.lane.b32.xlu0 %v578, 1
  %v591 = vpop.permute.xlu0 %590
  %592 = vrot.lane.b32.xlu0 %v579, 1
  %v593 = vpop.permute.xlu0 %592
  %594 = vrot.lane.b32.xlu0 %v580, 1
  %v595 = vpop.permute.xlu0 %594
  %596 = vrot.lane.b32.xlu0 %v581, 1
  %v597 = vpop.permute.xlu0 %596
  %598 = vrot.lane.b32.xlu0 %v582, 1
  %v599 = vpop.permute.xlu0 %598
  %600 = vrot.lane.b32.xlu0 %v583, 1
  %v601 = vpop.permute.xlu0 %600
  %vm602 = vcmp.lt.s32.totalorder %v57, 1
  %v603 = vsel %vm602, %v599, %v601
  %v604 = vsel %vm602, %v597, %v599
  %v605 = vsel %vm602, %v595, %v597
  %v606 = vsel %vm602, %v593, %v595
  %v607 = vsel %vm602, %v591, %v593
  %v608 = vsel %vm602, %v601, %v591
  %s609 = scalar_lea.vmem %s1, 12
  %v610 = vld [vmem:[%s609] sm:$0xf]
  %v612 = vsel %vm104, %v610, 0
  %v615 = vsel %vm108, %v608, 0
  %v618 = vsel %vm108, %v607, 0
  %v621 = vsel %vm108, %v606, 0
  %v624 = vsel %vm108, %v605, 0
  %v627 = vsel %vm108, %v604, 0
  %v630 = vsel %vm108, %v603, 0
  %632 = vmatpush.msra.mxu0 0.0
  %633 = vmatpush.msra.mxu0 0.0
  %634 = vmatpush.msra.mxu0 0.0
  %635 = vmatpush.msra.mxu0 0.0
  %636 = vmatpush.msra.mxu0 0.0
  %637 = vmatpush.msra.mxu0 0.0
  %638 = vmatpush.msra.mxu0 0.0
  %639 = vmatpush.msra.mxu0 0.0
  %640 = vmatpush.msra.mxu0 0.0
  %641 = vmatpush.msra.mxu0 0.0
  %642 = vmatpush.msra.mxu0 0.0
  %643 = vmatpush.msra.mxu0 0.0
  %644 = vmatpush.msra.mxu0 0.0
  %645 = vmatpush.msra.mxu0 0.0
  %646 = vmatpush.msra.mxu0 0.0
  %647 = vmatpush.msra.mxu0 %v615
  %648 = vmatmul.f32.gmra.mxu0 %v612
  %v649 = vpop.f32.mrf.mxu0
  %v650 = vadd.f32 0.0, %v649
  %651 = vdwg.mxu0
  %652 = vmatpush.msra.mxu0 0.0
  %653 = vmatpush.msra.mxu0 0.0
  %654 = vmatpush.msra.mxu0 0.0
  %655 = vmatpush.msra.mxu0 0.0
  %656 = vmatpush.msra.mxu0 0.0
  %657 = vmatpush.msra.mxu0 0.0
  %658 = vmatpush.msra.mxu0 0.0
  %659 = vmatpush.msra.mxu0 0.0
  %660 = vmatpush.msra.mxu0 0.0
  %661 = vmatpush.msra.mxu0 0.0
  %662 = vmatpush.msra.mxu0 0.0
  %663 = vmatpush.msra.mxu0 0.0
  %664 = vmatpush.msra.mxu0 0.0
  %665 = vmatpush.msra.mxu0 0.0
  %666 = vmatpush.msra.mxu0 0.0
  %667 = vmatpush.msra.mxu0 %v618
  %668 = vmatmul.f32.gmra.mxu0 %v612
  %v669 = vpop.f32.mrf.mxu0
  %v670 = vadd.f32 0.0, %v669
  %671 = vdwg.mxu0
  %672 = vmatpush.msra.mxu0 0.0
  %673 = vmatpush.msra.mxu0 0.0
  %674 = vmatpush.msra.mxu0 0.0
  %675 = vmatpush.msra.mxu0 0.0
  %676 = vmatpush.msra.mxu0 0.0
  %677 = vmatpush.msra.mxu0 0.0
  %678 = vmatpush.msra.mxu0 0.0
  %679 = vmatpush.msra.mxu0 0.0
  %680 = vmatpush.msra.mxu0 0.0
  %681 = vmatpush.msra.mxu0 0.0
  %682 = vmatpush.msra.mxu0 0.0
  %683 = vmatpush.msra.mxu0 0.0
  %684 = vmatpush.msra.mxu0 0.0
  %685 = vmatpush.msra.mxu0 0.0
  %686 = vmatpush.msra.mxu0 0.0
  %687 = vmatpush.msra.mxu0 %v621
  %688 = vmatmul.f32.gmra.mxu0 %v612
  %v689 = vpop.f32.mrf.mxu0
  %v690 = vadd.f32 0.0, %v689
  %691 = vdwg.mxu0
  %692 = vmatpush.msra.mxu0 0.0
  %693 = vmatpush.msra.mxu0 0.0
  %694 = vmatpush.msra.mxu0 0.0
  %695 = vmatpush.msra.mxu0 0.0
  %696 = vmatpush.msra.mxu0 0.0
  %697 = vmatpush.msra.mxu0 0.0
  %698 = vmatpush.msra.mxu0 0.0
  %699 = vmatpush.msra.mxu0 0.0
  %700 = vmatpush.msra.mxu0 0.0
  %701 = vmatpush.msra.mxu0 0.0
  %702 = vmatpush.msra.mxu0 0.0
  %703 = vmatpush.msra.mxu0 0.0
  %704 = vmatpush.msra.mxu0 0.0
  %705 = vmatpush.msra.mxu0 0.0
  %706 = vmatpush.msra.mxu0 0.0
  %707 = vmatpush.msra.mxu0 %v624
  %708 = vmatmul.f32.gmra.mxu0 %v612
  %v709 = vpop.f32.mrf.mxu0
  %v710 = vadd.f32 0.0, %v709
  %711 = vdwg.mxu0
  %712 = vmatpush.msra.mxu0 0.0
  %713 = vmatpush.msra.mxu0 0.0
  %714 = vmatpush.msra.mxu0 0.0
  %715 = vmatpush.msra.mxu0 0.0
  %716 = vmatpush.msra.mxu0 0.0
  %717 = vmatpush.msra.mxu0 0.0
  %718 = vmatpush.msra.mxu0 0.0
  %719 = vmatpush.msra.mxu0 0.0
  %720 = vmatpush.msra.mxu0 0.0
  %721 = vmatpush.msra.mxu0 0.0
  %722 = vmatpush.msra.mxu0 0.0
  %723 = vmatpush.msra.mxu0 0.0
  %724 = vmatpush.msra.mxu0 0.0
  %725 = vmatpush.msra.mxu0 0.0
  %726 = vmatpush.msra.mxu0 0.0
  %727 = vmatpush.msra.mxu0 %v627
  %728 = vmatmul.f32.gmra.mxu0 %v612
  %v729 = vpop.f32.mrf.mxu0
  %v730 = vadd.f32 0.0, %v729
  %731 = vdwg.mxu0
  %732 = vmatpush.msra.mxu0 0.0
  %733 = vmatpush.msra.mxu0 0.0
  %734 = vmatpush.msra.mxu0 0.0
  %735 = vmatpush.msra.mxu0 0.0
  %736 = vmatpush.msra.mxu0 0.0
  %737 = vmatpush.msra.mxu0 0.0
  %738 = vmatpush.msra.mxu0 0.0
  %739 = vmatpush.msra.mxu0 0.0
  %740 = vmatpush.msra.mxu0 0.0
  %741 = vmatpush.msra.mxu0 0.0
  %742 = vmatpush.msra.mxu0 0.0
  %743 = vmatpush.msra.mxu0 0.0
  %744 = vmatpush.msra.mxu0 0.0
  %745 = vmatpush.msra.mxu0 0.0
  %746 = vmatpush.msra.mxu0 0.0
  %747 = vmatpush.msra.mxu0 %v630
  %748 = vmatmul.f32.gmra.mxu0 %v612
  %v749 = vpop.f32.mrf.mxu0
  %v750 = vadd.f32 0.0, %v749
  %751 = vdwg.mxu0
  %v752 = vadd.f32 %v567, %v650
  %v753 = vadd.f32 %v568, %v670
  %v754 = vadd.f32 %v569, %v690
  %v755 = vadd.f32 %v570, %v710
  %v756 = vadd.f32 %v571, %v730
  %v757 = vadd.f32 %v572, %v750
  %s758 = scalar_lea.vmem %s1, 16
  %v759 = vld [vmem:[%s758] sm:$0xf]
  %760 = vst [vmem:[#allocation1] ss:$2 sm:$0xff] %v20
  %s761 = scalar_lea.vmem [#allocation1], 16
  %762 = vst [vmem:[%s761] ss:$2 sm:$0xff] %v21
  %s763 = scalar_lea.vmem [#allocation1], 32
  %764 = vst [vmem:[%s763] ss:$2 sm:$0xff] %v22
  %v765 = vld.sshfl [vmem:[#allocation1] sm:$0xff pattern:$0x75316420]
  %v766 = vld.sshfl [vmem:[#allocation1 + $0x8] sm:$0xff pattern:$0x75316420]
  %v767 = vld.sshfl [vmem:[#allocation1 + $0x10] sm:$0xff pattern:$0x75316420]
  %v768 = vld.sshfl [vmem:[#allocation1 + $0x18] sm:$0xff pattern:$0x75316420]
  %v769 = vld.sshfl [vmem:[#allocation1 + $0x20] sm:$0xff pattern:$0x75316420]
  %v770 = vld.sshfl [vmem:[#allocation1 + $0x28] sm:$0xff pattern:$0x75316420]
  %v772 = vsel %vm104, %v759, 0
  %v774 = vsel %vm108, %v765, 0
  %v776 = vsel %vm108, %v766, 0
  %v778 = vsel %vm108, %v767, 0
  %v780 = vsel %vm108, %v768, 0
  %v782 = vsel %vm108, %v769, 0
  %v784 = vsel %vm108, %v770, 0
  %786 = vmatpush.msra.mxu0 0.0
  %787 = vmatpush.msra.mxu0 0.0
  %788 = vmatpush.msra.mxu0 0.0
  %789 = vmatpush.msra.mxu0 0.0
  %790 = vmatpush.msra.mxu0 0.0
  %791 = vmatpush.msra.mxu0 0.0
  %792 = vmatpush.msra.mxu0 0.0
  %793 = vmatpush.msra.mxu0 0.0
  %794 = vmatpush.msra.mxu0 0.0
  %795 = vmatpush.msra.mxu0 0.0
  %796 = vmatpush.msra.mxu0 0.0
  %797 = vmatpush.msra.mxu0 0.0
  %798 = vmatpush.msra.mxu0 0.0
  %799 = vmatpush.msra.mxu0 0.0
  %800 = vmatpush.msra.mxu0 0.0
  %801 = vmatpush.msra.mxu0 %v774
  %802 = vmatmul.f32.gmra.mxu0 %v772
  %v803 = vpop.f32.mrf.mxu0
  %v804 = vadd.f32 0.0, %v803
  %805 = vdwg.mxu0
  %806 = vmatpush.msra.mxu0 0.0
  %807 = vmatpush.msra.mxu0 0.0
  %808 = vmatpush.msra.mxu0 0.0
  %809 = vmatpush.msra.mxu0 0.0
  %810 = vmatpush.msra.mxu0 0.0
  %811 = vmatpush.msra.mxu0 0.0
  %812 = vmatpush.msra.mxu0 0.0
  %813 = vmatpush.msra.mxu0 0.0
  %814 = vmatpush.msra.mxu0 0.0
  %815 = vmatpush.msra.mxu0 0.0
  %816 = vmatpush.msra.mxu0 0.0
  %817 = vmatpush.msra.mxu0 0.0
  %818 = vmatpush.msra.mxu0 0.0
  %819 = vmatpush.msra.mxu0 0.0
  %820 = vmatpush.msra.mxu0 0.0
  %821 = vmatpush.msra.mxu0 %v776
  %822 = vmatmul.f32.gmra.mxu0 %v772
  %v823 = vpop.f32.mrf.mxu0
  %v824 = vadd.f32 0.0, %v823
  %825 = vdwg.mxu0
  %826 = vmatpush.msra.mxu0 0.0
  %827 = vmatpush.msra.mxu0 0.0
  %828 = vmatpush.msra.mxu0 0.0
  %829 = vmatpush.msra.mxu0 0.0
  %830 = vmatpush.msra.mxu0 0.0
  %831 = vmatpush.msra.mxu0 0.0
  %832 = vmatpush.msra.mxu0 0.0
  %833 = vmatpush.msra.mxu0 0.0
  %834 = vmatpush.msra.mxu0 0.0
  %835 = vmatpush.msra.mxu0 0.0
  %836 = vmatpush.msra.mxu0 0.0
  %837 = vmatpush.msra.mxu0 0.0
  %838 = vmatpush.msra.mxu0 0.0
  %839 = vmatpush.msra.mxu0 0.0
  %840 = vmatpush.msra.mxu0 0.0
  %841 = vmatpush.msra.mxu0 %v778
  %842 = vmatmul.f32.gmra.mxu0 %v772
  %v843 = vpop.f32.mrf.mxu0
  %v844 = vadd.f32 0.0, %v843
  %845 = vdwg.mxu0
  %846 = vmatpush.msra.mxu0 0.0
  %847 = vmatpush.msra.mxu0 0.0
  %848 = vmatpush.msra.mxu0 0.0
  %849 = vmatpush.msra.mxu0 0.0
  %850 = vmatpush.msra.mxu0 0.0
  %851 = vmatpush.msra.mxu0 0.0
  %852 = vmatpush.msra.mxu0 0.0
  %853 = vmatpush.msra.mxu0 0.0
  %854 = vmatpush.msra.mxu0 0.0
  %855 = vmatpush.msra.mxu0 0.0
  %856 = vmatpush.msra.mxu0 0.0
  %857 = vmatpush.msra.mxu0 0.0
  %858 = vmatpush.msra.mxu0 0.0
  %859 = vmatpush.msra.mxu0 0.0
  %860 = vmatpush.msra.mxu0 0.0
  %861 = vmatpush.msra.mxu0 %v780
  %862 = vmatmul.f32.gmra.mxu0 %v772
  %v863 = vpop.f32.mrf.mxu0
  %v864 = vadd.f32 0.0, %v863
  %865 = vdwg.mxu0
  %866 = vmatpush.msra.mxu0 0.0
  %867 = vmatpush.msra.mxu0 0.0
  %868 = vmatpush.msra.mxu0 0.0
  %869 = vmatpush.msra.mxu0 0.0
  %870 = vmatpush.msra.mxu0 0.0
  %871 = vmatpush.msra.mxu0 0.0
  %872 = vmatpush.msra.mxu0 0.0
  %873 = vmatpush.msra.mxu0 0.0
  %874 = vmatpush.msra.mxu0 0.0
  %875 = vmatpush.msra.mxu0 0.0
  %876 = vmatpush.msra.mxu0 0.0
  %877 = vmatpush.msra.mxu0 0.0
  %878 = vmatpush.msra.mxu0 0.0
  %879 = vmatpush.msra.mxu0 0.0
  %880 = vmatpush.msra.mxu0 0.0
  %881 = vmatpush.msra.mxu0 %v782
  %882 = vmatmul.f32.gmra.mxu0 %v772
  %v883 = vpop.f32.mrf.mxu0
  %v884 = vadd.f32 0.0, %v883
  %885 = vdwg.mxu0
  %886 = vmatpush.msra.mxu0 0.0
  %887 = vmatpush.msra.mxu0 0.0
  %888 = vmatpush.msra.mxu0 0.0
  %889 = vmatpush.msra.mxu0 0.0
  %890 = vmatpush.msra.mxu0 0.0
  %891 = vmatpush.msra.mxu0 0.0
  %892 = vmatpush.msra.mxu0 0.0
  %893 = vmatpush.msra.mxu0 0.0
  %894 = vmatpush.msra.mxu0 0.0
  %895 = vmatpush.msra.mxu0 0.0
  %896 = vmatpush.msra.mxu0 0.0
  %897 = vmatpush.msra.mxu0 0.0
  %898 = vmatpush.msra.mxu0 0.0
  %899 = vmatpush.msra.mxu0 0.0
  %900 = vmatpush.msra.mxu0 0.0
  %901 = vmatpush.msra.mxu0 %v784
  %902 = vmatmul.f32.gmra.mxu0 %v772
  %v903 = vpop.f32.mrf.mxu0
  %v904 = vadd.f32 0.0, %v903
  %905 = vdwg.mxu0
  %v906 = vadd.f32 %v752, %v804
  %v907 = vadd.f32 %v753, %v824
  %v908 = vadd.f32 %v754, %v844
  %v909 = vadd.f32 %v755, %v864
  %v910 = vadd.f32 %v756, %v884
  %v911 = vadd.f32 %v757, %v904
  %912 = vst [vmem:[#allocation1] ss:$2 sm:$0xff] %v20
  %s913 = scalar_lea.vmem [#allocation1], 16
  %914 = vst [vmem:[%s913] ss:$2 sm:$0xff] %v21
  %s915 = scalar_lea.vmem [#allocation1], 32
  %916 = vst [vmem:[%s915] ss:$2 sm:$0xff] %v22
  %v917 = vld.sshfl [vmem:[#allocation1] sm:$0xff pattern:$0x75316420]
  %v918 = vld.sshfl [vmem:[#allocation1 + $0x8] sm:$0xff pattern:$0x75316420]
  %v919 = vld.sshfl [vmem:[#allocation1 + $0x10] sm:$0xff pattern:$0x75316420]
  %v920 = vld.sshfl [vmem:[#allocation1 + $0x18] sm:$0xff pattern:$0x75316420]
  %v921 = vld.sshfl [vmem:[#allocation1 + $0x20] sm:$0xff pattern:$0x75316420]
  %v922 = vld.sshfl [vmem:[#allocation1 + $0x28] sm:$0xff pattern:$0x75316420]
  %929 = vrot.lane.b32.xlu0 %v917, 127
  %v930 = vpop.permute.xlu0 %929
  %931 = vrot.lane.b32.xlu0 %v918, 127
  %v932 = vpop.permute.xlu0 %931
  %933 = vrot.lane.b32.xlu0 %v919, 127
  %v934 = vpop.permute.xlu0 %933
  %935 = vrot.lane.b32.xlu0 %v920, 127
  %v936 = vpop.permute.xlu0 %935
  %937 = vrot.lane.b32.xlu0 %v921, 127
  %v938 = vpop.permute.xlu0 %937
  %939 = vrot.lane.b32.xlu0 %v922, 127
  %v940 = vpop.permute.xlu0 %939
  %vm941 = vcmp.lt.s32.totalorder %v57, 127
  %v942 = vsel %vm941, %v938, %v940
  %v943 = vsel %vm941, %v936, %v938
  %v944 = vsel %vm941, %v934, %v936
  %v945 = vsel %vm941, %v932, %v934
  %v946 = vsel %vm941, %v930, %v932
  %v947 = vsel %vm941, %v940, %v930
  %s948 = scalar_lea.vmem %s1, 20
  %v949 = vld [vmem:[%s948] sm:$0xf]
  %v951 = vsel %vm104, %v949, 0
  %v954 = vsel %vm108, %v946, 0
  %v957 = vsel %vm108, %v945, 0
  %v960 = vsel %vm108, %v944, 0
  %v963 = vsel %vm108, %v943, 0
  %v966 = vsel %vm108, %v942, 0
  %v969 = vsel %vm108, %v947, 0
  %971 = vmatpush.msra.mxu0 0.0
  %972 = vmatpush.msra.mxu0 0.0
  %973 = vmatpush.msra.mxu0 0.0
  %974 = vmatpush.msra.mxu0 0.0
  %975 = vmatpush.msra.mxu0 0.0
  %976 = vmatpush.msra.mxu0 0.0
  %977 = vmatpush.msra.mxu0 0.0
  %978 = vmatpush.msra.mxu0 0.0
  %979 = vmatpush.msra.mxu0 0.0
  %980 = vmatpush.msra.mxu0 0.0
  %981 = vmatpush.msra.mxu0 0.0
  %982 = vmatpush.msra.mxu0 0.0
  %983 = vmatpush.msra.mxu0 0.0
  %984 = vmatpush.msra.mxu0 0.0
  %985 = vmatpush.msra.mxu0 0.0
  %986 = vmatpush.msra.mxu0 %v954
  %987 = vmatmul.f32.gmra.mxu0 %v951
  %v988 = vpop.f32.mrf.mxu0
  %v989 = vadd.f32 0.0, %v988
  %990 = vdwg.mxu0
  %991 = vmatpush.msra.mxu0 0.0
  %992 = vmatpush.msra.mxu0 0.0
  %993 = vmatpush.msra.mxu0 0.0
  %994 = vmatpush.msra.mxu0 0.0
  %995 = vmatpush.msra.mxu0 0.0
  %996 = vmatpush.msra.mxu0 0.0
  %997 = vmatpush.msra.mxu0 0.0
  %998 = vmatpush.msra.mxu0 0.0
  %999 = vmatpush.msra.mxu0 0.0
  %1000 = vmatpush.msra.mxu0 0.0
  %1001 = vmatpush.msra.mxu0 0.0
  %1002 = vmatpush.msra.mxu0 0.0
  %1003 = vmatpush.msra.mxu0 0.0
  %1004 = vmatpush.msra.mxu0 0.0
  %1005 = vmatpush.msra.mxu0 0.0
  %1006 = vmatpush.msra.mxu0 %v957
  %1007 = vmatmul.f32.gmra.mxu0 %v951
  %v1008 = vpop.f32.mrf.mxu0
  %v1009 = vadd.f32 0.0, %v1008
  %1010 = vdwg.mxu0
  %1011 = vmatpush.msra.mxu0 0.0
  %1012 = vmatpush.msra.mxu0 0.0
  %1013 = vmatpush.msra.mxu0 0.0
  %1014 = vmatpush.msra.mxu0 0.0
  %1015 = vmatpush.msra.mxu0 0.0
  %1016 = vmatpush.msra.mxu0 0.0
  %1017 = vmatpush.msra.mxu0 0.0
  %1018 = vmatpush.msra.mxu0 0.0
  %1019 = vmatpush.msra.mxu0 0.0
  %1020 = vmatpush.msra.mxu0 0.0
  %1021 = vmatpush.msra.mxu0 0.0
  %1022 = vmatpush.msra.mxu0 0.0
  %1023 = vmatpush.msra.mxu0 0.0
  %1024 = vmatpush.msra.mxu0 0.0
  %1025 = vmatpush.msra.mxu0 0.0
  %1026 = vmatpush.msra.mxu0 %v960
  %1027 = vmatmul.f32.gmra.mxu0 %v951
  %v1028 = vpop.f32.mrf.mxu0
  %v1029 = vadd.f32 0.0, %v1028
  %1030 = vdwg.mxu0
  %1031 = vmatpush.msra.mxu0 0.0
  %1032 = vmatpush.msra.mxu0 0.0
  %1033 = vmatpush.msra.mxu0 0.0
  %1034 = vmatpush.msra.mxu0 0.0
  %1035 = vmatpush.msra.mxu0 0.0
  %1036 = vmatpush.msra.mxu0 0.0
  %1037 = vmatpush.msra.mxu0 0.0
  %1038 = vmatpush.msra.mxu0 0.0
  %1039 = vmatpush.msra.mxu0 0.0
  %1040 = vmatpush.msra.mxu0 0.0
  %1041 = vmatpush.msra.mxu0 0.0
  %1042 = vmatpush.msra.mxu0 0.0
  %1043 = vmatpush.msra.mxu0 0.0
  %1044 = vmatpush.msra.mxu0 0.0
  %1045 = vmatpush.msra.mxu0 0.0
  %1046 = vmatpush.msra.mxu0 %v963
  %1047 = vmatmul.f32.gmra.mxu0 %v951
  %v1048 = vpop.f32.mrf.mxu0
  %v1049 = vadd.f32 0.0, %v1048
  %1050 = vdwg.mxu0
  %1051 = vmatpush.msra.mxu0 0.0
  %1052 = vmatpush.msra.mxu0 0.0
  %1053 = vmatpush.msra.mxu0 0.0
  %1054 = vmatpush.msra.mxu0 0.0
  %1055 = vmatpush.msra.mxu0 0.0
  %1056 = vmatpush.msra.mxu0 0.0
  %1057 = vmatpush.msra.mxu0 0.0
  %1058 = vmatpush.msra.mxu0 0.0
  %1059 = vmatpush.msra.mxu0 0.0
  %1060 = vmatpush.msra.mxu0 0.0
  %1061 = vmatpush.msra.mxu0 0.0
  %1062 = vmatpush.msra.mxu0 0.0
  %1063 = vmatpush.msra.mxu0 0.0
  %1064 = vmatpush.msra.mxu0 0.0
  %1065 = vmatpush.msra.mxu0 0.0
  %1066 = vmatpush.msra.mxu0 %v966
  %1067 = vmatmul.f32.gmra.mxu0 %v951
  %v1068 = vpop.f32.mrf.mxu0
  %v1069 = vadd.f32 0.0, %v1068
  %1070 = vdwg.mxu0
  %1071 = vmatpush.msra.mxu0 0.0
  %1072 = vmatpush.msra.mxu0 0.0
  %1073 = vmatpush.msra.mxu0 0.0
  %1074 = vmatpush.msra.mxu0 0.0
  %1075 = vmatpush.msra.mxu0 0.0
  %1076 = vmatpush.msra.mxu0 0.0
  %1077 = vmatpush.msra.mxu0 0.0
  %1078 = vmatpush.msra.mxu0 0.0
  %1079 = vmatpush.msra.mxu0 0.0
  %1080 = vmatpush.msra.mxu0 0.0
  %1081 = vmatpush.msra.mxu0 0.0
  %1082 = vmatpush.msra.mxu0 0.0
  %1083 = vmatpush.msra.mxu0 0.0
  %1084 = vmatpush.msra.mxu0 0.0
  %1085 = vmatpush.msra.mxu0 0.0
  %1086 = vmatpush.msra.mxu0 %v969
  %1087 = vmatmul.f32.gmra.mxu0 %v951
  %v1088 = vpop.f32.mrf.mxu0
  %v1089 = vadd.f32 0.0, %v1088
  %1090 = vdwg.mxu0
  %v1091 = vadd.f32 %v906, %v989
  %v1092 = vadd.f32 %v907, %v1009
  %v1093 = vadd.f32 %v908, %v1029
  %v1094 = vadd.f32 %v909, %v1049
  %v1095 = vadd.f32 %v910, %v1069
  %v1096 = vadd.f32 %v911, %v1089
  %1097 = vst [vmem:[#allocation1] ss:$2 sm:$0xff] %v20
  %s1098 = scalar_lea.vmem [#allocation1], 16
  %1099 = vst [vmem:[%s1098] ss:$2 sm:$0xff] %v21
  %s1100 = scalar_lea.vmem [#allocation1], 32
  %1101 = vst [vmem:[%s1100] ss:$2 sm:$0xff] %v22
  %v1102 = vld.sshfl [vmem:[#allocation1] sm:$0xff pattern:$0x75316420]
  %v1103 = vld.sshfl [vmem:[#allocation1 + $0x8] sm:$0xff pattern:$0x75316420]
  %v1104 = vld.sshfl [vmem:[#allocation1 + $0x10] sm:$0xff pattern:$0x75316420]
  %v1105 = vld.sshfl [vmem:[#allocation1 + $0x18] sm:$0xff pattern:$0x75316420]
  %v1106 = vld.sshfl [vmem:[#allocation1 + $0x20] sm:$0xff pattern:$0x75316420]
  %v1107 = vld.sshfl [vmem:[#allocation1 + $0x28] sm:$0xff pattern:$0x75316420]
  %1114 = vrot.lane.b32.xlu0 %v1102, 111
  %v1115 = vpop.permute.xlu0 %1114
  %1116 = vrot.lane.b32.xlu0 %v1103, 111
  %v1117 = vpop.permute.xlu0 %1116
  %1118 = vrot.lane.b32.xlu0 %v1104, 111
  %v1119 = vpop.permute.xlu0 %1118
  %1120 = vrot.lane.b32.xlu0 %v1105, 111
  %v1121 = vpop.permute.xlu0 %1120
  %1122 = vrot.lane.b32.xlu0 %v1106, 111
  %v1123 = vpop.permute.xlu0 %1122
  %1124 = vrot.lane.b32.xlu0 %v1107, 111
  %v1125 = vpop.permute.xlu0 %1124
  %vm1126 = vcmp.lt.s32.totalorder %v57, 111
  %v1127 = vsel %vm1126, %v1123, %v1125
  %v1128 = vsel %vm1126, %v1121, %v1123
  %v1129 = vsel %vm1126, %v1119, %v1121
  %v1130 = vsel %vm1126, %v1117, %v1119
  %v1131 = vsel %vm1126, %v1115, %v1117
  %v1132 = vsel %vm1126, %v1125, %v1115
  %s1133 = scalar_lea.vmem %s1, 24
  %v1134 = vld [vmem:[%s1133] sm:$0xf]
  %v1136 = vsel %vm104, %v1134, 0
  %v1139 = vsel %vm108, %v1131, 0
  %v1142 = vsel %vm108, %v1130, 0
  %v1145 = vsel %vm108, %v1129, 0
  %v1148 = vsel %vm108, %v1128, 0
  %v1151 = vsel %vm108, %v1127, 0
  %v1154 = vsel %vm108, %v1132, 0
  %1156 = vmatpush.msra.mxu0 0.0
  %1157 = vmatpush.msra.mxu0 0.0
  %1158 = vmatpush.msra.mxu0 0.0
  %1159 = vmatpush.msra.mxu0 0.0
  %1160 = vmatpush.msra.mxu0 0.0
  %1161 = vmatpush.msra.mxu0 0.0
  %1162 = vmatpush.msra.mxu0 0.0
  %1163 = vmatpush.msra.mxu0 0.0
  %1164 = vmatpush.msra.mxu0 0.0
  %1165 = vmatpush.msra.mxu0 0.0
  %1166 = vmatpush.msra.mxu0 0.0
  %1167 = vmatpush.msra.mxu0 0.0
  %1168 = vmatpush.msra.mxu0 0.0
  %1169 = vmatpush.msra.mxu0 0.0
  %1170 = vmatpush.msra.mxu0 0.0
  %1171 = vmatpush.msra.mxu0 %v1139
  %1172 = vmatmul.f32.gmra.mxu0 %v1136
  %v1173 = vpop.f32.mrf.mxu0
  %v1174 = vadd.f32 0.0, %v1173
  %1175 = vdwg.mxu0
  %1176 = vmatpush.msra.mxu0 0.0
  %1177 = vmatpush.msra.mxu0 0.0
  %1178 = vmatpush.msra.mxu0 0.0
  %1179 = vmatpush.msra.mxu0 0.0
  %1180 = vmatpush.msra.mxu0 0.0
  %1181 = vmatpush.msra.mxu0 0.0
  %1182 = vmatpush.msra.mxu0 0.0
  %1183 = vmatpush.msra.mxu0 0.0
  %1184 = vmatpush.msra.mxu0 0.0
  %1185 = vmatpush.msra.mxu0 0.0
  %1186 = vmatpush.msra.mxu0 0.0
  %1187 = vmatpush.msra.mxu0 0.0
  %1188 = vmatpush.msra.mxu0 0.0
  %1189 = vmatpush.msra.mxu0 0.0
  %1190 = vmatpush.msra.mxu0 0.0
  %1191 = vmatpush.msra.mxu0 %v1142
  %1192 = vmatmul.f32.gmra.mxu0 %v1136
  %v1193 = vpop.f32.mrf.mxu0
  %v1194 = vadd.f32 0.0, %v1193
  %1195 = vdwg.mxu0
  %1196 = vmatpush.msra.mxu0 0.0
  %1197 = vmatpush.msra.mxu0 0.0
  %1198 = vmatpush.msra.mxu0 0.0
  %1199 = vmatpush.msra.mxu0 0.0
  %1200 = vmatpush.msra.mxu0 0.0
  %1201 = vmatpush.msra.mxu0 0.0
  %1202 = vmatpush.msra.mxu0 0.0
  %1203 = vmatpush.msra.mxu0 0.0
  %1204 = vmatpush.msra.mxu0 0.0
  %1205 = vmatpush.msra.mxu0 0.0
  %1206 = vmatpush.msra.mxu0 0.0
  %1207 = vmatpush.msra.mxu0 0.0
  %1208 = vmatpush.msra.mxu0 0.0
  %1209 = vmatpush.msra.mxu0 0.0
  %1210 = vmatpush.msra.mxu0 0.0
  %1211 = vmatpush.msra.mxu0 %v1145
  %1212 = vmatmul.f32.gmra.mxu0 %v1136
  %v1213 = vpop.f32.mrf.mxu0
  %v1214 = vadd.f32 0.0, %v1213
  %1215 = vdwg.mxu0
  %1216 = vmatpush.msra.mxu0 0.0
  %1217 = vmatpush.msra.mxu0 0.0
  %1218 = vmatpush.msra.mxu0 0.0
  %1219 = vmatpush.msra.mxu0 0.0
  %1220 = vmatpush.msra.mxu0 0.0
  %1221 = vmatpush.msra.mxu0 0.0
  %1222 = vmatpush.msra.mxu0 0.0
  %1223 = vmatpush.msra.mxu0 0.0
  %1224 = vmatpush.msra.mxu0 0.0
  %1225 = vmatpush.msra.mxu0 0.0
  %1226 = vmatpush.msra.mxu0 0.0
  %1227 = vmatpush.msra.mxu0 0.0
  %1228 = vmatpush.msra.mxu0 0.0
  %1229 = vmatpush.msra.mxu0 0.0
  %1230 = vmatpush.msra.mxu0 0.0
  %1231 = vmatpush.msra.mxu0 %v1148
  %1232 = vmatmul.f32.gmra.mxu0 %v1136
  %v1233 = vpop.f32.mrf.mxu0
  %v1234 = vadd.f32 0.0, %v1233
  %1235 = vdwg.mxu0
  %1236 = vmatpush.msra.mxu0 0.0
  %1237 = vmatpush.msra.mxu0 0.0
  %1238 = vmatpush.msra.mxu0 0.0
  %1239 = vmatpush.msra.mxu0 0.0
  %1240 = vmatpush.msra.mxu0 0.0
  %1241 = vmatpush.msra.mxu0 0.0
  %1242 = vmatpush.msra.mxu0 0.0
  %1243 = vmatpush.msra.mxu0 0.0
  %1244 = vmatpush.msra.mxu0 0.0
  %1245 = vmatpush.msra.mxu0 0.0
  %1246 = vmatpush.msra.mxu0 0.0
  %1247 = vmatpush.msra.mxu0 0.0
  %1248 = vmatpush.msra.mxu0 0.0
  %1249 = vmatpush.msra.mxu0 0.0
  %1250 = vmatpush.msra.mxu0 0.0
  %1251 = vmatpush.msra.mxu0 %v1151
  %1252 = vmatmul.f32.gmra.mxu0 %v1136
  %v1253 = vpop.f32.mrf.mxu0
  %v1254 = vadd.f32 0.0, %v1253
  %1255 = vdwg.mxu0
  %1256 = vmatpush.msra.mxu0 0.0
  %1257 = vmatpush.msra.mxu0 0.0
  %1258 = vmatpush.msra.mxu0 0.0
  %1259 = vmatpush.msra.mxu0 0.0
  %1260 = vmatpush.msra.mxu0 0.0
  %1261 = vmatpush.msra.mxu0 0.0
  %1262 = vmatpush.msra.mxu0 0.0
  %1263 = vmatpush.msra.mxu0 0.0
  %1264 = vmatpush.msra.mxu0 0.0
  %1265 = vmatpush.msra.mxu0 0.0
  %1266 = vmatpush.msra.mxu0 0.0
  %1267 = vmatpush.msra.mxu0 0.0
  %1268 = vmatpush.msra.mxu0 0.0
  %1269 = vmatpush.msra.mxu0 0.0
  %1270 = vmatpush.msra.mxu0 0.0
  %1271 = vmatpush.msra.mxu0 %v1154
  %1272 = vmatmul.f32.gmra.mxu0 %v1136
  %v1273 = vpop.f32.mrf.mxu0
  %v1274 = vadd.f32 0.0, %v1273
  %1275 = vdwg.mxu0
  %v1276 = vadd.f32 %v1091, %v1174
  %v1277 = vadd.f32 %v1092, %v1194
  %v1278 = vadd.f32 %v1093, %v1214
  %v1279 = vadd.f32 %v1094, %v1234
  %v1280 = vadd.f32 %v1095, %v1254
  %v1281 = vadd.f32 %v1096, %v1274
  %1282 = vst [vmem:[#allocation1] ss:$2 sm:$0xff] %v20
  %s1283 = scalar_lea.vmem [#allocation1], 16
  %1284 = vst [vmem:[%s1283] ss:$2 sm:$0xff] %v21
  %s1285 = scalar_lea.vmem [#allocation1], 32
  %1286 = vst [vmem:[%s1285] ss:$2 sm:$0xff] %v22
  %v1287 = vld.sshfl [vmem:[#allocation1] sm:$0xff pattern:$0x75316420]
  %v1288 = vld.sshfl [vmem:[#allocation1 + $0x8] sm:$0xff pattern:$0x75316420]
  %v1289 = vld.sshfl [vmem:[#allocation1 + $0x10] sm:$0xff pattern:$0x75316420]
  %v1290 = vld.sshfl [vmem:[#allocation1 + $0x18] sm:$0xff pattern:$0x75316420]
  %v1291 = vld.sshfl [vmem:[#allocation1 + $0x20] sm:$0xff pattern:$0x75316420]
  %v1292 = vld.sshfl [vmem:[#allocation1 + $0x28] sm:$0xff pattern:$0x75316420]
  %1299 = vrot.lane.b32.xlu0 %v1287, 110
  %v1300 = vpop.permute.xlu0 %1299
  %1301 = vrot.lane.b32.xlu0 %v1288, 110
  %v1302 = vpop.permute.xlu0 %1301
  %1303 = vrot.lane.b32.xlu0 %v1289, 110
  %v1304 = vpop.permute.xlu0 %1303
  %1305 = vrot.lane.b32.xlu0 %v1290, 110
  %v1306 = vpop.permute.xlu0 %1305
  %1307 = vrot.lane.b32.xlu0 %v1291, 110
  %v1308 = vpop.permute.xlu0 %1307
  %1309 = vrot.lane.b32.xlu0 %v1292, 110
  %v1310 = vpop.permute.xlu0 %1309
  %vm1311 = vcmp.lt.s32.totalorder %v57, 110
  %v1312 = vsel %vm1311, %v1308, %v1310
  %v1313 = vsel %vm1311, %v1306, %v1308
  %v1314 = vsel %vm1311, %v1304, %v1306
  %v1315 = vsel %vm1311, %v1302, %v1304
  %v1316 = vsel %vm1311, %v1300, %v1302
  %v1317 = vsel %vm1311, %v1310, %v1300
  %s1318 = scalar_lea.vmem %s1, 28
  %v1319 = vld [vmem:[%s1318] sm:$0xf]
  %v1321 = vsel %vm104, %v1319, 0
  %v1324 = vsel %vm108, %v1316, 0
  %v1327 = vsel %vm108, %v1315, 0
  %v1330 = vsel %vm108, %v1314, 0
  %v1333 = vsel %vm108, %v1313, 0
  %v1336 = vsel %vm108, %v1312, 0
  %v1339 = vsel %vm108, %v1317, 0
  %1341 = vmatpush.msra.mxu0 0.0
  %1342 = vmatpush.msra.mxu0 0.0
  %1343 = vmatpush.msra.mxu0 0.0
  %1344 = vmatpush.msra.mxu0 0.0
  %1345 = vmatpush.msra.mxu0 0.0
  %1346 = vmatpush.msra.mxu0 0.0
  %1347 = vmatpush.msra.mxu0 0.0
  %1348 = vmatpush.msra.mxu0 0.0
  %1349 = vmatpush.msra.mxu0 0.0
  %1350 = vmatpush.msra.mxu0 0.0
  %1351 = vmatpush.msra.mxu0 0.0
  %1352 = vmatpush.msra.mxu0 0.0
  %1353 = vmatpush.msra.mxu0 0.0
  %1354 = vmatpush.msra.mxu0 0.0
  %1355 = vmatpush.msra.mxu0 0.0
  %1356 = vmatpush.msra.mxu0 %v1324
  %1357 = vmatmul.f32.gmra.mxu0 %v1321
  %v1358 = vpop.f32.mrf.mxu0
  %v1359 = vadd.f32 0.0, %v1358
  %1360 = vdwg.mxu0
  %1361 = vmatpush.msra.mxu0 0.0
  %1362 = vmatpush.msra.mxu0 0.0
  %1363 = vmatpush.msra.mxu0 0.0
  %1364 = vmatpush.msra.mxu0 0.0
  %1365 = vmatpush.msra.mxu0 0.0
  %1366 = vmatpush.msra.mxu0 0.0
  %1367 = vmatpush.msra.mxu0 0.0
  %1368 = vmatpush.msra.mxu0 0.0
  %1369 = vmatpush.msra.mxu0 0.0
  %1370 = vmatpush.msra.mxu0 0.0
  %1371 = vmatpush.msra.mxu0 0.0
  %1372 = vmatpush.msra.mxu0 0.0
  %1373 = vmatpush.msra.mxu0 0.0
  %1374 = vmatpush.msra.mxu0 0.0
  %1375 = vmatpush.msra.mxu0 0.0
  %1376 = vmatpush.msra.mxu0 %v1327
  %1377 = vmatmul.f32.gmra.mxu0 %v1321
  %v1378 = vpop.f32.mrf.mxu0
  %v1379 = vadd.f32 0.0, %v1378
  %1380 = vdwg.mxu0
  %1381 = vmatpush.msra.mxu0 0.0
  %1382 = vmatpush.msra.mxu0 0.0
  %1383 = vmatpush.msra.mxu0 0.0
  %1384 = vmatpush.msra.mxu0 0.0
  %1385 = vmatpush.msra.mxu0 0.0
  %1386 = vmatpush.msra.mxu0 0.0
  %1387 = vmatpush.msra.mxu0 0.0
  %1388 = vmatpush.msra.mxu0 0.0
  %1389 = vmatpush.msra.mxu0 0.0
  %1390 = vmatpush.msra.mxu0 0.0
  %1391 = vmatpush.msra.mxu0 0.0
  %1392 = vmatpush.msra.mxu0 0.0
  %1393 = vmatpush.msra.mxu0 0.0
  %1394 = vmatpush.msra.mxu0 0.0
  %1395 = vmatpush.msra.mxu0 0.0
  %1396 = vmatpush.msra.mxu0 %v1330
  %1397 = vmatmul.f32.gmra.mxu0 %v1321
  %v1398 = vpop.f32.mrf.mxu0
  %v1399 = vadd.f32 0.0, %v1398
  %1400 = vdwg.mxu0
  %1401 = vmatpush.msra.mxu0 0.0
  %1402 = vmatpush.msra.mxu0 0.0
  %1403 = vmatpush.msra.mxu0 0.0
  %1404 = vmatpush.msra.mxu0 0.0
  %1405 = vmatpush.msra.mxu0 0.0
  %1406 = vmatpush.msra.mxu0 0.0
  %1407 = vmatpush.msra.mxu0 0.0
  %1408 = vmatpush.msra.mxu0 0.0
  %1409 = vmatpush.msra.mxu0 0.0
  %1410 = vmatpush.msra.mxu0 0.0
  %1411 = vmatpush.msra.mxu0 0.0
  %1412 = vmatpush.msra.mxu0 0.0
  %1413 = vmatpush.msra.mxu0 0.0
  %1414 = vmatpush.msra.mxu0 0.0
  %1415 = vmatpush.msra.mxu0 0.0
  %1416 = vmatpush.msra.mxu0 %v1333
  %1417 = vmatmul.f32.gmra.mxu0 %v1321
  %v1418 = vpop.f32.mrf.mxu0
  %v1419 = vadd.f32 0.0, %v1418
  %1420 = vdwg.mxu0
  %1421 = vmatpush.msra.mxu0 0.0
  %1422 = vmatpush.msra.mxu0 0.0
  %1423 = vmatpush.msra.mxu0 0.0
  %1424 = vmatpush.msra.mxu0 0.0
  %1425 = vmatpush.msra.mxu0 0.0
  %1426 = vmatpush.msra.mxu0 0.0
  %1427 = vmatpush.msra.mxu0 0.0
  %1428 = vmatpush.msra.mxu0 0.0
  %1429 = vmatpush.msra.mxu0 0.0
  %1430 = vmatpush.msra.mxu0 0.0
  %1431 = vmatpush.msra.mxu0 0.0
  %1432 = vmatpush.msra.mxu0 0.0
  %1433 = vmatpush.msra.mxu0 0.0
  %1434 = vmatpush.msra.mxu0 0.0
  %1435 = vmatpush.msra.mxu0 0.0
  %1436 = vmatpush.msra.mxu0 %v1336
  %1437 = vmatmul.f32.gmra.mxu0 %v1321
  %v1438 = vpop.f32.mrf.mxu0
  %v1439 = vadd.f32 0.0, %v1438
  %1440 = vdwg.mxu0
  %1441 = vmatpush.msra.mxu0 0.0
  %1442 = vmatpush.msra.mxu0 0.0
  %1443 = vmatpush.msra.mxu0 0.0
  %1444 = vmatpush.msra.mxu0 0.0
  %1445 = vmatpush.msra.mxu0 0.0
  %1446 = vmatpush.msra.mxu0 0.0
  %1447 = vmatpush.msra.mxu0 0.0
  %1448 = vmatpush.msra.mxu0 0.0
  %1449 = vmatpush.msra.mxu0 0.0
  %1450 = vmatpush.msra.mxu0 0.0
  %1451 = vmatpush.msra.mxu0 0.0
  %1452 = vmatpush.msra.mxu0 0.0
  %1453 = vmatpush.msra.mxu0 0.0
  %1454 = vmatpush.msra.mxu0 0.0
  %1455 = vmatpush.msra.mxu0 0.0
  %1456 = vmatpush.msra.mxu0 %v1339
  %1457 = vmatmul.f32.gmra.mxu0 %v1321
  %v1458 = vpop.f32.mrf.mxu0
  %v1459 = vadd.f32 0.0, %v1458
  %1460 = vdwg.mxu0
  %v1461 = vadd.f32 %v1276, %v1359
  %v1462 = vadd.f32 %v1277, %v1379
  %v1463 = vadd.f32 %v1278, %v1399
  %v1464 = vadd.f32 %v1279, %v1419
  %v1465 = vadd.f32 %v1280, %v1439
  %v1466 = vadd.f32 %v1281, %v1459
  %1467 = vst [vmem:[#allocation1] ss:$2 sm:$0xff] %v20
  %s1468 = scalar_lea.vmem [#allocation1], 16
  %1469 = vst [vmem:[%s1468] ss:$2 sm:$0xff] %v21
  %s1470 = scalar_lea.vmem [#allocation1], 32
  %1471 = vst [vmem:[%s1470] ss:$2 sm:$0xff] %v22
  %v1472 = vld.sshfl [vmem:[#allocation1] sm:$0xff pattern:$0x75316420]
  %v1473 = vld.sshfl [vmem:[#allocation1 + $0x8] sm:$0xff pattern:$0x75316420]
  %v1474 = vld.sshfl [vmem:[#allocation1 + $0x10] sm:$0xff pattern:$0x75316420]
  %v1475 = vld.sshfl [vmem:[#allocation1 + $0x18] sm:$0xff pattern:$0x75316420]
  %v1476 = vld.sshfl [vmem:[#allocation1 + $0x20] sm:$0xff pattern:$0x75316420]
  %v1477 = vld.sshfl [vmem:[#allocation1 + $0x28] sm:$0xff pattern:$0x75316420]
  %1484 = vrot.lane.b32.xlu0 %v1472, 109
  %v1485 = vpop.permute.xlu0 %1484
  %1486 = vrot.lane.b32.xlu0 %v1473, 109
  %v1487 = vpop.permute.xlu0 %1486
  %1488 = vrot.lane.b32.xlu0 %v1474, 109
  %v1489 = vpop.permute.xlu0 %1488
  %1490 = vrot.lane.b32.xlu0 %v1475, 109
  %v1491 = vpop.permute.xlu0 %1490
  %1492 = vrot.lane.b32.xlu0 %v1476, 109
  %v1493 = vpop.permute.xlu0 %1492
  %1494 = vrot.lane.b32.xlu0 %v1477, 109
  %v1495 = vpop.permute.xlu0 %1494
  %vm1496 = vcmp.lt.s32.totalorder %v57, 109
  %v1497 = vsel %vm1496, %v1493, %v1495
  %v1498 = vsel %vm1496, %v1491, %v1493
  %v1499 = vsel %vm1496, %v1489, %v1491
  %v1500 = vsel %vm1496, %v1487, %v1489
  %v1501 = vsel %vm1496, %v1485, %v1487
  %v1502 = vsel %vm1496, %v1495, %v1485
  %s1503 = scalar_lea.vmem %s1, 32
  %v1504 = vld [vmem:[%s1503] sm:$0xf]
  %v1506 = vsel %vm104, %v1504, 0
  %v1509 = vsel %vm108, %v1501, 0
  %v1512 = vsel %vm108, %v1500, 0
  %v1515 = vsel %vm108, %v1499, 0
  %v1518 = vsel %vm108, %v1498, 0
  %v1521 = vsel %vm108, %v1497, 0
  %v1524 = vsel %vm108, %v1502, 0
  %1526 = vmatpush.msra.mxu0 0.0
  %1527 = vmatpush.msra.mxu0 0.0
  %1528 = vmatpush.msra.mxu0 0.0
  %1529 = vmatpush.msra.mxu0 0.0
  %1530 = vmatpush.msra.mxu0 0.0
  %1531 = vmatpush.msra.mxu0 0.0
  %1532 = vmatpush.msra.mxu0 0.0
  %1533 = vmatpush.msra.mxu0 0.0
  %1534 = vmatpush.msra.mxu0 0.0
  %1535 = vmatpush.msra.mxu0 0.0
  %1536 = vmatpush.msra.mxu0 0.0
  %1537 = vmatpush.msra.mxu0 0.0
  %1538 = vmatpush.msra.mxu0 0.0
  %1539 = vmatpush.msra.mxu0 0.0
  %1540 = vmatpush.msra.mxu0 0.0
  %1541 = vmatpush.msra.mxu0 %v1509
  %1542 = vmatmul.f32.gmra.mxu0 %v1506
  %v1543 = vpop.f32.mrf.mxu0
  %v1544 = vadd.f32 0.0, %v1543
  %1545 = vdwg.mxu0
  %1546 = vmatpush.msra.mxu0 0.0
  %1547 = vmatpush.msra.mxu0 0.0
  %1548 = vmatpush.msra.mxu0 0.0
  %1549 = vmatpush.msra.mxu0 0.0
  %1550 = vmatpush.msra.mxu0 0.0
  %1551 = vmatpush.msra.mxu0 0.0
  %1552 = vmatpush.msra.mxu0 0.0
  %1553 = vmatpush.msra.mxu0 0.0
  %1554 = vmatpush.msra.mxu0 0.0
  %1555 = vmatpush.msra.mxu0 0.0
  %1556 = vmatpush.msra.mxu0 0.0
  %1557 = vmatpush.msra.mxu0 0.0
  %1558 = vmatpush.msra.mxu0 0.0
  %1559 = vmatpush.msra.mxu0 0.0
  %1560 = vmatpush.msra.mxu0 0.0
  %1561 = vmatpush.msra.mxu0 %v1512
  %1562 = vmatmul.f32.gmra.mxu0 %v1506
  %v1563 = vpop.f32.mrf.mxu0
  %v1564 = vadd.f32 0.0, %v1563
  %1565 = vdwg.mxu0
  %1566 = vmatpush.msra.mxu0 0.0
  %1567 = vmatpush.msra.mxu0 0.0
  %1568 = vmatpush.msra.mxu0 0.0
  %1569 = vmatpush.msra.mxu0 0.0
  %1570 = vmatpush.msra.mxu0 0.0
  %1571 = vmatpush.msra.mxu0 0.0
  %1572 = vmatpush.msra.mxu0 0.0
  %1573 = vmatpush.msra.mxu0 0.0
  %1574 = vmatpush.msra.mxu0 0.0
  %1575 = vmatpush.msra.mxu0 0.0
  %1576 = vmatpush.msra.mxu0 0.0
  %1577 = vmatpush.msra.mxu0 0.0
  %1578 = vmatpush.msra.mxu0 0.0
  %1579 = vmatpush.msra.mxu0 0.0
  %1580 = vmatpush.msra.mxu0 0.0
  %1581 = vmatpush.msra.mxu0 %v1515
  %1582 = vmatmul.f32.gmra.mxu0 %v1506
  %v1583 = vpop.f32.mrf.mxu0
  %v1584 = vadd.f32 0.0, %v1583
  %1585 = vdwg.mxu0
  %1586 = vmatpush.msra.mxu0 0.0
  %1587 = vmatpush.msra.mxu0 0.0
  %1588 = vmatpush.msra.mxu0 0.0
  %1589 = vmatpush.msra.mxu0 0.0
  %1590 = vmatpush.msra.mxu0 0.0
  %1591 = vmatpush.msra.mxu0 0.0
  %1592 = vmatpush.msra.mxu0 0.0
  %1593 = vmatpush.msra.mxu0 0.0
  %1594 = vmatpush.msra.mxu0 0.0
  %1595 = vmatpush.msra.mxu0 0.0
  %1596 = vmatpush.msra.mxu0 0.0
  %1597 = vmatpush.msra.mxu0 0.0
  %1598 = vmatpush.msra.mxu0 0.0
  %1599 = vmatpush.msra.mxu0 0.0
  %1600 = vmatpush.msra.mxu0 0.0
  %1601 = vmatpush.msra.mxu0 %v1518
  %1602 = vmatmul.f32.gmra.mxu0 %v1506
  %v1603 = vpop.f32.mrf.mxu0
  %v1604 = vadd.f32 0.0, %v1603
  %1605 = vdwg.mxu0
  %1606 = vmatpush.msra.mxu0 0.0
  %1607 = vmatpush.msra.mxu0 0.0
  %1608 = vmatpush.msra.mxu0 0.0
  %1609 = vmatpush.msra.mxu0 0.0
  %1610 = vmatpush.msra.mxu0 0.0
  %1611 = vmatpush.msra.mxu0 0.0
  %1612 = vmatpush.msra.mxu0 0.0
  %1613 = vmatpush.msra.mxu0 0.0
  %1614 = vmatpush.msra.mxu0 0.0
  %1615 = vmatpush.msra.mxu0 0.0
  %1616 = vmatpush.msra.mxu0 0.0
  %1617 = vmatpush.msra.mxu0 0.0
  %1618 = vmatpush.msra.mxu0 0.0
  %1619 = vmatpush.msra.mxu0 0.0
  %1620 = vmatpush.msra.mxu0 0.0
  %1621 = vmatpush.msra.mxu0 %v1521
  %1622 = vmatmul.f32.gmra.mxu0 %v1506
  %v1623 = vpop.f32.mrf.mxu0
  %v1624 = vadd.f32 0.0, %v1623
  %1625 = vdwg.mxu0
  %1626 = vmatpush.msra.mxu0 0.0
  %1627 = vmatpush.msra.mxu0 0.0
  %1628 = vmatpush.msra.mxu0 0.0
  %1629 = vmatpush.msra.mxu0 0.0
  %1630 = vmatpush.msra.mxu0 0.0
  %1631 = vmatpush.msra.mxu0 0.0
  %1632 = vmatpush.msra.mxu0 0.0
  %1633 = vmatpush.msra.mxu0 0.0
  %1634 = vmatpush.msra.mxu0 0.0
  %1635 = vmatpush.msra.mxu0 0.0
  %1636 = vmatpush.msra.mxu0 0.0
  %1637 = vmatpush.msra.mxu0 0.0
  %1638 = vmatpush.msra.mxu0 0.0
  %1639 = vmatpush.msra.mxu0 0.0
  %1640 = vmatpush.msra.mxu0 0.0
  %1641 = vmatpush.msra.mxu0 %v1524
  %1642 = vmatmul.f32.gmra.mxu0 %v1506
  %v1643 = vpop.f32.mrf.mxu0
  %v1644 = vadd.f32 0.0, %v1643
  %1645 = vdwg.mxu0
  %v1646 = vadd.f32 %v1461, %v1544
  %v1647 = vadd.f32 %v1462, %v1564
  %v1648 = vadd.f32 %v1463, %v1584
  %v1649 = vadd.f32 %v1464, %v1604
  %v1650 = vadd.f32 %v1465, %v1624
  %v1651 = vadd.f32 %v1466, %v1644
  %v1652 = vld [vmem:[%s3] sm:$0xf]
  %s1653 = scalar_lea.vmem %s3, 4
  %v1654 = vld [vmem:[%s1653] sm:$0xf]
  %v1656 = vperm.slane %v23, 0
  %v1657 = vperm.slane %v23, 1
  %v1658 = vperm.slane %v23, 2
  %v1659 = vperm.slane %v23, 3
  %v1660 = vperm.slane %v23, 4
  %v1661 = vperm.slane %v23, 5
  %v1668 = vmul.f32 %v1646, %v1656
  %v1669 = vmul.f32 %v1647, %v1657
  %v1670 = vmul.f32 %v1648, %v1658
  %v1671 = vmul.f32 %v1649, %v1659
  %v1672 = vmul.f32 %v1650, %v1660
  %v1673 = vmul.f32 %v1651, %v1661
  %v1674 = vsel %vm108, %v1668, 0.0
  %v1675 = vsel %vm108, %v1669, 0.0
  %v1676 = vadd.f32 %v1674, %v1675
  %v1677 = vsel %vm108, %v1670, 0.0
  %v1678 = vadd.f32 %v1676, %v1677
  %v1679 = vsel %vm108, %v1671, 0.0
  %v1680 = vadd.f32 %v1678, %v1679
  %v1681 = vsel %vm108, %v1672, 0.0
  %v1682 = vadd.f32 %v1680, %v1681
  %v1683 = vsel %vm108, %v1673, 0.0
  %v1684 = vadd.f32 %v1682, %v1683
  %1685 = vadd.xlane.f32.xlu0 %v1684
  %v1686 = vpop.xlane.xlu0 %1685
  %v1687 = vmul.f32 %v1686, 0.001953125
  %v1688 = vsub.f32 %v1646, %v1687
  %v1689 = vsub.f32 %v1647, %v1687
  %v1690 = vsub.f32 %v1648, %v1687
  %v1691 = vsub.f32 %v1649, %v1687
  %v1692 = vsub.f32 %v1650, %v1687
  %v1693 = vsub.f32 %v1651, %v1687
  %v1694 = vmul.f32 %v1688, %v1656
  %v1695 = vmul.f32 %v1689, %v1657
  %v1696 = vmul.f32 %v1690, %v1658
  %v1697 = vmul.f32 %v1691, %v1659
  %v1698 = vmul.f32 %v1692, %v1660
  %v1699 = vmul.f32 %v1693, %v1661
  %v1700 = vmul.f32 %v1694, %v1694
  %v1701 = vmul.f32 %v1695, %v1695
  %v1702 = vmul.f32 %v1696, %v1696
  %v1703 = vmul.f32 %v1697, %v1697
  %v1704 = vmul.f32 %v1698, %v1698
  %v1705 = vmul.f32 %v1699, %v1699
  %v1706 = vsel %vm108, %v1700, 0.0
  %v1707 = vsel %vm108, %v1701, 0.0
  %v1708 = vadd.f32 %v1706, %v1707
  %v1709 = vsel %vm108, %v1702, 0.0
  %v1710 = vadd.f32 %v1708, %v1709
  %v1711 = vsel %vm108, %v1703, 0.0
  %v1712 = vadd.f32 %v1710, %v1711
  %v1713 = vsel %vm108, %v1704, 0.0
  %v1714 = vadd.f32 %v1712, %v1713
  %v1715 = vsel %vm108, %v1705, 0.0
  %v1716 = vadd.f32 %v1714, %v1715
  %1717 = vadd.xlane.f32.xlu0 %v1716
  %v1718 = vpop.xlane.xlu0 %1717
  %v1719 = vmul.f32 %v1718, 0.001953125
  %v1720 = vadd.f32 %v1719, 1e-05
  %v1721 = vrsqrt.pop %v1720
  %v1722 = vmul.f32 %v1721, %v1720
  %v1723 = vmul.f32 %v1722, %v1721
  %v1724 = vmul.f32 0.5, %v1723
  %v1725 = vsub.f32 1.5, %v1724
  %v1726 = vmul.f32 %v1721, %v1725
  %vm1727 = vweird.f32 %v1720
  %vm1728 = vweird.f32 %v1721
  %vm1729 = vmor %vm1727, %vm1728
  %v1730 = vsel %vm1729, %v1721, %v1726
  %v1731 = vmul.f32 %v1688, %v1730
  %v1732 = vmul.f32 %v1689, %v1730
  %v1733 = vmul.f32 %v1690, %v1730
  %v1734 = vmul.f32 %v1691, %v1730
  %v1735 = vmul.f32 %v1692, %v1730
  %v1736 = vmul.f32 %v1693, %v1730
  %1738 = vset.pattern.permute.xlu0 0
  %1739 = vperm.xlu0 %1738, %v1652
  %v1740 = vpop.permute.xlu0 %1739
  %v1742 = vmul.f32 %v1731, %v1740
  %v1743 = vmul.f32 %v1732, %v1740
  %v1744 = vmul.f32 %v1733, %v1740
  %v1745 = vmul.f32 %v1734, %v1740
  %v1746 = vmul.f32 %v1735, %v1740
  %v1747 = vmul.f32 %v1736, %v1740
  %1749 = vset.pattern.permute.xlu0 0
  %1750 = vperm.xlu0 %1749, %v1654
  %v1751 = vpop.permute.xlu0 %1750
  %v1753 = vadd.f32 %v1742, %v1751
  %v1754 = vadd.f32 %v1743, %v1751
  %v1755 = vadd.f32 %v1744, %v1751
  %v1756 = vadd.f32 %v1745, %v1751
  %v1757 = vadd.f32 %v1746, %v1751
  %v1758 = vadd.f32 %v1747, %v1751
  %v1759 = vmax.f32 %v1753, 0.0
  %v1760 = vmax.f32 %v1754, 0.0
  %v1761 = vmax.f32 %v1755, 0.0
  %v1762 = vmax.f32 %v1756, 0.0
  %v1763 = vmax.f32 %v1757, 0.0
  %v1764 = vmax.f32 %v1758, 0.0
  %v1765 = vmul.f32 %v1759, %v1656
  %v1766 = vmul.f32 %v1760, %v1657
  %v1767 = vmul.f32 %v1761, %v1658
  %v1768 = vmul.f32 %v1762, %v1659
  %v1769 = vmul.f32 %v1763, %v1660
  %v1770 = vmul.f32 %v1764, %v1661
  %1771 = vrot.lane.b32.xlu0 %v1765, 19
  %v1772 = vpop.permute.xlu0 %1771
  %1773 = vrot.lane.b32.xlu0 %v1766, 19
  %v1774 = vpop.permute.xlu0 %1773
  %1775 = vrot.lane.b32.xlu0 %v1767, 19
  %v1776 = vpop.permute.xlu0 %1775
  %1777 = vrot.lane.b32.xlu0 %v1768, 19
  %v1778 = vpop.permute.xlu0 %1777
  %1779 = vrot.lane.b32.xlu0 %v1769, 19
  %v1780 = vpop.permute.xlu0 %1779
  %1781 = vrot.lane.b32.xlu0 %v1770, 19
  %v1782 = vpop.permute.xlu0 %1781
  %v1783 = vsel %vm58, %v1780, %v1782
  %v1784 = vsel %vm58, %v1778, %v1780
  %v1785 = vsel %vm58, %v1776, %v1778
  %v1786 = vsel %vm58, %v1774, %v1776
  %v1787 = vsel %vm58, %v1772, %v1774
  %v1788 = vsel %vm58, %v1782, %v1772
  %v1789 = vld [vmem:[%s2] sm:$0xf]
  %1790 = vrot.lane.b32.xlu0 %v1765, 18
  %v1791 = vpop.permute.xlu0 %1790
  %1792 = vrot.lane.b32.xlu0 %v1766, 18
  %v1793 = vpop.permute.xlu0 %1792
  %1794 = vrot.lane.b32.xlu0 %v1767, 18
  %v1795 = vpop.permute.xlu0 %1794
  %1796 = vrot.lane.b32.xlu0 %v1768, 18
  %v1797 = vpop.permute.xlu0 %1796
  %1798 = vrot.lane.b32.xlu0 %v1769, 18
  %v1799 = vpop.permute.xlu0 %1798
  %1800 = vrot.lane.b32.xlu0 %v1770, 18
  %v1801 = vpop.permute.xlu0 %1800
  %v1802 = vsel %vm95, %v1799, %v1801
  %v1803 = vsel %vm95, %v1797, %v1799
  %v1804 = vsel %vm95, %v1795, %v1797
  %v1805 = vsel %vm95, %v1793, %v1795
  %v1806 = vsel %vm95, %v1791, %v1793
  %v1807 = vsel %vm95, %v1801, %v1791
  %s1808 = scalar_lea.vmem %s2, 4
  %v1809 = vld [vmem:[%s1808] sm:$0xf]
  %v1811 = vsel %vm104, %v1809, 0
  %v1814 = vsel %vm108, %v1807, 0
  %v1817 = vsel %vm108, %v1806, 0
  %v1820 = vsel %vm108, %v1805, 0
  %v1823 = vsel %vm108, %v1804, 0
  %v1826 = vsel %vm108, %v1803, 0
  %v1829 = vsel %vm108, %v1802, 0
  %1831 = vmatpush.msra.mxu0 0.0
  %1832 = vmatpush.msra.mxu0 0.0
  %1833 = vmatpush.msra.mxu0 0.0
  %1834 = vmatpush.msra.mxu0 0.0
  %1835 = vmatpush.msra.mxu0 0.0
  %1836 = vmatpush.msra.mxu0 0.0
  %1837 = vmatpush.msra.mxu0 0.0
  %1838 = vmatpush.msra.mxu0 0.0
  %1839 = vmatpush.msra.mxu0 0.0
  %1840 = vmatpush.msra.mxu0 0.0
  %1841 = vmatpush.msra.mxu0 0.0
  %1842 = vmatpush.msra.mxu0 0.0
  %1843 = vmatpush.msra.mxu0 0.0
  %1844 = vmatpush.msra.mxu0 0.0
  %1845 = vmatpush.msra.mxu0 0.0
  %1846 = vmatpush.msra.mxu0 %v1814
  %1847 = vmatmul.f32.gmra.mxu0 %v1811
  %v1848 = vpop.f32.mrf.mxu0
  %v1849 = vadd.f32 0.0, %v1848
  %1850 = vdwg.mxu0
  %1851 = vmatpush.msra.mxu0 0.0
  %1852 = vmatpush.msra.mxu0 0.0
  %1853 = vmatpush.msra.mxu0 0.0
  %1854 = vmatpush.msra.mxu0 0.0
  %1855 = vmatpush.msra.mxu0 0.0
  %1856 = vmatpush.msra.mxu0 0.0
  %1857 = vmatpush.msra.mxu0 0.0
  %1858 = vmatpush.msra.mxu0 0.0
  %1859 = vmatpush.msra.mxu0 0.0
  %1860 = vmatpush.msra.mxu0 0.0
  %1861 = vmatpush.msra.mxu0 0.0
  %1862 = vmatpush.msra.mxu0 0.0
  %1863 = vmatpush.msra.mxu0 0.0
  %1864 = vmatpush.msra.mxu0 0.0
  %1865 = vmatpush.msra.mxu0 0.0
  %1866 = vmatpush.msra.mxu0 %v1817
  %1867 = vmatmul.f32.gmra.mxu0 %v1811
  %v1868 = vpop.f32.mrf.mxu0
  %v1869 = vadd.f32 0.0, %v1868
  %1870 = vdwg.mxu0
  %1871 = vmatpush.msra.mxu0 0.0
  %1872 = vmatpush.msra.mxu0 0.0
  %1873 = vmatpush.msra.mxu0 0.0
  %1874 = vmatpush.msra.mxu0 0.0
  %1875 = vmatpush.msra.mxu0 0.0
  %1876 = vmatpush.msra.mxu0 0.0
  %1877 = vmatpush.msra.mxu0 0.0
  %1878 = vmatpush.msra.mxu0 0.0
  %1879 = vmatpush.msra.mxu0 0.0
  %1880 = vmatpush.msra.mxu0 0.0
  %1881 = vmatpush.msra.mxu0 0.0
  %1882 = vmatpush.msra.mxu0 0.0
  %1883 = vmatpush.msra.mxu0 0.0
  %1884 = vmatpush.msra.mxu0 0.0
  %1885 = vmatpush.msra.mxu0 0.0
  %1886 = vmatpush.msra.mxu0 %v1820
  %1887 = vmatmul.f32.gmra.mxu0 %v1811
  %v1888 = vpop.f32.mrf.mxu0
  %v1889 = vadd.f32 0.0, %v1888
  %1890 = vdwg.mxu0
  %1891 = vmatpush.msra.mxu0 0.0
  %1892 = vmatpush.msra.mxu0 0.0
  %1893 = vmatpush.msra.mxu0 0.0
  %1894 = vmatpush.msra.mxu0 0.0
  %1895 = vmatpush.msra.mxu0 0.0
  %1896 = vmatpush.msra.mxu0 0.0
  %1897 = vmatpush.msra.mxu0 0.0
  %1898 = vmatpush.msra.mxu0 0.0
  %1899 = vmatpush.msra.mxu0 0.0
  %1900 = vmatpush.msra.mxu0 0.0
  %1901 = vmatpush.msra.mxu0 0.0
  %1902 = vmatpush.msra.mxu0 0.0
  %1903 = vmatpush.msra.mxu0 0.0
  %1904 = vmatpush.msra.mxu0 0.0
  %1905 = vmatpush.msra.mxu0 0.0
  %1906 = vmatpush.msra.mxu0 %v1823
  %1907 = vmatmul.f32.gmra.mxu0 %v1811
  %v1908 = vpop.f32.mrf.mxu0
  %v1909 = vadd.f32 0.0, %v1908
  %1910 = vdwg.mxu0
  %1911 = vmatpush.msra.mxu0 0.0
  %1912 = vmatpush.msra.mxu0 0.0
  %1913 = vmatpush.msra.mxu0 0.0
  %1914 = vmatpush.msra.mxu0 0.0
  %1915 = vmatpush.msra.mxu0 0.0
  %1916 = vmatpush.msra.mxu0 0.0
  %1917 = vmatpush.msra.mxu0 0.0
  %1918 = vmatpush.msra.mxu0 0.0
  %1919 = vmatpush.msra.mxu0 0.0
  %1920 = vmatpush.msra.mxu0 0.0
  %1921 = vmatpush.msra.mxu0 0.0
  %1922 = vmatpush.msra.mxu0 0.0
  %1923 = vmatpush.msra.mxu0 0.0
  %1924 = vmatpush.msra.mxu0 0.0
  %1925 = vmatpush.msra.mxu0 0.0
  %1926 = vmatpush.msra.mxu0 %v1826
  %1927 = vmatmul.f32.gmra.mxu0 %v1811
  %v1928 = vpop.f32.mrf.mxu0
  %v1929 = vadd.f32 0.0, %v1928
  %1930 = vdwg.mxu0
  %1931 = vmatpush.msra.mxu0 0.0
  %1932 = vmatpush.msra.mxu0 0.0
  %1933 = vmatpush.msra.mxu0 0.0
  %1934 = vmatpush.msra.mxu0 0.0
  %1935 = vmatpush.msra.mxu0 0.0
  %1936 = vmatpush.msra.mxu0 0.0
  %1937 = vmatpush.msra.mxu0 0.0
  %1938 = vmatpush.msra.mxu0 0.0
  %1939 = vmatpush.msra.mxu0 0.0
  %1940 = vmatpush.msra.mxu0 0.0
  %1941 = vmatpush.msra.mxu0 0.0
  %1942 = vmatpush.msra.mxu0 0.0
  %1943 = vmatpush.msra.mxu0 0.0
  %1944 = vmatpush.msra.mxu0 0.0
  %1945 = vmatpush.msra.mxu0 0.0
  %1946 = vmatpush.msra.mxu0 %v1829
  %1947 = vmatmul.f32.gmra.mxu0 %v1811
  %v1948 = vpop.f32.mrf.mxu0
  %v1949 = vadd.f32 0.0, %v1948
  %1950 = vdwg.mxu0
  %v1952 = vsel %vm104, %v1789, 0
  %v1955 = vsel %vm108, %v1788, 0
  %v1958 = vsel %vm108, %v1787, 0
  %v1961 = vsel %vm108, %v1786, 0
  %v1964 = vsel %vm108, %v1785, 0
  %v1967 = vsel %vm108, %v1784, 0
  %v1970 = vsel %vm108, %v1783, 0
  %1972 = vmatpush.msra.mxu0 0.0
  %1973 = vmatpush.msra.mxu0 0.0
  %1974 = vmatpush.msra.mxu0 0.0
  %1975 = vmatpush.msra.mxu0 0.0
  %1976 = vmatpush.msra.mxu0 0.0
  %1977 = vmatpush.msra.mxu0 0.0
  %1978 = vmatpush.msra.mxu0 0.0
  %1979 = vmatpush.msra.mxu0 0.0
  %1980 = vmatpush.msra.mxu0 0.0
  %1981 = vmatpush.msra.mxu0 0.0
  %1982 = vmatpush.msra.mxu0 0.0
  %1983 = vmatpush.msra.mxu0 0.0
  %1984 = vmatpush.msra.mxu0 0.0
  %1985 = vmatpush.msra.mxu0 0.0
  %1986 = vmatpush.msra.mxu0 0.0
  %1987 = vmatpush.msra.mxu0 %v1955
  %1988 = vmatmul.f32.gmra.mxu0 %v1952
  %v1989 = vpop.f32.mrf.mxu0
  %v1990 = vadd.f32 %v1849, %v1989
  %1991 = vdwg.mxu0
  %1992 = vmatpush.msra.mxu0 0.0
  %1993 = vmatpush.msra.mxu0 0.0
  %1994 = vmatpush.msra.mxu0 0.0
  %1995 = vmatpush.msra.mxu0 0.0
  %1996 = vmatpush.msra.mxu0 0.0
  %1997 = vmatpush.msra.mxu0 0.0
  %1998 = vmatpush.msra.mxu0 0.0
  %1999 = vmatpush.msra.mxu0 0.0
  %2000 = vmatpush.msra.mxu0 0.0
  %2001 = vmatpush.msra.mxu0 0.0
  %2002 = vmatpush.msra.mxu0 0.0
  %2003 = vmatpush.msra.mxu0 0.0
  %2004 = vmatpush.msra.mxu0 0.0
  %2005 = vmatpush.msra.mxu0 0.0
  %2006 = vmatpush.msra.mxu0 0.0
  %2007 = vmatpush.msra.mxu0 %v1958
  %2008 = vmatmul.f32.gmra.mxu0 %v1952
  %v2009 = vpop.f32.mrf.mxu0
  %v2010 = vadd.f32 %v1869, %v2009
  %2011 = vdwg.mxu0
  %2012 = vmatpush.msra.mxu0 0.0
  %2013 = vmatpush.msra.mxu0 0.0
  %2014 = vmatpush.msra.mxu0 0.0
  %2015 = vmatpush.msra.mxu0 0.0
  %2016 = vmatpush.msra.mxu0 0.0
  %2017 = vmatpush.msra.mxu0 0.0
  %2018 = vmatpush.msra.mxu0 0.0
  %2019 = vmatpush.msra.mxu0 0.0
  %2020 = vmatpush.msra.mxu0 0.0
  %2021 = vmatpush.msra.mxu0 0.0
  %2022 = vmatpush.msra.mxu0 0.0
  %2023 = vmatpush.msra.mxu0 0.0
  %2024 = vmatpush.msra.mxu0 0.0
  %2025 = vmatpush.msra.mxu0 0.0
  %2026 = vmatpush.msra.mxu0 0.0
  %2027 = vmatpush.msra.mxu0 %v1961
  %2028 = vmatmul.f32.gmra.mxu0 %v1952
  %v2029 = vpop.f32.mrf.mxu0
  %v2030 = vadd.f32 %v1889, %v2029
  %2031 = vdwg.mxu0
  %2032 = vmatpush.msra.mxu0 0.0
  %2033 = vmatpush.msra.mxu0 0.0
  %2034 = vmatpush.msra.mxu0 0.0
  %2035 = vmatpush.msra.mxu0 0.0
  %2036 = vmatpush.msra.mxu0 0.0
  %2037 = vmatpush.msra.mxu0 0.0
  %2038 = vmatpush.msra.mxu0 0.0
  %2039 = vmatpush.msra.mxu0 0.0
  %2040 = vmatpush.msra.mxu0 0.0
  %2041 = vmatpush.msra.mxu0 0.0
  %2042 = vmatpush.msra.mxu0 0.0
  %2043 = vmatpush.msra.mxu0 0.0
  %2044 = vmatpush.msra.mxu0 0.0
  %2045 = vmatpush.msra.mxu0 0.0
  %2046 = vmatpush.msra.mxu0 0.0
  %2047 = vmatpush.msra.mxu0 %v1964
  %2048 = vmatmul.f32.gmra.mxu0 %v1952
  %v2049 = vpop.f32.mrf.mxu0
  %v2050 = vadd.f32 %v1909, %v2049
  %2051 = vdwg.mxu0
  %2052 = vmatpush.msra.mxu0 0.0
  %2053 = vmatpush.msra.mxu0 0.0
  %2054 = vmatpush.msra.mxu0 0.0
  %2055 = vmatpush.msra.mxu0 0.0
  %2056 = vmatpush.msra.mxu0 0.0
  %2057 = vmatpush.msra.mxu0 0.0
  %2058 = vmatpush.msra.mxu0 0.0
  %2059 = vmatpush.msra.mxu0 0.0
  %2060 = vmatpush.msra.mxu0 0.0
  %2061 = vmatpush.msra.mxu0 0.0
  %2062 = vmatpush.msra.mxu0 0.0
  %2063 = vmatpush.msra.mxu0 0.0
  %2064 = vmatpush.msra.mxu0 0.0
  %2065 = vmatpush.msra.mxu0 0.0
  %2066 = vmatpush.msra.mxu0 0.0
  %2067 = vmatpush.msra.mxu0 %v1967
  %2068 = vmatmul.f32.gmra.mxu0 %v1952
  %v2069 = vpop.f32.mrf.mxu0
  %v2070 = vadd.f32 %v1929, %v2069
  %2071 = vdwg.mxu0
  %2072 = vmatpush.msra.mxu0 0.0
  %2073 = vmatpush.msra.mxu0 0.0
  %2074 = vmatpush.msra.mxu0 0.0
  %2075 = vmatpush.msra.mxu0 0.0
  %2076 = vmatpush.msra.mxu0 0.0
  %2077 = vmatpush.msra.mxu0 0.0
  %2078 = vmatpush.msra.mxu0 0.0
  %2079 = vmatpush.msra.mxu0 0.0
  %2080 = vmatpush.msra.mxu0 0.0
  %2081 = vmatpush.msra.mxu0 0.0
  %2082 = vmatpush.msra.mxu0 0.0
  %2083 = vmatpush.msra.mxu0 0.0
  %2084 = vmatpush.msra.mxu0 0.0
  %2085 = vmatpush.msra.mxu0 0.0
  %2086 = vmatpush.msra.mxu0 0.0
  %2087 = vmatpush.msra.mxu0 %v1970
  %2088 = vmatmul.f32.gmra.mxu0 %v1952
  %v2089 = vpop.f32.mrf.mxu0
  %v2090 = vadd.f32 %v1949, %v2089
  %2091 = vdwg.mxu0
  %2092 = vrot.lane.b32.xlu0 %v1765, 17
  %v2093 = vpop.permute.xlu0 %2092
  %2094 = vrot.lane.b32.xlu0 %v1766, 17
  %v2095 = vpop.permute.xlu0 %2094
  %2096 = vrot.lane.b32.xlu0 %v1767, 17
  %v2097 = vpop.permute.xlu0 %2096
  %2098 = vrot.lane.b32.xlu0 %v1768, 17
  %v2099 = vpop.permute.xlu0 %2098
  %2100 = vrot.lane.b32.xlu0 %v1769, 17
  %v2101 = vpop.permute.xlu0 %2100
  %2102 = vrot.lane.b32.xlu0 %v1770, 17
  %v2103 = vpop.permute.xlu0 %2102
  %v2104 = vsel %vm417, %v2101, %v2103
  %v2105 = vsel %vm417, %v2099, %v2101
  %v2106 = vsel %vm417, %v2097, %v2099
  %v2107 = vsel %vm417, %v2095, %v2097
  %v2108 = vsel %vm417, %v2093, %v2095
  %v2109 = vsel %vm417, %v2103, %v2093
  %s2110 = scalar_lea.vmem %s2, 8
  %v2111 = vld [vmem:[%s2110] sm:$0xf]
  %v2113 = vsel %vm104, %v2111, 0
  %v2116 = vsel %vm108, %v2109, 0
  %v2119 = vsel %vm108, %v2108, 0
  %v2122 = vsel %vm108, %v2107, 0
  %v2125 = vsel %vm108, %v2106, 0
  %v2128 = vsel %vm108, %v2105, 0
  %v2131 = vsel %vm108, %v2104, 0
  %2133 = vmatpush.msra.mxu0 0.0
  %2134 = vmatpush.msra.mxu0 0.0
  %2135 = vmatpush.msra.mxu0 0.0
  %2136 = vmatpush.msra.mxu0 0.0
  %2137 = vmatpush.msra.mxu0 0.0
  %2138 = vmatpush.msra.mxu0 0.0
  %2139 = vmatpush.msra.mxu0 0.0
  %2140 = vmatpush.msra.mxu0 0.0
  %2141 = vmatpush.msra.mxu0 0.0
  %2142 = vmatpush.msra.mxu0 0.0
  %2143 = vmatpush.msra.mxu0 0.0
  %2144 = vmatpush.msra.mxu0 0.0
  %2145 = vmatpush.msra.mxu0 0.0
  %2146 = vmatpush.msra.mxu0 0.0
  %2147 = vmatpush.msra.mxu0 0.0
  %2148 = vmatpush.msra.mxu0 %v2116
  %2149 = vmatmul.f32.gmra.mxu0 %v2113
  %v2150 = vpop.f32.mrf.mxu0
  %v2151 = vadd.f32 0.0, %v2150
  %2152 = vdwg.mxu0
  %2153 = vmatpush.msra.mxu0 0.0
  %2154 = vmatpush.msra.mxu0 0.0
  %2155 = vmatpush.msra.mxu0 0.0
  %2156 = vmatpush.msra.mxu0 0.0
  %2157 = vmatpush.msra.mxu0 0.0
  %2158 = vmatpush.msra.mxu0 0.0
  %2159 = vmatpush.msra.mxu0 0.0
  %2160 = vmatpush.msra.mxu0 0.0
  %2161 = vmatpush.msra.mxu0 0.0
  %2162 = vmatpush.msra.mxu0 0.0
  %2163 = vmatpush.msra.mxu0 0.0
  %2164 = vmatpush.msra.mxu0 0.0
  %2165 = vmatpush.msra.mxu0 0.0
  %2166 = vmatpush.msra.mxu0 0.0
  %2167 = vmatpush.msra.mxu0 0.0
  %2168 = vmatpush.msra.mxu0 %v2119
  %2169 = vmatmul.f32.gmra.mxu0 %v2113
  %v2170 = vpop.f32.mrf.mxu0
  %v2171 = vadd.f32 0.0, %v2170
  %2172 = vdwg.mxu0
  %2173 = vmatpush.msra.mxu0 0.0
  %2174 = vmatpush.msra.mxu0 0.0
  %2175 = vmatpush.msra.mxu0 0.0
  %2176 = vmatpush.msra.mxu0 0.0
  %2177 = vmatpush.msra.mxu0 0.0
  %2178 = vmatpush.msra.mxu0 0.0
  %2179 = vmatpush.msra.mxu0 0.0
  %2180 = vmatpush.msra.mxu0 0.0
  %2181 = vmatpush.msra.mxu0 0.0
  %2182 = vmatpush.msra.mxu0 0.0
  %2183 = vmatpush.msra.mxu0 0.0
  %2184 = vmatpush.msra.mxu0 0.0
  %2185 = vmatpush.msra.mxu0 0.0
  %2186 = vmatpush.msra.mxu0 0.0
  %2187 = vmatpush.msra.mxu0 0.0
  %2188 = vmatpush.msra.mxu0 %v2122
  %2189 = vmatmul.f32.gmra.mxu0 %v2113
  %v2190 = vpop.f32.mrf.mxu0
  %v2191 = vadd.f32 0.0, %v2190
  %2192 = vdwg.mxu0
  %2193 = vmatpush.msra.mxu0 0.0
  %2194 = vmatpush.msra.mxu0 0.0
  %2195 = vmatpush.msra.mxu0 0.0
  %2196 = vmatpush.msra.mxu0 0.0
  %2197 = vmatpush.msra.mxu0 0.0
  %2198 = vmatpush.msra.mxu0 0.0
  %2199 = vmatpush.msra.mxu0 0.0
  %2200 = vmatpush.msra.mxu0 0.0
  %2201 = vmatpush.msra.mxu0 0.0
  %2202 = vmatpush.msra.mxu0 0.0
  %2203 = vmatpush.msra.mxu0 0.0
  %2204 = vmatpush.msra.mxu0 0.0
  %2205 = vmatpush.msra.mxu0 0.0
  %2206 = vmatpush.msra.mxu0 0.0
  %2207 = vmatpush.msra.mxu0 0.0
  %2208 = vmatpush.msra.mxu0 %v2125
  %2209 = vmatmul.f32.gmra.mxu0 %v2113
  %v2210 = vpop.f32.mrf.mxu0
  %v2211 = vadd.f32 0.0, %v2210
  %2212 = vdwg.mxu0
  %2213 = vmatpush.msra.mxu0 0.0
  %2214 = vmatpush.msra.mxu0 0.0
  %2215 = vmatpush.msra.mxu0 0.0
  %2216 = vmatpush.msra.mxu0 0.0
  %2217 = vmatpush.msra.mxu0 0.0
  %2218 = vmatpush.msra.mxu0 0.0
  %2219 = vmatpush.msra.mxu0 0.0
  %2220 = vmatpush.msra.mxu0 0.0
  %2221 = vmatpush.msra.mxu0 0.0
  %2222 = vmatpush.msra.mxu0 0.0
  %2223 = vmatpush.msra.mxu0 0.0
  %2224 = vmatpush.msra.mxu0 0.0
  %2225 = vmatpush.msra.mxu0 0.0
  %2226 = vmatpush.msra.mxu0 0.0
  %2227 = vmatpush.msra.mxu0 0.0
  %2228 = vmatpush.msra.mxu0 %v2128
  %2229 = vmatmul.f32.gmra.mxu0 %v2113
  %v2230 = vpop.f32.mrf.mxu0
  %v2231 = vadd.f32 0.0, %v2230
  %2232 = vdwg.mxu0
  %2233 = vmatpush.msra.mxu0 0.0
  %2234 = vmatpush.msra.mxu0 0.0
  %2235 = vmatpush.msra.mxu0 0.0
  %2236 = vmatpush.msra.mxu0 0.0
  %2237 = vmatpush.msra.mxu0 0.0
  %2238 = vmatpush.msra.mxu0 0.0
  %2239 = vmatpush.msra.mxu0 0.0
  %2240 = vmatpush.msra.mxu0 0.0
  %2241 = vmatpush.msra.mxu0 0.0
  %2242 = vmatpush.msra.mxu0 0.0
  %2243 = vmatpush.msra.mxu0 0.0
  %2244 = vmatpush.msra.mxu0 0.0
  %2245 = vmatpush.msra.mxu0 0.0
  %2246 = vmatpush.msra.mxu0 0.0
  %2247 = vmatpush.msra.mxu0 0.0
  %2248 = vmatpush.msra.mxu0 %v2131
  %2249 = vmatmul.f32.gmra.mxu0 %v2113
  %v2250 = vpop.f32.mrf.mxu0
  %v2251 = vadd.f32 0.0, %v2250
  %2252 = vdwg.mxu0
  %v2253 = vadd.f32 %v1990, %v2151
  %v2254 = vadd.f32 %v2010, %v2171
  %v2255 = vadd.f32 %v2030, %v2191
  %v2256 = vadd.f32 %v2050, %v2211
  %v2257 = vadd.f32 %v2070, %v2231
  %v2258 = vadd.f32 %v2090, %v2251
  %2259 = vrot.lane.b32.xlu0 %v1765, 1
  %v2260 = vpop.permute.xlu0 %2259
  %2261 = vrot.lane.b32.xlu0 %v1766, 1
  %v2262 = vpop.permute.xlu0 %2261
  %2263 = vrot.lane.b32.xlu0 %v1767, 1
  %v2264 = vpop.permute.xlu0 %2263
  %2265 = vrot.lane.b32.xlu0 %v1768, 1
  %v2266 = vpop.permute.xlu0 %2265
  %2267 = vrot.lane.b32.xlu0 %v1769, 1
  %v2268 = vpop.permute.xlu0 %2267
  %2269 = vrot.lane.b32.xlu0 %v1770, 1
  %v2270 = vpop.permute.xlu0 %2269
  %v2271 = vsel %vm602, %v2268, %v2270
  %v2272 = vsel %vm602, %v2266, %v2268
  %v2273 = vsel %vm602, %v2264, %v2266
  %v2274 = vsel %vm602, %v2262, %v2264
  %v2275 = vsel %vm602, %v2260, %v2262
  %v2276 = vsel %vm602, %v2270, %v2260
  %s2277 = scalar_lea.vmem %s2, 12
  %v2278 = vld [vmem:[%s2277] sm:$0xf]
  %v2280 = vsel %vm104, %v2278, 0
  %v2283 = vsel %vm108, %v2276, 0
  %v2286 = vsel %vm108, %v2275, 0
  %v2289 = vsel %vm108, %v2274, 0
  %v2292 = vsel %vm108, %v2273, 0
  %v2295 = vsel %vm108, %v2272, 0
  %v2298 = vsel %vm108, %v2271, 0
  %2300 = vmatpush.msra.mxu0 0.0
  %2301 = vmatpush.msra.mxu0 0.0
  %2302 = vmatpush.msra.mxu0 0.0
  %2303 = vmatpush.msra.mxu0 0.0
  %2304 = vmatpush.msra.mxu0 0.0
  %2305 = vmatpush.msra.mxu0 0.0
  %2306 = vmatpush.msra.mxu0 0.0
  %2307 = vmatpush.msra.mxu0 0.0
  %2308 = vmatpush.msra.mxu0 0.0
  %2309 = vmatpush.msra.mxu0 0.0
  %2310 = vmatpush.msra.mxu0 0.0
  %2311 = vmatpush.msra.mxu0 0.0
  %2312 = vmatpush.msra.mxu0 0.0
  %2313 = vmatpush.msra.mxu0 0.0
  %2314 = vmatpush.msra.mxu0 0.0
  %2315 = vmatpush.msra.mxu0 %v2283
  %2316 = vmatmul.f32.gmra.mxu0 %v2280
  %v2317 = vpop.f32.mrf.mxu0
  %v2318 = vadd.f32 0.0, %v2317
  %2319 = vdwg.mxu0
  %2320 = vmatpush.msra.mxu0 0.0
  %2321 = vmatpush.msra.mxu0 0.0
  %2322 = vmatpush.msra.mxu0 0.0
  %2323 = vmatpush.msra.mxu0 0.0
  %2324 = vmatpush.msra.mxu0 0.0
  %2325 = vmatpush.msra.mxu0 0.0
  %2326 = vmatpush.msra.mxu0 0.0
  %2327 = vmatpush.msra.mxu0 0.0
  %2328 = vmatpush.msra.mxu0 0.0
  %2329 = vmatpush.msra.mxu0 0.0
  %2330 = vmatpush.msra.mxu0 0.0
  %2331 = vmatpush.msra.mxu0 0.0
  %2332 = vmatpush.msra.mxu0 0.0
  %2333 = vmatpush.msra.mxu0 0.0
  %2334 = vmatpush.msra.mxu0 0.0
  %2335 = vmatpush.msra.mxu0 %v2286
  %2336 = vmatmul.f32.gmra.mxu0 %v2280
  %v2337 = vpop.f32.mrf.mxu0
  %v2338 = vadd.f32 0.0, %v2337
  %2339 = vdwg.mxu0
  %2340 = vmatpush.msra.mxu0 0.0
  %2341 = vmatpush.msra.mxu0 0.0
  %2342 = vmatpush.msra.mxu0 0.0
  %2343 = vmatpush.msra.mxu0 0.0
  %2344 = vmatpush.msra.mxu0 0.0
  %2345 = vmatpush.msra.mxu0 0.0
  %2346 = vmatpush.msra.mxu0 0.0
  %2347 = vmatpush.msra.mxu0 0.0
  %2348 = vmatpush.msra.mxu0 0.0
  %2349 = vmatpush.msra.mxu0 0.0
  %2350 = vmatpush.msra.mxu0 0.0
  %2351 = vmatpush.msra.mxu0 0.0
  %2352 = vmatpush.msra.mxu0 0.0
  %2353 = vmatpush.msra.mxu0 0.0
  %2354 = vmatpush.msra.mxu0 0.0
  %2355 = vmatpush.msra.mxu0 %v2289
  %2356 = vmatmul.f32.gmra.mxu0 %v2280
  %v2357 = vpop.f32.mrf.mxu0
  %v2358 = vadd.f32 0.0, %v2357
  %2359 = vdwg.mxu0
  %2360 = vmatpush.msra.mxu0 0.0
  %2361 = vmatpush.msra.mxu0 0.0
  %2362 = vmatpush.msra.mxu0 0.0
  %2363 = vmatpush.msra.mxu0 0.0
  %2364 = vmatpush.msra.mxu0 0.0
  %2365 = vmatpush.msra.mxu0 0.0
  %2366 = vmatpush.msra.mxu0 0.0
  %2367 = vmatpush.msra.mxu0 0.0
  %2368 = vmatpush.msra.mxu0 0.0
  %2369 = vmatpush.msra.mxu0 0.0
  %2370 = vmatpush.msra.mxu0 0.0
  %2371 = vmatpush.msra.mxu0 0.0
  %2372 = vmatpush.msra.mxu0 0.0
  %2373 = vmatpush.msra.mxu0 0.0
  %2374 = vmatpush.msra.mxu0 0.0
  %2375 = vmatpush.msra.mxu0 %v2292
  %2376 = vmatmul.f32.gmra.mxu0 %v2280
  %v2377 = vpop.f32.mrf.mxu0
  %v2378 = vadd.f32 0.0, %v2377
  %2379 = vdwg.mxu0
  %2380 = vmatpush.msra.mxu0 0.0
  %2381 = vmatpush.msra.mxu0 0.0
  %2382 = vmatpush.msra.mxu0 0.0
  %2383 = vmatpush.msra.mxu0 0.0
  %2384 = vmatpush.msra.mxu0 0.0
  %2385 = vmatpush.msra.mxu0 0.0
  %2386 = vmatpush.msra.mxu0 0.0
  %2387 = vmatpush.msra.mxu0 0.0
  %2388 = vmatpush.msra.mxu0 0.0
  %2389 = vmatpush.msra.mxu0 0.0
  %2390 = vmatpush.msra.mxu0 0.0
  %2391 = vmatpush.msra.mxu0 0.0
  %2392 = vmatpush.msra.mxu0 0.0
  %2393 = vmatpush.msra.mxu0 0.0
  %2394 = vmatpush.msra.mxu0 0.0
  %2395 = vmatpush.msra.mxu0 %v2295
  %2396 = vmatmul.f32.gmra.mxu0 %v2280
  %v2397 = vpop.f32.mrf.mxu0
  %v2398 = vadd.f32 0.0, %v2397
  %2399 = vdwg.mxu0
  %2400 = vmatpush.msra.mxu0 0.0
  %2401 = vmatpush.msra.mxu0 0.0
  %2402 = vmatpush.msra.mxu0 0.0
  %2403 = vmatpush.msra.mxu0 0.0
  %2404 = vmatpush.msra.mxu0 0.0
  %2405 = vmatpush.msra.mxu0 0.0
  %2406 = vmatpush.msra.mxu0 0.0
  %2407 = vmatpush.msra.mxu0 0.0
  %2408 = vmatpush.msra.mxu0 0.0
  %2409 = vmatpush.msra.mxu0 0.0
  %2410 = vmatpush.msra.mxu0 0.0
  %2411 = vmatpush.msra.mxu0 0.0
  %2412 = vmatpush.msra.mxu0 0.0
  %2413 = vmatpush.msra.mxu0 0.0
  %2414 = vmatpush.msra.mxu0 0.0
  %2415 = vmatpush.msra.mxu0 %v2298
  %2416 = vmatmul.f32.gmra.mxu0 %v2280
  %v2417 = vpop.f32.mrf.mxu0
  %v2418 = vadd.f32 0.0, %v2417
  %2419 = vdwg.mxu0
  %v2420 = vadd.f32 %v2253, %v2318
  %v2421 = vadd.f32 %v2254, %v2338
  %v2422 = vadd.f32 %v2255, %v2358
  %v2423 = vadd.f32 %v2256, %v2378
  %v2424 = vadd.f32 %v2257, %v2398
  %v2425 = vadd.f32 %v2258, %v2418
  %s2426 = scalar_lea.vmem %s2, 16
  %v2427 = vld [vmem:[%s2426] sm:$0xf]
  %v2429 = vsel %vm104, %v2427, 0
  %v2432 = vsel %vm108, %v1765, 0
  %v2435 = vsel %vm108, %v1766, 0
  %v2438 = vsel %vm108, %v1767, 0
  %v2441 = vsel %vm108, %v1768, 0
  %v2444 = vsel %vm108, %v1769, 0
  %v2447 = vsel %vm108, %v1770, 0
  %2449 = vmatpush.msra.mxu0 0.0
  %2450 = vmatpush.msra.mxu0 0.0
  %2451 = vmatpush.msra.mxu0 0.0
  %2452 = vmatpush.msra.mxu0 0.0
  %2453 = vmatpush.msra.mxu0 0.0
  %2454 = vmatpush.msra.mxu0 0.0
  %2455 = vmatpush.msra.mxu0 0.0
  %2456 = vmatpush.msra.mxu0 0.0
  %2457 = vmatpush.msra.mxu0 0.0
  %2458 = vmatpush.msra.mxu0 0.0
  %2459 = vmatpush.msra.mxu0 0.0
  %2460 = vmatpush.msra.mxu0 0.0
  %2461 = vmatpush.msra.mxu0 0.0
  %2462 = vmatpush.msra.mxu0 0.0
  %2463 = vmatpush.msra.mxu0 0.0
  %2464 = vmatpush.msra.mxu0 %v2432
  %2465 = vmatmul.f32.gmra.mxu0 %v2429
  %v2466 = vpop.f32.mrf.mxu0
  %v2467 = vadd.f32 0.0, %v2466
  %2468 = vdwg.mxu0
  %2469 = vmatpush.msra.mxu0 0.0
  %2470 = vmatpush.msra.mxu0 0.0
  %2471 = vmatpush.msra.mxu0 0.0
  %2472 = vmatpush.msra.mxu0 0.0
  %2473 = vmatpush.msra.mxu0 0.0
  %2474 = vmatpush.msra.mxu0 0.0
  %2475 = vmatpush.msra.mxu0 0.0
  %2476 = vmatpush.msra.mxu0 0.0
  %2477 = vmatpush.msra.mxu0 0.0
  %2478 = vmatpush.msra.mxu0 0.0
  %2479 = vmatpush.msra.mxu0 0.0
  %2480 = vmatpush.msra.mxu0 0.0
  %2481 = vmatpush.msra.mxu0 0.0
  %2482 = vmatpush.msra.mxu0 0.0
  %2483 = vmatpush.msra.mxu0 0.0
  %2484 = vmatpush.msra.mxu0 %v2435
  %2485 = vmatmul.f32.gmra.mxu0 %v2429
  %v2486 = vpop.f32.mrf.mxu0
  %v2487 = vadd.f32 0.0, %v2486
  %2488 = vdwg.mxu0
  %2489 = vmatpush.msra.mxu0 0.0
  %2490 = vmatpush.msra.mxu0 0.0
  %2491 = vmatpush.msra.mxu0 0.0
  %2492 = vmatpush.msra.mxu0 0.0
  %2493 = vmatpush.msra.mxu0 0.0
  %2494 = vmatpush.msra.mxu0 0.0
  %2495 = vmatpush.msra.mxu0 0.0
  %2496 = vmatpush.msra.mxu0 0.0
  %2497 = vmatpush.msra.mxu0 0.0
  %2498 = vmatpush.msra.mxu0 0.0
  %2499 = vmatpush.msra.mxu0 0.0
  %2500 = vmatpush.msra.mxu0 0.0
  %2501 = vmatpush.msra.mxu0 0.0
  %2502 = vmatpush.msra.mxu0 0.0
  %2503 = vmatpush.msra.mxu0 0.0
  %2504 = vmatpush.msra.mxu0 %v2438
  %2505 = vmatmul.f32.gmra.mxu0 %v2429
  %v2506 = vpop.f32.mrf.mxu0
  %v2507 = vadd.f32 0.0, %v2506
  %2508 = vdwg.mxu0
  %2509 = vmatpush.msra.mxu0 0.0
  %2510 = vmatpush.msra.mxu0 0.0
  %2511 = vmatpush.msra.mxu0 0.0
  %2512 = vmatpush.msra.mxu0 0.0
  %2513 = vmatpush.msra.mxu0 0.0
  %2514 = vmatpush.msra.mxu0 0.0
  %2515 = vmatpush.msra.mxu0 0.0
  %2516 = vmatpush.msra.mxu0 0.0
  %2517 = vmatpush.msra.mxu0 0.0
  %2518 = vmatpush.msra.mxu0 0.0
  %2519 = vmatpush.msra.mxu0 0.0
  %2520 = vmatpush.msra.mxu0 0.0
  %2521 = vmatpush.msra.mxu0 0.0
  %2522 = vmatpush.msra.mxu0 0.0
  %2523 = vmatpush.msra.mxu0 0.0
  %2524 = vmatpush.msra.mxu0 %v2441
  %2525 = vmatmul.f32.gmra.mxu0 %v2429
  %v2526 = vpop.f32.mrf.mxu0
  %v2527 = vadd.f32 0.0, %v2526
  %2528 = vdwg.mxu0
  %2529 = vmatpush.msra.mxu0 0.0
  %2530 = vmatpush.msra.mxu0 0.0
  %2531 = vmatpush.msra.mxu0 0.0
  %2532 = vmatpush.msra.mxu0 0.0
  %2533 = vmatpush.msra.mxu0 0.0
  %2534 = vmatpush.msra.mxu0 0.0
  %2535 = vmatpush.msra.mxu0 0.0
  %2536 = vmatpush.msra.mxu0 0.0
  %2537 = vmatpush.msra.mxu0 0.0
  %2538 = vmatpush.msra.mxu0 0.0
  %2539 = vmatpush.msra.mxu0 0.0
  %2540 = vmatpush.msra.mxu0 0.0
  %2541 = vmatpush.msra.mxu0 0.0
  %2542 = vmatpush.msra.mxu0 0.0
  %2543 = vmatpush.msra.mxu0 0.0
  %2544 = vmatpush.msra.mxu0 %v2444
  %2545 = vmatmul.f32.gmra.mxu0 %v2429
  %v2546 = vpop.f32.mrf.mxu0
  %v2547 = vadd.f32 0.0, %v2546
  %2548 = vdwg.mxu0
  %2549 = vmatpush.msra.mxu0 0.0
  %2550 = vmatpush.msra.mxu0 0.0
  %2551 = vmatpush.msra.mxu0 0.0
  %2552 = vmatpush.msra.mxu0 0.0
  %2553 = vmatpush.msra.mxu0 0.0
  %2554 = vmatpush.msra.mxu0 0.0
  %2555 = vmatpush.msra.mxu0 0.0
  %2556 = vmatpush.msra.mxu0 0.0
  %2557 = vmatpush.msra.mxu0 0.0
  %2558 = vmatpush.msra.mxu0 0.0
  %2559 = vmatpush.msra.mxu0 0.0
  %2560 = vmatpush.msra.mxu0 0.0
  %2561 = vmatpush.msra.mxu0 0.0
  %2562 = vmatpush.msra.mxu0 0.0
  %2563 = vmatpush.msra.mxu0 0.0
  %2564 = vmatpush.msra.mxu0 %v2447
  %2565 = vmatmul.f32.gmra.mxu0 %v2429
  %v2566 = vpop.f32.mrf.mxu0
  %v2567 = vadd.f32 0.0, %v2566
  %2568 = vdwg.mxu0
  %v2569 = vadd.f32 %v2420, %v2467
  %v2570 = vadd.f32 %v2421, %v2487
  %v2571 = vadd.f32 %v2422, %v2507
  %v2572 = vadd.f32 %v2423, %v2527
  %v2573 = vadd.f32 %v2424, %v2547
  %v2574 = vadd.f32 %v2425, %v2567
  %2575 = vrot.lane.b32.xlu0 %v1765, 127
  %v2576 = vpop.permute.xlu0 %2575
  %2577 = vrot.lane.b32.xlu0 %v1766, 127
  %v2578 = vpop.permute.xlu0 %2577
  %2579 = vrot.lane.b32.xlu0 %v1767, 127
  %v2580 = vpop.permute.xlu0 %2579
  %2581 = vrot.lane.b32.xlu0 %v1768, 127
  %v2582 = vpop.permute.xlu0 %2581
  %2583 = vrot.lane.b32.xlu0 %v1769, 127
  %v2584 = vpop.permute.xlu0 %2583
  %2585 = vrot.lane.b32.xlu0 %v1770, 127
  %v2586 = vpop.permute.xlu0 %2585
  %v2587 = vsel %vm941, %v2584, %v2586
  %v2588 = vsel %vm941, %v2582, %v2584
  %v2589 = vsel %vm941, %v2580, %v2582
  %v2590 = vsel %vm941, %v2578, %v2580
  %v2591 = vsel %vm941, %v2576, %v2578
  %v2592 = vsel %vm941, %v2586, %v2576
  %s2593 = scalar_lea.vmem %s2, 20
  %v2594 = vld [vmem:[%s2593] sm:$0xf]
  %v2596 = vsel %vm104, %v2594, 0
  %v2599 = vsel %vm108, %v2591, 0
  %v2602 = vsel %vm108, %v2590, 0
  %v2605 = vsel %vm108, %v2589, 0
  %v2608 = vsel %vm108, %v2588, 0
  %v2611 = vsel %vm108, %v2587, 0
  %v2614 = vsel %vm108, %v2592, 0
  %2616 = vmatpush.msra.mxu0 0.0
  %2617 = vmatpush.msra.mxu0 0.0
  %2618 = vmatpush.msra.mxu0 0.0
  %2619 = vmatpush.msra.mxu0 0.0
  %2620 = vmatpush.msra.mxu0 0.0
  %2621 = vmatpush.msra.mxu0 0.0
  %2622 = vmatpush.msra.mxu0 0.0
  %2623 = vmatpush.msra.mxu0 0.0
  %2624 = vmatpush.msra.mxu0 0.0
  %2625 = vmatpush.msra.mxu0 0.0
  %2626 = vmatpush.msra.mxu0 0.0
  %2627 = vmatpush.msra.mxu0 0.0
  %2628 = vmatpush.msra.mxu0 0.0
  %2629 = vmatpush.msra.mxu0 0.0
  %2630 = vmatpush.msra.mxu0 0.0
  %2631 = vmatpush.msra.mxu0 %v2599
  %2632 = vmatmul.f32.gmra.mxu0 %v2596
  %v2633 = vpop.f32.mrf.mxu0
  %v2634 = vadd.f32 0.0, %v2633
  %2635 = vdwg.mxu0
  %2636 = vmatpush.msra.mxu0 0.0
  %2637 = vmatpush.msra.mxu0 0.0
  %2638 = vmatpush.msra.mxu0 0.0
  %2639 = vmatpush.msra.mxu0 0.0
  %2640 = vmatpush.msra.mxu0 0.0
  %2641 = vmatpush.msra.mxu0 0.0
  %2642 = vmatpush.msra.mxu0 0.0
  %2643 = vmatpush.msra.mxu0 0.0
  %2644 = vmatpush.msra.mxu0 0.0
  %2645 = vmatpush.msra.mxu0 0.0
  %2646 = vmatpush.msra.mxu0 0.0
  %2647 = vmatpush.msra.mxu0 0.0
  %2648 = vmatpush.msra.mxu0 0.0
  %2649 = vmatpush.msra.mxu0 0.0
  %2650 = vmatpush.msra.mxu0 0.0
  %2651 = vmatpush.msra.mxu0 %v2602
  %2652 = vmatmul.f32.gmra.mxu0 %v2596
  %v2653 = vpop.f32.mrf.mxu0
  %v2654 = vadd.f32 0.0, %v2653
  %2655 = vdwg.mxu0
  %2656 = vmatpush.msra.mxu0 0.0
  %2657 = vmatpush.msra.mxu0 0.0
  %2658 = vmatpush.msra.mxu0 0.0
  %2659 = vmatpush.msra.mxu0 0.0
  %2660 = vmatpush.msra.mxu0 0.0
  %2661 = vmatpush.msra.mxu0 0.0
  %2662 = vmatpush.msra.mxu0 0.0
  %2663 = vmatpush.msra.mxu0 0.0
  %2664 = vmatpush.msra.mxu0 0.0
  %2665 = vmatpush.msra.mxu0 0.0
  %2666 = vmatpush.msra.mxu0 0.0
  %2667 = vmatpush.msra.mxu0 0.0
  %2668 = vmatpush.msra.mxu0 0.0
  %2669 = vmatpush.msra.mxu0 0.0
  %2670 = vmatpush.msra.mxu0 0.0
  %2671 = vmatpush.msra.mxu0 %v2605
  %2672 = vmatmul.f32.gmra.mxu0 %v2596
  %v2673 = vpop.f32.mrf.mxu0
  %v2674 = vadd.f32 0.0, %v2673
  %2675 = vdwg.mxu0
  %2676 = vmatpush.msra.mxu0 0.0
  %2677 = vmatpush.msra.mxu0 0.0
  %2678 = vmatpush.msra.mxu0 0.0
  %2679 = vmatpush.msra.mxu0 0.0
  %2680 = vmatpush.msra.mxu0 0.0
  %2681 = vmatpush.msra.mxu0 0.0
  %2682 = vmatpush.msra.mxu0 0.0
  %2683 = vmatpush.msra.mxu0 0.0
  %2684 = vmatpush.msra.mxu0 0.0
  %2685 = vmatpush.msra.mxu0 0.0
  %2686 = vmatpush.msra.mxu0 0.0
  %2687 = vmatpush.msra.mxu0 0.0
  %2688 = vmatpush.msra.mxu0 0.0
  %2689 = vmatpush.msra.mxu0 0.0
  %2690 = vmatpush.msra.mxu0 0.0
  %2691 = vmatpush.msra.mxu0 %v2608
  %2692 = vmatmul.f32.gmra.mxu0 %v2596
  %v2693 = vpop.f32.mrf.mxu0
  %v2694 = vadd.f32 0.0, %v2693
  %2695 = vdwg.mxu0
  %2696 = vmatpush.msra.mxu0 0.0
  %2697 = vmatpush.msra.mxu0 0.0
  %2698 = vmatpush.msra.mxu0 0.0
  %2699 = vmatpush.msra.mxu0 0.0
  %2700 = vmatpush.msra.mxu0 0.0
  %2701 = vmatpush.msra.mxu0 0.0
  %2702 = vmatpush.msra.mxu0 0.0
  %2703 = vmatpush.msra.mxu0 0.0
  %2704 = vmatpush.msra.mxu0 0.0
  %2705 = vmatpush.msra.mxu0 0.0
  %2706 = vmatpush.msra.mxu0 0.0
  %2707 = vmatpush.msra.mxu0 0.0
  %2708 = vmatpush.msra.mxu0 0.0
  %2709 = vmatpush.msra.mxu0 0.0
  %2710 = vmatpush.msra.mxu0 0.0
  %2711 = vmatpush.msra.mxu0 %v2611
  %2712 = vmatmul.f32.gmra.mxu0 %v2596
  %v2713 = vpop.f32.mrf.mxu0
  %v2714 = vadd.f32 0.0, %v2713
  %2715 = vdwg.mxu0
  %2716 = vmatpush.msra.mxu0 0.0
  %2717 = vmatpush.msra.mxu0 0.0
  %2718 = vmatpush.msra.mxu0 0.0
  %2719 = vmatpush.msra.mxu0 0.0
  %2720 = vmatpush.msra.mxu0 0.0
  %2721 = vmatpush.msra.mxu0 0.0
  %2722 = vmatpush.msra.mxu0 0.0
  %2723 = vmatpush.msra.mxu0 0.0
  %2724 = vmatpush.msra.mxu0 0.0
  %2725 = vmatpush.msra.mxu0 0.0
  %2726 = vmatpush.msra.mxu0 0.0
  %2727 = vmatpush.msra.mxu0 0.0
  %2728 = vmatpush.msra.mxu0 0.0
  %2729 = vmatpush.msra.mxu0 0.0
  %2730 = vmatpush.msra.mxu0 0.0
  %2731 = vmatpush.msra.mxu0 %v2614
  %2732 = vmatmul.f32.gmra.mxu0 %v2596
  %v2733 = vpop.f32.mrf.mxu0
  %v2734 = vadd.f32 0.0, %v2733
  %2735 = vdwg.mxu0
  %v2736 = vadd.f32 %v2569, %v2634
  %v2737 = vadd.f32 %v2570, %v2654
  %v2738 = vadd.f32 %v2571, %v2674
  %v2739 = vadd.f32 %v2572, %v2694
  %v2740 = vadd.f32 %v2573, %v2714
  %v2741 = vadd.f32 %v2574, %v2734
  %2742 = vrot.lane.b32.xlu0 %v1765, 111
  %v2743 = vpop.permute.xlu0 %2742
  %2744 = vrot.lane.b32.xlu0 %v1766, 111
  %v2745 = vpop.permute.xlu0 %2744
  %2746 = vrot.lane.b32.xlu0 %v1767, 111
  %v2747 = vpop.permute.xlu0 %2746
  %2748 = vrot.lane.b32.xlu0 %v1768, 111
  %v2749 = vpop.permute.xlu0 %2748
  %2750 = vrot.lane.b32.xlu0 %v1769, 111
  %v2751 = vpop.permute.xlu0 %2750
  %2752 = vrot.lane.b32.xlu0 %v1770, 111
  %v2753 = vpop.permute.xlu0 %2752
  %v2754 = vsel %vm1126, %v2751, %v2753
  %v2755 = vsel %vm1126, %v2749, %v2751
  %v2756 = vsel %vm1126, %v2747, %v2749
  %v2757 = vsel %vm1126, %v2745, %v2747
  %v2758 = vsel %vm1126, %v2743, %v2745
  %v2759 = vsel %vm1126, %v2753, %v2743
  %s2760 = scalar_lea.vmem %s2, 24
  %v2761 = vld [vmem:[%s2760] sm:$0xf]
  %v2763 = vsel %vm104, %v2761, 0
  %v2766 = vsel %vm108, %v2758, 0
  %v2769 = vsel %vm108, %v2757, 0
  %v2772 = vsel %vm108, %v2756, 0
  %v2775 = vsel %vm108, %v2755, 0
  %v2778 = vsel %vm108, %v2754, 0
  %v2781 = vsel %vm108, %v2759, 0
  %2783 = vmatpush.msra.mxu0 0.0
  %2784 = vmatpush.msra.mxu0 0.0
  %2785 = vmatpush.msra.mxu0 0.0
  %2786 = vmatpush.msra.mxu0 0.0
  %2787 = vmatpush.msra.mxu0 0.0
  %2788 = vmatpush.msra.mxu0 0.0
  %2789 = vmatpush.msra.mxu0 0.0
  %2790 = vmatpush.msra.mxu0 0.0
  %2791 = vmatpush.msra.mxu0 0.0
  %2792 = vmatpush.msra.mxu0 0.0
  %2793 = vmatpush.msra.mxu0 0.0
  %2794 = vmatpush.msra.mxu0 0.0
  %2795 = vmatpush.msra.mxu0 0.0
  %2796 = vmatpush.msra.mxu0 0.0
  %2797 = vmatpush.msra.mxu0 0.0
  %2798 = vmatpush.msra.mxu0 %v2766
  %2799 = vmatmul.f32.gmra.mxu0 %v2763
  %v2800 = vpop.f32.mrf.mxu0
  %v2801 = vadd.f32 0.0, %v2800
  %2802 = vdwg.mxu0
  %2803 = vmatpush.msra.mxu0 0.0
  %2804 = vmatpush.msra.mxu0 0.0
  %2805 = vmatpush.msra.mxu0 0.0
  %2806 = vmatpush.msra.mxu0 0.0
  %2807 = vmatpush.msra.mxu0 0.0
  %2808 = vmatpush.msra.mxu0 0.0
  %2809 = vmatpush.msra.mxu0 0.0
  %2810 = vmatpush.msra.mxu0 0.0
  %2811 = vmatpush.msra.mxu0 0.0
  %2812 = vmatpush.msra.mxu0 0.0
  %2813 = vmatpush.msra.mxu0 0.0
  %2814 = vmatpush.msra.mxu0 0.0
  %2815 = vmatpush.msra.mxu0 0.0
  %2816 = vmatpush.msra.mxu0 0.0
  %2817 = vmatpush.msra.mxu0 0.0
  %2818 = vmatpush.msra.mxu0 %v2769
  %2819 = vmatmul.f32.gmra.mxu0 %v2763
  %v2820 = vpop.f32.mrf.mxu0
  %v2821 = vadd.f32 0.0, %v2820
  %2822 = vdwg.mxu0
  %2823 = vmatpush.msra.mxu0 0.0
  %2824 = vmatpush.msra.mxu0 0.0
  %2825 = vmatpush.msra.mxu0 0.0
  %2826 = vmatpush.msra.mxu0 0.0
  %2827 = vmatpush.msra.mxu0 0.0
  %2828 = vmatpush.msra.mxu0 0.0
  %2829 = vmatpush.msra.mxu0 0.0
  %2830 = vmatpush.msra.mxu0 0.0
  %2831 = vmatpush.msra.mxu0 0.0
  %2832 = vmatpush.msra.mxu0 0.0
  %2833 = vmatpush.msra.mxu0 0.0
  %2834 = vmatpush.msra.mxu0 0.0
  %2835 = vmatpush.msra.mxu0 0.0
  %2836 = vmatpush.msra.mxu0 0.0
  %2837 = vmatpush.msra.mxu0 0.0
  %2838 = vmatpush.msra.mxu0 %v2772
  %2839 = vmatmul.f32.gmra.mxu0 %v2763
  %v2840 = vpop.f32.mrf.mxu0
  %v2841 = vadd.f32 0.0, %v2840
  %2842 = vdwg.mxu0
  %2843 = vmatpush.msra.mxu0 0.0
  %2844 = vmatpush.msra.mxu0 0.0
  %2845 = vmatpush.msra.mxu0 0.0
  %2846 = vmatpush.msra.mxu0 0.0
  %2847 = vmatpush.msra.mxu0 0.0
  %2848 = vmatpush.msra.mxu0 0.0
  %2849 = vmatpush.msra.mxu0 0.0
  %2850 = vmatpush.msra.mxu0 0.0
  %2851 = vmatpush.msra.mxu0 0.0
  %2852 = vmatpush.msra.mxu0 0.0
  %2853 = vmatpush.msra.mxu0 0.0
  %2854 = vmatpush.msra.mxu0 0.0
  %2855 = vmatpush.msra.mxu0 0.0
  %2856 = vmatpush.msra.mxu0 0.0
  %2857 = vmatpush.msra.mxu0 0.0
  %2858 = vmatpush.msra.mxu0 %v2775
  %2859 = vmatmul.f32.gmra.mxu0 %v2763
  %v2860 = vpop.f32.mrf.mxu0
  %v2861 = vadd.f32 0.0, %v2860
  %2862 = vdwg.mxu0
  %2863 = vmatpush.msra.mxu0 0.0
  %2864 = vmatpush.msra.mxu0 0.0
  %2865 = vmatpush.msra.mxu0 0.0
  %2866 = vmatpush.msra.mxu0 0.0
  %2867 = vmatpush.msra.mxu0 0.0
  %2868 = vmatpush.msra.mxu0 0.0
  %2869 = vmatpush.msra.mxu0 0.0
  %2870 = vmatpush.msra.mxu0 0.0
  %2871 = vmatpush.msra.mxu0 0.0
  %2872 = vmatpush.msra.mxu0 0.0
  %2873 = vmatpush.msra.mxu0 0.0
  %2874 = vmatpush.msra.mxu0 0.0
  %2875 = vmatpush.msra.mxu0 0.0
  %2876 = vmatpush.msra.mxu0 0.0
  %2877 = vmatpush.msra.mxu0 0.0
  %2878 = vmatpush.msra.mxu0 %v2778
  %2879 = vmatmul.f32.gmra.mxu0 %v2763
  %v2880 = vpop.f32.mrf.mxu0
  %v2881 = vadd.f32 0.0, %v2880
  %2882 = vdwg.mxu0
  %2883 = vmatpush.msra.mxu0 0.0
  %2884 = vmatpush.msra.mxu0 0.0
  %2885 = vmatpush.msra.mxu0 0.0
  %2886 = vmatpush.msra.mxu0 0.0
  %2887 = vmatpush.msra.mxu0 0.0
  %2888 = vmatpush.msra.mxu0 0.0
  %2889 = vmatpush.msra.mxu0 0.0
  %2890 = vmatpush.msra.mxu0 0.0
  %2891 = vmatpush.msra.mxu0 0.0
  %2892 = vmatpush.msra.mxu0 0.0
  %2893 = vmatpush.msra.mxu0 0.0
  %2894 = vmatpush.msra.mxu0 0.0
  %2895 = vmatpush.msra.mxu0 0.0
  %2896 = vmatpush.msra.mxu0 0.0
  %2897 = vmatpush.msra.mxu0 0.0
  %2898 = vmatpush.msra.mxu0 %v2781
  %2899 = vmatmul.f32.gmra.mxu0 %v2763
  %v2900 = vpop.f32.mrf.mxu0
  %v2901 = vadd.f32 0.0, %v2900
  %2902 = vdwg.mxu0
  %v2903 = vadd.f32 %v2736, %v2801
  %v2904 = vadd.f32 %v2737, %v2821
  %v2905 = vadd.f32 %v2738, %v2841
  %v2906 = vadd.f32 %v2739, %v2861
  %v2907 = vadd.f32 %v2740, %v2881
  %v2908 = vadd.f32 %v2741, %v2901
  %2909 = vrot.lane.b32.xlu0 %v1765, 110
  %v2910 = vpop.permute.xlu0 %2909
  %2911 = vrot.lane.b32.xlu0 %v1766, 110
  %v2912 = vpop.permute.xlu0 %2911
  %2913 = vrot.lane.b32.xlu0 %v1767, 110
  %v2914 = vpop.permute.xlu0 %2913
  %2915 = vrot.lane.b32.xlu0 %v1768, 110
  %v2916 = vpop.permute.xlu0 %2915
  %2917 = vrot.lane.b32.xlu0 %v1769, 110
  %v2918 = vpop.permute.xlu0 %2917
  %2919 = vrot.lane.b32.xlu0 %v1770, 110
  %v2920 = vpop.permute.xlu0 %2919
  %v2921 = vsel %vm1311, %v2918, %v2920
  %v2922 = vsel %vm1311, %v2916, %v2918
  %v2923 = vsel %vm1311, %v2914, %v2916
  %v2924 = vsel %vm1311, %v2912, %v2914
  %v2925 = vsel %vm1311, %v2910, %v2912
  %v2926 = vsel %vm1311, %v2920, %v2910
  %s2927 = scalar_lea.vmem %s2, 28
  %v2928 = vld [vmem:[%s2927] sm:$0xf]
  %v2930 = vsel %vm104, %v2928, 0
  %v2933 = vsel %vm108, %v2925, 0
  %v2936 = vsel %vm108, %v2924, 0
  %v2939 = vsel %vm108, %v2923, 0
  %v2942 = vsel %vm108, %v2922, 0
  %v2945 = vsel %vm108, %v2921, 0
  %v2948 = vsel %vm108, %v2926, 0
  %2950 = vmatpush.msra.mxu0 0.0
  %2951 = vmatpush.msra.mxu0 0.0
  %2952 = vmatpush.msra.mxu0 0.0
  %2953 = vmatpush.msra.mxu0 0.0
  %2954 = vmatpush.msra.mxu0 0.0
  %2955 = vmatpush.msra.mxu0 0.0
  %2956 = vmatpush.msra.mxu0 0.0
  %2957 = vmatpush.msra.mxu0 0.0
  %2958 = vmatpush.msra.mxu0 0.0
  %2959 = vmatpush.msra.mxu0 0.0
  %2960 = vmatpush.msra.mxu0 0.0
  %2961 = vmatpush.msra.mxu0 0.0
  %2962 = vmatpush.msra.mxu0 0.0
  %2963 = vmatpush.msra.mxu0 0.0
  %2964 = vmatpush.msra.mxu0 0.0
  %2965 = vmatpush.msra.mxu0 %v2933
  %2966 = vmatmul.f32.gmra.mxu0 %v2930
  %v2967 = vpop.f32.mrf.mxu0
  %v2968 = vadd.f32 0.0, %v2967
  %2969 = vdwg.mxu0
  %2970 = vmatpush.msra.mxu0 0.0
  %2971 = vmatpush.msra.mxu0 0.0
  %2972 = vmatpush.msra.mxu0 0.0
  %2973 = vmatpush.msra.mxu0 0.0
  %2974 = vmatpush.msra.mxu0 0.0
  %2975 = vmatpush.msra.mxu0 0.0
  %2976 = vmatpush.msra.mxu0 0.0
  %2977 = vmatpush.msra.mxu0 0.0
  %2978 = vmatpush.msra.mxu0 0.0
  %2979 = vmatpush.msra.mxu0 0.0
  %2980 = vmatpush.msra.mxu0 0.0
  %2981 = vmatpush.msra.mxu0 0.0
  %2982 = vmatpush.msra.mxu0 0.0
  %2983 = vmatpush.msra.mxu0 0.0
  %2984 = vmatpush.msra.mxu0 0.0
  %2985 = vmatpush.msra.mxu0 %v2936
  %2986 = vmatmul.f32.gmra.mxu0 %v2930
  %v2987 = vpop.f32.mrf.mxu0
  %v2988 = vadd.f32 0.0, %v2987
  %2989 = vdwg.mxu0
  %2990 = vmatpush.msra.mxu0 0.0
  %2991 = vmatpush.msra.mxu0 0.0
  %2992 = vmatpush.msra.mxu0 0.0
  %2993 = vmatpush.msra.mxu0 0.0
  %2994 = vmatpush.msra.mxu0 0.0
  %2995 = vmatpush.msra.mxu0 0.0
  %2996 = vmatpush.msra.mxu0 0.0
  %2997 = vmatpush.msra.mxu0 0.0
  %2998 = vmatpush.msra.mxu0 0.0
  %2999 = vmatpush.msra.mxu0 0.0
  %3000 = vmatpush.msra.mxu0 0.0
  %3001 = vmatpush.msra.mxu0 0.0
  %3002 = vmatpush.msra.mxu0 0.0
  %3003 = vmatpush.msra.mxu0 0.0
  %3004 = vmatpush.msra.mxu0 0.0
  %3005 = vmatpush.msra.mxu0 %v2939
  %3006 = vmatmul.f32.gmra.mxu0 %v2930
  %v3007 = vpop.f32.mrf.mxu0
  %v3008 = vadd.f32 0.0, %v3007
  %3009 = vdwg.mxu0
  %3010 = vmatpush.msra.mxu0 0.0
  %3011 = vmatpush.msra.mxu0 0.0
  %3012 = vmatpush.msra.mxu0 0.0
  %3013 = vmatpush.msra.mxu0 0.0
  %3014 = vmatpush.msra.mxu0 0.0
  %3015 = vmatpush.msra.mxu0 0.0
  %3016 = vmatpush.msra.mxu0 0.0
  %3017 = vmatpush.msra.mxu0 0.0
  %3018 = vmatpush.msra.mxu0 0.0
  %3019 = vmatpush.msra.mxu0 0.0
  %3020 = vmatpush.msra.mxu0 0.0
  %3021 = vmatpush.msra.mxu0 0.0
  %3022 = vmatpush.msra.mxu0 0.0
  %3023 = vmatpush.msra.mxu0 0.0
  %3024 = vmatpush.msra.mxu0 0.0
  %3025 = vmatpush.msra.mxu0 %v2942
  %3026 = vmatmul.f32.gmra.mxu0 %v2930
  %v3027 = vpop.f32.mrf.mxu0
  %v3028 = vadd.f32 0.0, %v3027
  %3029 = vdwg.mxu0
  %3030 = vmatpush.msra.mxu0 0.0
  %3031 = vmatpush.msra.mxu0 0.0
  %3032 = vmatpush.msra.mxu0 0.0
  %3033 = vmatpush.msra.mxu0 0.0
  %3034 = vmatpush.msra.mxu0 0.0
  %3035 = vmatpush.msra.mxu0 0.0
  %3036 = vmatpush.msra.mxu0 0.0
  %3037 = vmatpush.msra.mxu0 0.0
  %3038 = vmatpush.msra.mxu0 0.0
  %3039 = vmatpush.msra.mxu0 0.0
  %3040 = vmatpush.msra.mxu0 0.0
  %3041 = vmatpush.msra.mxu0 0.0
  %3042 = vmatpush.msra.mxu0 0.0
  %3043 = vmatpush.msra.mxu0 0.0
  %3044 = vmatpush.msra.mxu0 0.0
  %3045 = vmatpush.msra.mxu0 %v2945
  %3046 = vmatmul.f32.gmra.mxu0 %v2930
  %v3047 = vpop.f32.mrf.mxu0
  %v3048 = vadd.f32 0.0, %v3047
  %3049 = vdwg.mxu0
  %3050 = vmatpush.msra.mxu0 0.0
  %3051 = vmatpush.msra.mxu0 0.0
  %3052 = vmatpush.msra.mxu0 0.0
  %3053 = vmatpush.msra.mxu0 0.0
  %3054 = vmatpush.msra.mxu0 0.0
  %3055 = vmatpush.msra.mxu0 0.0
  %3056 = vmatpush.msra.mxu0 0.0
  %3057 = vmatpush.msra.mxu0 0.0
  %3058 = vmatpush.msra.mxu0 0.0
  %3059 = vmatpush.msra.mxu0 0.0
  %3060 = vmatpush.msra.mxu0 0.0
  %3061 = vmatpush.msra.mxu0 0.0
  %3062 = vmatpush.msra.mxu0 0.0
  %3063 = vmatpush.msra.mxu0 0.0
  %3064 = vmatpush.msra.mxu0 0.0
  %3065 = vmatpush.msra.mxu0 %v2948
  %3066 = vmatmul.f32.gmra.mxu0 %v2930
  %v3067 = vpop.f32.mrf.mxu0
  %v3068 = vadd.f32 0.0, %v3067
  %3069 = vdwg.mxu0
  %v3070 = vadd.f32 %v2903, %v2968
  %v3071 = vadd.f32 %v2904, %v2988
  %v3072 = vadd.f32 %v2905, %v3008
  %v3073 = vadd.f32 %v2906, %v3028
  %v3074 = vadd.f32 %v2907, %v3048
  %v3075 = vadd.f32 %v2908, %v3068
  %3076 = vrot.lane.b32.xlu0 %v1765, 109
  %v3077 = vpop.permute.xlu0 %3076
  %3078 = vrot.lane.b32.xlu0 %v1766, 109
  %v3079 = vpop.permute.xlu0 %3078
  %3080 = vrot.lane.b32.xlu0 %v1767, 109
  %v3081 = vpop.permute.xlu0 %3080
  %3082 = vrot.lane.b32.xlu0 %v1768, 109
  %v3083 = vpop.permute.xlu0 %3082
  %3084 = vrot.lane.b32.xlu0 %v1769, 109
  %v3085 = vpop.permute.xlu0 %3084
  %3086 = vrot.lane.b32.xlu0 %v1770, 109
  %v3087 = vpop.permute.xlu0 %3086
  %v3088 = vsel %vm1496, %v3085, %v3087
  %v3089 = vsel %vm1496, %v3083, %v3085
  %v3090 = vsel %vm1496, %v3081, %v3083
  %v3091 = vsel %vm1496, %v3079, %v3081
  %v3092 = vsel %vm1496, %v3077, %v3079
  %v3093 = vsel %vm1496, %v3087, %v3077
  %s3094 = scalar_lea.vmem %s2, 32
  %v3095 = vld [vmem:[%s3094] sm:$0xf]
  %v3097 = vsel %vm104, %v3095, 0
  %v3100 = vsel %vm108, %v3092, 0
  %v3103 = vsel %vm108, %v3091, 0
  %v3106 = vsel %vm108, %v3090, 0
  %v3109 = vsel %vm108, %v3089, 0
  %v3112 = vsel %vm108, %v3088, 0
  %v3115 = vsel %vm108, %v3093, 0
  %3117 = vmatpush.msra.mxu0 0.0
  %3118 = vmatpush.msra.mxu0 0.0
  %3119 = vmatpush.msra.mxu0 0.0
  %3120 = vmatpush.msra.mxu0 0.0
  %3121 = vmatpush.msra.mxu0 0.0
  %3122 = vmatpush.msra.mxu0 0.0
  %3123 = vmatpush.msra.mxu0 0.0
  %3124 = vmatpush.msra.mxu0 0.0
  %3125 = vmatpush.msra.mxu0 0.0
  %3126 = vmatpush.msra.mxu0 0.0
  %3127 = vmatpush.msra.mxu0 0.0
  %3128 = vmatpush.msra.mxu0 0.0
  %3129 = vmatpush.msra.mxu0 0.0
  %3130 = vmatpush.msra.mxu0 0.0
  %3131 = vmatpush.msra.mxu0 0.0
  %3132 = vmatpush.msra.mxu0 %v3100
  %3133 = vmatmul.f32.gmra.mxu0 %v3097
  %v3134 = vpop.f32.mrf.mxu0
  %v3135 = vadd.f32 0.0, %v3134
  %3136 = vdwg.mxu0
  %3137 = vmatpush.msra.mxu0 0.0
  %3138 = vmatpush.msra.mxu0 0.0
  %3139 = vmatpush.msra.mxu0 0.0
  %3140 = vmatpush.msra.mxu0 0.0
  %3141 = vmatpush.msra.mxu0 0.0
  %3142 = vmatpush.msra.mxu0 0.0
  %3143 = vmatpush.msra.mxu0 0.0
  %3144 = vmatpush.msra.mxu0 0.0
  %3145 = vmatpush.msra.mxu0 0.0
  %3146 = vmatpush.msra.mxu0 0.0
  %3147 = vmatpush.msra.mxu0 0.0
  %3148 = vmatpush.msra.mxu0 0.0
  %3149 = vmatpush.msra.mxu0 0.0
  %3150 = vmatpush.msra.mxu0 0.0
  %3151 = vmatpush.msra.mxu0 0.0
  %3152 = vmatpush.msra.mxu0 %v3103
  %3153 = vmatmul.f32.gmra.mxu0 %v3097
  %v3154 = vpop.f32.mrf.mxu0
  %v3155 = vadd.f32 0.0, %v3154
  %3156 = vdwg.mxu0
  %3157 = vmatpush.msra.mxu0 0.0
  %3158 = vmatpush.msra.mxu0 0.0
  %3159 = vmatpush.msra.mxu0 0.0
  %3160 = vmatpush.msra.mxu0 0.0
  %3161 = vmatpush.msra.mxu0 0.0
  %3162 = vmatpush.msra.mxu0 0.0
  %3163 = vmatpush.msra.mxu0 0.0
  %3164 = vmatpush.msra.mxu0 0.0
  %3165 = vmatpush.msra.mxu0 0.0
  %3166 = vmatpush.msra.mxu0 0.0
  %3167 = vmatpush.msra.mxu0 0.0
  %3168 = vmatpush.msra.mxu0 0.0
  %3169 = vmatpush.msra.mxu0 0.0
  %3170 = vmatpush.msra.mxu0 0.0
  %3171 = vmatpush.msra.mxu0 0.0
  %3172 = vmatpush.msra.mxu0 %v3106
  %3173 = vmatmul.f32.gmra.mxu0 %v3097
  %v3174 = vpop.f32.mrf.mxu0
  %v3175 = vadd.f32 0.0, %v3174
  %3176 = vdwg.mxu0
  %3177 = vmatpush.msra.mxu0 0.0
  %3178 = vmatpush.msra.mxu0 0.0
  %3179 = vmatpush.msra.mxu0 0.0
  %3180 = vmatpush.msra.mxu0 0.0
  %3181 = vmatpush.msra.mxu0 0.0
  %3182 = vmatpush.msra.mxu0 0.0
  %3183 = vmatpush.msra.mxu0 0.0
  %3184 = vmatpush.msra.mxu0 0.0
  %3185 = vmatpush.msra.mxu0 0.0
  %3186 = vmatpush.msra.mxu0 0.0
  %3187 = vmatpush.msra.mxu0 0.0
  %3188 = vmatpush.msra.mxu0 0.0
  %3189 = vmatpush.msra.mxu0 0.0
  %3190 = vmatpush.msra.mxu0 0.0
  %3191 = vmatpush.msra.mxu0 0.0
  %3192 = vmatpush.msra.mxu0 %v3109
  %3193 = vmatmul.f32.gmra.mxu0 %v3097
  %v3194 = vpop.f32.mrf.mxu0
  %v3195 = vadd.f32 0.0, %v3194
  %3196 = vdwg.mxu0
  %3197 = vmatpush.msra.mxu0 0.0
  %3198 = vmatpush.msra.mxu0 0.0
  %3199 = vmatpush.msra.mxu0 0.0
  %3200 = vmatpush.msra.mxu0 0.0
  %3201 = vmatpush.msra.mxu0 0.0
  %3202 = vmatpush.msra.mxu0 0.0
  %3203 = vmatpush.msra.mxu0 0.0
  %3204 = vmatpush.msra.mxu0 0.0
  %3205 = vmatpush.msra.mxu0 0.0
  %3206 = vmatpush.msra.mxu0 0.0
  %3207 = vmatpush.msra.mxu0 0.0
  %3208 = vmatpush.msra.mxu0 0.0
  %3209 = vmatpush.msra.mxu0 0.0
  %3210 = vmatpush.msra.mxu0 0.0
  %3211 = vmatpush.msra.mxu0 0.0
  %3212 = vmatpush.msra.mxu0 %v3112
  %3213 = vmatmul.f32.gmra.mxu0 %v3097
  %v3214 = vpop.f32.mrf.mxu0
  %v3215 = vadd.f32 0.0, %v3214
  %3216 = vdwg.mxu0
  %3217 = vmatpush.msra.mxu0 0.0
  %3218 = vmatpush.msra.mxu0 0.0
  %3219 = vmatpush.msra.mxu0 0.0
  %3220 = vmatpush.msra.mxu0 0.0
  %3221 = vmatpush.msra.mxu0 0.0
  %3222 = vmatpush.msra.mxu0 0.0
  %3223 = vmatpush.msra.mxu0 0.0
  %3224 = vmatpush.msra.mxu0 0.0
  %3225 = vmatpush.msra.mxu0 0.0
  %3226 = vmatpush.msra.mxu0 0.0
  %3227 = vmatpush.msra.mxu0 0.0
  %3228 = vmatpush.msra.mxu0 0.0
  %3229 = vmatpush.msra.mxu0 0.0
  %3230 = vmatpush.msra.mxu0 0.0
  %3231 = vmatpush.msra.mxu0 0.0
  %3232 = vmatpush.msra.mxu0 %v3115
  %3233 = vmatmul.f32.gmra.mxu0 %v3097
  %v3234 = vpop.f32.mrf.mxu0
  %v3235 = vadd.f32 0.0, %v3234
  %3236 = vdwg.mxu0
  %v3237 = vadd.f32 %v3070, %v3135
  %v3238 = vadd.f32 %v3071, %v3155
  %v3239 = vadd.f32 %v3072, %v3175
  %v3240 = vadd.f32 %v3073, %v3195
  %v3241 = vadd.f32 %v3074, %v3215
  %v3242 = vadd.f32 %v3075, %v3235
  %s3243 = scalar_lea.vmem %s3, 8
  %v3244 = vld [vmem:[%s3243] sm:$0xf]
  %s3245 = scalar_lea.vmem %s3, 12
  %v3246 = vld [vmem:[%s3245] sm:$0xf]
  %v3247 = vmul.f32 %v3237, %v1656
  %v3248 = vmul.f32 %v3238, %v1657
  %v3249 = vmul.f32 %v3239, %v1658
  %v3250 = vmul.f32 %v3240, %v1659
  %v3251 = vmul.f32 %v3241, %v1660
  %v3252 = vmul.f32 %v3242, %v1661
  %v3253 = vsel %vm108, %v3247, 0.0
  %v3254 = vsel %vm108, %v3248, 0.0
  %v3255 = vadd.f32 %v3253, %v3254
  %v3256 = vsel %vm108, %v3249, 0.0
  %v3257 = vadd.f32 %v3255, %v3256
  %v3258 = vsel %vm108, %v3250, 0.0
  %v3259 = vadd.f32 %v3257, %v3258
  %v3260 = vsel %vm108, %v3251, 0.0
  %v3261 = vadd.f32 %v3259, %v3260
  %v3262 = vsel %vm108, %v3252, 0.0
  %v3263 = vadd.f32 %v3261, %v3262
  %3264 = vadd.xlane.f32.xlu0 %v3263
  %v3265 = vpop.xlane.xlu0 %3264
  %v3266 = vmul.f32 %v3265, 0.001953125
  %v3267 = vsub.f32 %v3237, %v3266
  %v3268 = vsub.f32 %v3238, %v3266
  %v3269 = vsub.f32 %v3239, %v3266
  %v3270 = vsub.f32 %v3240, %v3266
  %v3271 = vsub.f32 %v3241, %v3266
  %v3272 = vsub.f32 %v3242, %v3266
  %v3273 = vmul.f32 %v3267, %v1656
  %v3274 = vmul.f32 %v3268, %v1657
  %v3275 = vmul.f32 %v3269, %v1658
  %v3276 = vmul.f32 %v3270, %v1659
  %v3277 = vmul.f32 %v3271, %v1660
  %v3278 = vmul.f32 %v3272, %v1661
  %v3279 = vmul.f32 %v3273, %v3273
  %v3280 = vmul.f32 %v3274, %v3274
  %v3281 = vmul.f32 %v3275, %v3275
  %v3282 = vmul.f32 %v3276, %v3276
  %v3283 = vmul.f32 %v3277, %v3277
  %v3284 = vmul.f32 %v3278, %v3278
  %v3285 = vsel %vm108, %v3279, 0.0
  %v3286 = vsel %vm108, %v3280, 0.0
  %v3287 = vadd.f32 %v3285, %v3286
  %v3288 = vsel %vm108, %v3281, 0.0
  %v3289 = vadd.f32 %v3287, %v3288
  %v3290 = vsel %vm108, %v3282, 0.0
  %v3291 = vadd.f32 %v3289, %v3290
  %v3292 = vsel %vm108, %v3283, 0.0
  %v3293 = vadd.f32 %v3291, %v3292
  %v3294 = vsel %vm108, %v3284, 0.0
  %v3295 = vadd.f32 %v3293, %v3294
  %3296 = vadd.xlane.f32.xlu0 %v3295
  %v3297 = vpop.xlane.xlu0 %3296
  %v3298 = vmul.f32 %v3297, 0.001953125
  %v3299 = vadd.f32 %v3298, 1e-05
  %v3300 = vrsqrt.pop %v3299
  %v3301 = vmul.f32 %v3300, %v3299
  %v3302 = vmul.f32 %v3301, %v3300
  %v3303 = vmul.f32 0.5, %v3302
  %v3304 = vsub.f32 1.5, %v3303
  %v3305 = vmul.f32 %v3300, %v3304
  %vm3306 = vweird.f32 %v3299
  %vm3307 = vweird.f32 %v3300
  %vm3308 = vmor %vm3306, %vm3307
  %v3309 = vsel %vm3308, %v3300, %v3305
  %v3310 = vmul.f32 %v3267, %v3309
  %v3311 = vmul.f32 %v3268, %v3309
  %v3312 = vmul.f32 %v3269, %v3309
  %v3313 = vmul.f32 %v3270, %v3309
  %v3314 = vmul.f32 %v3271, %v3309
  %v3315 = vmul.f32 %v3272, %v3309
  %3317 = vset.pattern.permute.xlu0 0
  %3318 = vperm.xlu0 %3317, %v3244
  %v3319 = vpop.permute.xlu0 %3318
  %v3321 = vmul.f32 %v3310, %v3319
  %v3322 = vmul.f32 %v3311, %v3319
  %v3323 = vmul.f32 %v3312, %v3319
  %v3324 = vmul.f32 %v3313, %v3319
  %v3325 = vmul.f32 %v3314, %v3319
  %v3326 = vmul.f32 %v3315, %v3319
  %3328 = vset.pattern.permute.xlu0 0
  %3329 = vperm.xlu0 %3328, %v3246
  %v3330 = vpop.permute.xlu0 %3329
  %v3332 = vadd.f32 %v3321, %v3330
  %v3333 = vadd.f32 %v3322, %v3330
  %v3334 = vadd.f32 %v3323, %v3330
  %v3335 = vadd.f32 %v3324, %v3330
  %v3336 = vadd.f32 %v3325, %v3330
  %v3337 = vadd.f32 %v3326, %v3330
  %3338 = vst [vmem:[#allocation1] ss:$2 sm:$0xff] %v20
  %s3339 = scalar_lea.vmem [#allocation1], 16
  %3340 = vst [vmem:[%s3339] ss:$2 sm:$0xff] %v21
  %s3341 = scalar_lea.vmem [#allocation1], 32
  %3342 = vst [vmem:[%s3341] ss:$2 sm:$0xff] %v22
  %v3343 = vld.sshfl [vmem:[#allocation1] sm:$0xff pattern:$0x75316420]
  %v3344 = vld.sshfl [vmem:[#allocation1 + $0x8] sm:$0xff pattern:$0x75316420]
  %v3345 = vld.sshfl [vmem:[#allocation1 + $0x10] sm:$0xff pattern:$0x75316420]
  %v3346 = vld.sshfl [vmem:[#allocation1 + $0x18] sm:$0xff pattern:$0x75316420]
  %v3347 = vld.sshfl [vmem:[#allocation1 + $0x20] sm:$0xff pattern:$0x75316420]
  %v3348 = vld.sshfl [vmem:[#allocation1 + $0x28] sm:$0xff pattern:$0x75316420]
  %v3355 = vadd.f32 %v3332, %v3343
  %v3356 = vadd.f32 %v3333, %v3344
  %v3357 = vadd.f32 %v3334, %v3345
  %v3358 = vadd.f32 %v3335, %v3346
  %v3359 = vadd.f32 %v3336, %v3347
  %v3360 = vadd.f32 %v3337, %v3348
  %v3361 = vmax.f32 %v3355, 0.0
  %v3362 = vmax.f32 %v3356, 0.0
  %v3363 = vmax.f32 %v3357, 0.0
  %v3364 = vmax.f32 %v3358, 0.0
  %v3365 = vmax.f32 %v3359, 0.0
  %v3366 = vmax.f32 %v3360, 0.0
  %v3373 = vrot.slane %v3362, 4
  %v3374 = vrot.slane %v3364, 4
  %v3375 = vrot.slane %v3366, 4
  %v3376 = vsel %vm108, %v3361, %v3373
  %v3377 = vsel %vm108, %v3363, %v3374
  %v3378 = vsel %vm108, %v3365, %v3375
  %3382 = vst [vmem:[%s5] sm:$0xff] %v3376
  %3383 = vst [vmem:[%s5 + $0x8] sm:$0xff] %v3377
  %3384 = vst [vmem:[%s5 + $0x10] sm:$0xff] %v3378
  // Predicated region
  $region22: #{resblock_mnist_forward.1} parent=0 // pred_check
    _
  $region23: #{resblock_mnist_forward.1} parent=0 // pred_check_branch
    %3386 = sbr.rel (0) target = $region25
  $region24: #{resblock_mnist_forward.1} parent=0 // pred_region
    _
  $region25: #{resblock_mnist_forward.1} parent=0 // pred_fallthru
    _
  // Predicated region
  $region26: #{resblock_mnist_forward.1} parent=0 // pred_check
    _
  $region27: #{resblock_mnist_forward.1} parent=0 // pred_check_branch
    %3388 = sbr.rel (0) target = $region29
  $region28: #{resblock_mnist_forward.1} parent=0 // pred_region
    _
  $region29: #{resblock_mnist_forward.1} parent=0 // pred_fallthru
    _

</llo_original>
